<compile_context>
chip_gen: v7x
topology: tpu7x:2x2x1
jax: 0.10.0
libtpu: 0.0.40
codegen_flags: <defaults>
</compile_context>

<pallas_src>
import jax
import jax.numpy as jnp
from jax.experimental import pallas as pl
from jax.experimental.pallas import tpu as pltpu

# ----------------------------- problem sizes --------------------------------
INPUT_DIM = 16            # x is (B, INPUT_DIM); chunked into two streams of length L
L = INPUT_DIM // 2        # per-stream sequence length (8)
HIDDEN = 64               # hidden_dim (small for the example)
OUT_DIM = 4               # output_dim
BATCH = 8                 # example batch (exercises 2 grid blocks + padding path)
C = 12                    # conv channels
K = 3                     # conv kernel width == pool window (self.w)

SEG = L + 2               # one packed segment: [guard, L data cols, guard] (10)
SPB = 6                   # samples per grid block: 2*SPB*SEG = 120 <= 128 lanes
NSTREAM = 2 * SPB         # streams per block (obs + target per sample)
PW = NSTREAM * SEG        # packed lane width per block (120)
PWP = PW + 2              # padded width used for conv-tap slicing (122)
H_ALL = SPB * HIDDEN      # fc1 width for a whole block (384)
OUT_PAD = 128             # lane-dense per-block output row width


def _tree_sum(xs):
    """Balanced-tree sum to shorten the add dependency chain."""
    while len(xs) > 1:
        nxt = [xs[i] + xs[i + 1] for i in range(0, len(xs) - 1, 2)]
        if len(xs) % 2:
            nxt.append(xs[-1])
        xs = nxt
    return xs[0]


# ------------------------------- the kernel ----------------------------------
def abcnn_kernel(x_ref, place_ref, w1a_ref, wmid_ref, bmid_ref, cmat_ref,
                 wfc1_ref, fc1b_ref, fc2blk_ref, fc2b_ref, out_ref):
    f32 = jnp.float32

    # scatter the raw per-sample inputs into the packed, zero-guarded row
    xp = jnp.dot(x_ref[0], place_ref[...], preferred_element_type=f32)   # (1, PWP)

    s10l = cmat_ref[0][:, 0:PW]          # a @ s10l == shift left by SEG
    bsum = cmat_ref[1][:, 0:PW]          # per-sample sum over obs data cols, bcast
    g1o = cmat_ref[2]                    # stage-1 pool*3, obs rows only, re-pad
    g1to = cmat_ref[3]                   # same, shifted onto target columns
    g = cmat_ref[4]                      # stages 2-3 avg pool + masks + re-pad

    # ---- stage 1: Conv1d(1->12, k=3, pad=1) via broadcast taps (VPU) + tanh
    a = (w1a_ref[:, 0:1] * xp[:, 0:PW]
         + w1a_ref[:, 1:2] * xp[:, 1:1 + PW]
         + w1a_ref[:, 2:3] * xp[:, 2:2 + PW]
         + w1a_ref[:, 3:4])
    a = jnp.tanh(a)                                          # (C, PW)

    # ---- attention, all SPB samples / both streams at once
    a_t = jnp.dot(a, s10l, preferred_element_type=f32)       # target aligned on obs cols
    diff = a - a_t
    d = pl.reciprocal(1.0 + jnp.sum(diff * diff, axis=0, keepdims=True),
                      approx=True)                           # (1, PW)
    s_b = jnp.dot(d, bsum, preferred_element_type=f32)       # per-sample sum(d), bcast
    o_new = s_b * a
    t_src = (float(L) * d) * o_new
    padded = (jnp.dot(o_new, g1o, preferred_element_type=f32)
              + jnp.dot(t_src, g1to, preferred_element_type=f32))       # (C, PWP)

    # ---- stages 2-3: conv(k=3,pad=1) + tanh + avg_pool (one packed tile each)
    for i in range(2):
        conv = (jnp.dot(wmid_ref[3 * i + 0], padded[:, 0:PW], preferred_element_type=f32)
                + jnp.dot(wmid_ref[3 * i + 1], padded[:, 1:1 + PW], preferred_element_type=f32)
                + jnp.dot(wmid_ref[3 * i + 2], padded[:, 2:2 + PW], preferred_element_type=f32)
                + bmid_ref[i])
        padded = jnp.dot(jnp.tanh(conv), g, preferred_element_type=f32)

    # ---- stage 4: conv + tanh; its avg pool is folded into the fc1 weights
    conv4 = (jnp.dot(wmid_ref[6], padded[:, 0:PW], preferred_element_type=f32)
             + jnp.dot(wmid_ref[7], padded[:, 1:1 + PW], preferred_element_type=f32)
             + jnp.dot(wmid_ref[8], padded[:, 2:2 + PW], preferred_element_type=f32)
             + bmid_ref[2])
    t4 = jnp.tanh(conv4)                                     # (C, PW)

    # ---- fc1 (+ReLU) and fc2 for all SPB samples (block-diagonal weights)
    terms = [fc1b_ref[...]]
    for c in range(C):
        terms.append(jnp.dot(t4[c:c + 1, :], wfc1_ref[c], preferred_element_type=f32))
    h = jnp.maximum(_tree_sum(terms), 0.0)                   # (1, H_ALL)
    out = jnp.dot(h, fc2blk_ref[...], preferred_element_type=f32) + fc2b_ref[...]
    out_ref[0] = out                                         # lane-dense (1, 128) store


# ------------------------------ host wrapper ---------------------------------
def prepare_params(p):
    """Re-pack torch-layout parameters into the constant arrays the kernel expects."""
    f32 = jnp.float32
    idx = jnp.arange(PW)
    within = idx % SEG
    seg = idx // SEG
    sample = idx // (2 * SEG)
    is_data = ((within >= 1) & (within <= L)).astype(f32)
    is_obs = is_data * ((seg % 2) == 0).astype(f32)

    # column-space operators (applied as  activation @ M  inside the kernel)
    tri = (jnp.abs(idx[:, None] - idx[None, :]) <= 1).astype(f32)
    core = tri * is_data[:, None] * is_data[None, :]          # mask-in, 3-tap sum, mask-out
    g1 = jnp.pad(core, ((0, 0), (1, 1)))                      # stage-1 pool*3 + re-pad
    g = jnp.pad(core / 3.0, ((0, 0), (1, 1)))                 # stages 2-3 avg pool + re-pad
    g1o = g1 * is_obs[:, None]                                # obs rows only
    g1t = jnp.concatenate([g1[SEG:, :], jnp.zeros((SEG, PWP), f32)], axis=0)
    g1to = g1t * is_obs[:, None]                              # obs rows -> target cols
    s10l = (idx[:, None] == idx[None, :] + SEG).astype(f32)   # a @ s10l: shift left by SEG
    bsum = (sample[:, None] == sample[None, :]).astype(f32) * is_obs[:, None]
    cmats = jnp.stack([jnp.pad(s10l, ((0, 0), (0, 2))),
                       jnp.pad(bsum, ((0, 0), (0, 2))),
                       g1o, g1to, g]).astype(f32)             # (5, PW, PWP)

    # input placement matrix: raw (SPB*INPUT_DIM) -> padded packed row (PWP)
    place = jnp.zeros((SPB * INPUT_DIM, PWP), f32)
    for s in range(SPB):
        for st in range(2):                                   # 0 = obs, 1 = target
            src = s * INPUT_DIM + st * L
            dst = 1 + (2 * s + st) * SEG + 1
            place = place.at[jnp.arange(src, src + L),
                             jnp.arange(dst, dst + L)].set(1.0)

    # conv1 (1 -> 12): three taps + bias as columns
    w1a = jnp.concatenate([p["w1"][:, 0, :], p["b1"][:, None]], axis=1).astype(f32)   # (C, 4)
    # conv2..4: per-tap (C_out, C_in) matrices, index = 3*stage + tap
    wmid = jnp.stack([w[:, :, k] for w in (p["w2"], p["w3"], p["w4"])
                      for k in range(K)]).astype(f32)                                 # (9, C, C)
    bmid = jnp.stack([p["b2"], p["b3"], p["b4"]])[:, :, None].astype(f32)             # (3, C, 1)

    # fc1: per-channel (PW, SPB*HIDDEN) blocks with the stage-4 avg-pool folded in
    blk = jnp.transpose(p["fc1w"].reshape(HIDDEN, 2, C, L), (2, 3, 1, 0))  # [c, l, stream, h]
    w4 = jnp.zeros((C, PW, SPB, HIDDEN), f32)
    for s in range(SPB):
        for st in range(2):
            off = (2 * s + st) * SEG + 1
            w4 = w4.at[:, off:off + L, s, :].set(blk[:, :, st, :])
    wfc_raw = w4.reshape(C, PW, H_ALL)
    wfc1 = jnp.einsum("pq,cqh->cph", core / 3.0, wfc_raw,
                      precision=jax.lax.Precision.HIGHEST).astype(f32)     # (C, PW, H_ALL)

    fc1b = jnp.tile(p["fc1b"], SPB)[None, :].astype(f32)                   # (1, H_ALL)
    fc2blk = jnp.zeros((H_ALL, OUT_PAD), f32)
    for s in range(SPB):
        fc2blk = fc2blk.at[s * HIDDEN:(s + 1) * HIDDEN,
                           s * OUT_DIM:(s + 1) * OUT_DIM].set(jnp.transpose(p["fc2w"]))
    fc2b = jnp.zeros((1, OUT_PAD), f32).at[0, :SPB * OUT_DIM].set(jnp.tile(p["fc2b"], SPB))
    return dict(place=place, w1a=w1a, wmid=wmid, bmid=bmid, cmats=cmats,
                wfc1=wfc1, fc1b=fc1b, fc2blk=fc2blk, fc2b=fc2b)


@jax.jit
def abcnn_forward(x, kp):
    bsz = x.shape[0]
    nblk = -(-bsz // SPB)                       # sample blocks (grid steps)
    pad = nblk * SPB - bsz
    if pad:
        x = jnp.pad(x, ((0, pad), (0, 0)))      # zero samples: finite, sliced off below
    xb = x.reshape(nblk, 1, SPB * INPUT_DIM).astype(jnp.float32)

    consts = (kp["place"], kp["w1a"], kp["wmid"], kp["bmid"], kp["cmats"],
              kp["wfc1"], kp["fc1b"], kp["fc2blk"], kp["fc2b"])

    def const_spec(a):
        nd = a.ndim
        return pl.BlockSpec(a.shape, lambda i, _n=nd: (0,) * _n)   # resident across steps

    out = pl.pallas_call(
        abcnn_kernel,
        grid=(nblk,),
        in_specs=[pl.BlockSpec((1, 1, SPB * INPUT_DIM), lambda i: (i, 0, 0))]
                 + [const_spec(a) for a in consts],
        out_specs=pl.BlockSpec((1, 1, OUT_PAD), lambda i: (i, 0, 0)),
        out_shape=jax.ShapeDtypeStruct((nblk, 1, OUT_PAD), jnp.float32),
        compiler_params=pltpu.CompilerParams(
            dimension_semantics=("parallel",)),     # shards blocks across TCs on v7x
    )(xb, *consts)

    out = out.reshape(nblk, OUT_PAD)[:, :SPB * OUT_DIM]
    return out.reshape(nblk * SPB, OUT_DIM)[:bsz]


# --------------------------- pure-JAX reference ------------------------------
def _conv1d_ref(x, w, b):
    lx = x.shape[-1]
    xp = jnp.pad(x, ((0, 0), (0, 0), (1, 1)))
    out = b[None, :, None]
    for k in range(K):
        out = out + jnp.einsum("oi,bil->bol", w[:, :, k], xp[:, :, k:k + lx])
    return out


def _avgpool_ref(x):
    lx = x.shape[-1]
    xp = jnp.pad(x, ((0, 0), (0, 0), (1, 1)))
    return (xp[:, :, 0:lx] + xp[:, :, 1:lx + 1] + xp[:, :, 2:lx + 2]) / 3.0


def _attention_ref(o, t):
    lx = o.shape[-1]
    d = 1.0 / (1.0 + jnp.sum((o - t) ** 2, axis=1))      # (B, L)
    s = jnp.sum(d, axis=1)                               # (B,)
    o_new = o * s[:, None, None]
    t_new = o_new * (float(lx) * d)[:, None, :]
    return o_new, t_new


def torch_reference(x, p):
    bsz = x.shape[0]
    obs, tgt = jnp.split(x, 2, axis=1)
    obs = obs[:, None, :]
    tgt = tgt[:, None, :]
    o = jnp.tanh(_conv1d_ref(obs, p["w1"], p["b1"]))
    t = jnp.tanh(_conv1d_ref(tgt, p["w1"], p["b1"]))
    o, t = _attention_ref(o, t)
    o = _avgpool_ref(o) * float(K)
    t = _avgpool_ref(t) * float(K)
    for wk, bk in (("w2", "b2"), ("w3", "b3"), ("w4", "b4")):
        o = _avgpool_ref(jnp.tanh(_conv1d_ref(o, p[wk], p[bk])))
        t = _avgpool_ref(jnp.tanh(_conv1d_ref(t, p[wk], p[bk])))
    flat = jnp.concatenate([o.reshape(bsz, -1), t.reshape(bsz, -1)], axis=1)
    h = jnp.maximum(flat @ p["fc1w"].T + p["fc1b"], 0.0)
    return h @ p["fc2w"].T + p["fc2b"]


# ----------------------------------- main ------------------------------------
if __name__ == "__main__":
    key = jax.random.PRNGKey(0)
    keys = jax.random.split(key, 13)

    def rnd(k, shape, scale=0.1):
        return (scale * jax.random.normal(k, shape)).astype(jnp.float32)

    raw = dict(
        w1=rnd(keys[0], (C, 1, K)),  b1=rnd(keys[1], (C,)),
        w2=rnd(keys[2], (C, C, K)),  b2=rnd(keys[3], (C,)),
        w3=rnd(keys[4], (C, C, K)),  b3=rnd(keys[5], (C,)),
        w4=rnd(keys[6], (C, C, K)),  b4=rnd(keys[7], (C,)),
        fc1w=rnd(keys[8], (HIDDEN, C * INPUT_DIM)), fc1b=rnd(keys[9], (HIDDEN,)),
        fc2w=rnd(keys[10], (OUT_DIM, HIDDEN)),      fc2b=rnd(keys[11], (OUT_DIM,)),
    )
    x = rnd(keys[12], (BATCH, INPUT_DIM), scale=1.0)

    kp = prepare_params(raw)
    out = jax.block_until_ready(abcnn_forward(x, kp))

    with jax.default_matmul_precision("float32"):   # accurate reference on TPU
        ref = torch_reference(x, raw)
    err = float(jnp.max(jnp.abs(out - ref)))
    assert out.shape == (BATCH, OUT_DIM), out.shape
    assert err < 2e-3, f"max abs err {err}"
    print("KERNEL_OK")
</pallas_src>

<mosaic_0001>
module attributes {stable_mosaic.version = 11 : i64} {
  func.func @abcnn_kernel(%arg0: i32, %arg1: memref<1x1x96xf32, #tpu.memory_space<vmem>>, %arg2: memref<96x122xf32, #tpu.memory_space<vmem>>, %arg3: memref<12x4xf32, #tpu.memory_space<vmem>>, %arg4: memref<9x12x12xf32, #tpu.memory_space<vmem>>, %arg5: memref<3x12x1xf32, #tpu.memory_space<vmem>>, %arg6: memref<5x120x122xf32, #tpu.memory_space<vmem>>, %arg7: memref<12x120x384xf32, #tpu.memory_space<vmem>>, %arg8: memref<1x384xf32, #tpu.memory_space<vmem>>, %arg9: memref<384x128xf32, #tpu.memory_space<vmem>>, %arg10: memref<1x128xf32, #tpu.memory_space<vmem>>, %arg11: memref<1x1x128xf32, #tpu.memory_space<vmem>>) attributes {dimension_semantics = [#tpu.dimension_semantics<parallel>], iteration_bounds = array<i64: 2>, scalar_prefetch = 0 : i64, scratch_operands = 0 : i64, tpu.core_type = #tpu.core_type<tc>, window_params = [{transform_indices = @transform_0, window_bounds = array<i64: 1, 1, 96>}, {pipeline_mode = #tpu.pipeline_mode<synchronous>, transform_indices = @transform_1, window_bounds = array<i64: 96, 122>}, {pipeline_mode = #tpu.pipeline_mode<synchronous>, transform_indices = @transform_2, window_bounds = array<i64: 12, 4>}, {pipeline_mode = #tpu.pipeline_mode<synchronous>, transform_indices = @transform_3, window_bounds = array<i64: 9, 12, 12>}, {pipeline_mode = #tpu.pipeline_mode<synchronous>, transform_indices = @transform_4, window_bounds = array<i64: 3, 12, 1>}, {pipeline_mode = #tpu.pipeline_mode<synchronous>, transform_indices = @transform_5, window_bounds = array<i64: 5, 120, 122>}, {pipeline_mode = #tpu.pipeline_mode<synchronous>, transform_indices = @transform_6, window_bounds = array<i64: 12, 120, 384>}, {pipeline_mode = #tpu.pipeline_mode<synchronous>, transform_indices = @transform_7, window_bounds = array<i64: 1, 384>}, {pipeline_mode = #tpu.pipeline_mode<synchronous>, transform_indices = @transform_8, window_bounds = array<i64: 384, 128>}, {pipeline_mode = #tpu.pipeline_mode<synchronous>, transform_indices = @transform_9, window_bounds = array<i64: 1, 128>}, {transform_indices = @transform_10, window_bounds = array<i64: 1, 1, 128>}]} {
    %c0 = arith.constant 0 : index
    %c0_0 = arith.constant 0 : index
    %c0_1 = arith.constant 0 : index
    %0 = vector.load %arg1[%c0, %c0_0, %c0_1] : memref<1x1x96xf32, #tpu.memory_space<vmem>>, vector<1x1x96xf32>
    %1 = vector.shape_cast %0 : vector<1x1x96xf32> to vector<1x96xf32>
    %c0_2 = arith.constant 0 : index
    %c0_3 = arith.constant 0 : index
    %2 = vector.load %arg2[%c0_2, %c0_3] : memref<96x122xf32, #tpu.memory_space<vmem>>, vector<96x122xf32>
    %cst = arith.constant dense<0.000000e+00> : vector<1x122xf32>
    %3 = tpu.matmul %1, %2, %cst {dimension_numbers = #tpu.dot_dimension_numbers<[1], [0], [0], [1], [0, 0, 1, 1], [], []>} : vector<1x96xf32>, vector<96x122xf32>, vector<1x122xf32> -> vector<1x122xf32>
    %c0_4 = arith.constant 0 : index
    %c0_5 = arith.constant 0 : index
    %c0_6 = arith.constant 0 : index
    %4 = vector.load %arg6[%c0_4, %c0_5, %c0_6] : memref<5x120x122xf32, #tpu.memory_space<vmem>>, vector<1x120x122xf32>
    %5 = vector.shape_cast %4 : vector<1x120x122xf32> to vector<120x122xf32>
    %6 = vector.extract_strided_slice %5 {offsets = [0, 0], sizes = [120, 120], strides = [1, 1]} : vector<120x122xf32> to vector<120x120xf32>
    %c1 = arith.constant 1 : index
    %c0_7 = arith.constant 0 : index
    %c0_8 = arith.constant 0 : index
    %7 = vector.load %arg6[%c1, %c0_7, %c0_8] : memref<5x120x122xf32, #tpu.memory_space<vmem>>, vector<1x120x122xf32>
    %8 = vector.shape_cast %7 : vector<1x120x122xf32> to vector<120x122xf32>
    %9 = vector.extract_strided_slice %8 {offsets = [0, 0], sizes = [120, 120], strides = [1, 1]} : vector<120x122xf32> to vector<120x120xf32>
    %c2 = arith.constant 2 : index
    %c0_9 = arith.constant 0 : index
    %c0_10 = arith.constant 0 : index
    %10 = vector.load %arg6[%c2, %c0_9, %c0_10] : memref<5x120x122xf32, #tpu.memory_space<vmem>>, vector<1x120x122xf32>
    %11 = vector.shape_cast %10 : vector<1x120x122xf32> to vector<120x122xf32>
    %c3 = arith.constant 3 : index
    %c0_11 = arith.constant 0 : index
    %c0_12 = arith.constant 0 : index
    %12 = vector.load %arg6[%c3, %c0_11, %c0_12] : memref<5x120x122xf32, #tpu.memory_space<vmem>>, vector<1x120x122xf32>
    %13 = vector.shape_cast %12 : vector<1x120x122xf32> to vector<120x122xf32>
    %c4 = arith.constant 4 : index
    %c0_13 = arith.constant 0 : index
    %c0_14 = arith.constant 0 : index
    %14 = vector.load %arg6[%c4, %c0_13, %c0_14] : memref<5x120x122xf32, #tpu.memory_space<vmem>>, vector<1x120x122xf32>
    %15 = vector.shape_cast %14 : vector<1x120x122xf32> to vector<120x122xf32>
    %c0_15 = arith.constant 0 : index
    %c0_16 = arith.constant 0 : index
    %16 = vector.load %arg3[%c0_15, %c0_16] : memref<12x4xf32, #tpu.memory_space<vmem>>, vector<12x1xf32>
    %17 = vector.extract_strided_slice %3 {offsets = [0, 0], sizes = [1, 120], strides = [1, 1]} : vector<1x122xf32> to vector<1x120xf32>
    %18 = vector.broadcast %16 : vector<12x1xf32> to vector<12x120xf32>
    %19 = vector.broadcast %17 : vector<1x120xf32> to vector<12x120xf32>
    %20 = arith.mulf %18, %19 : vector<12x120xf32>
    %c0_17 = arith.constant 0 : index
    %c1_18 = arith.constant 1 : index
    %21 = vector.load %arg3[%c0_17, %c1_18] : memref<12x4xf32, #tpu.memory_space<vmem>>, vector<12x1xf32>
    %22 = vector.extract_strided_slice %3 {offsets = [0, 1], sizes = [1, 120], strides = [1, 1]} : vector<1x122xf32> to vector<1x120xf32>
    %23 = vector.broadcast %21 : vector<12x1xf32> to vector<12x120xf32>
    %24 = vector.broadcast %22 : vector<1x120xf32> to vector<12x120xf32>
    %25 = arith.mulf %23, %24 : vector<12x120xf32>
    %26 = arith.addf %20, %25 : vector<12x120xf32>
    %c0_19 = arith.constant 0 : index
    %c2_20 = arith.constant 2 : index
    %27 = vector.load %arg3[%c0_19, %c2_20] : memref<12x4xf32, #tpu.memory_space<vmem>>, vector<12x1xf32>
    %28 = vector.extract_strided_slice %3 {offsets = [0, 2], sizes = [1, 120], strides = [1, 1]} : vector<1x122xf32> to vector<1x120xf32>
    %29 = vector.broadcast %27 : vector<12x1xf32> to vector<12x120xf32>
    %30 = vector.broadcast %28 : vector<1x120xf32> to vector<12x120xf32>
    %31 = arith.mulf %29, %30 : vector<12x120xf32>
    %32 = arith.addf %26, %31 : vector<12x120xf32>
    %c0_21 = arith.constant 0 : index
    %c3_22 = arith.constant 3 : index
    %33 = vector.load %arg3[%c0_21, %c3_22] : memref<12x4xf32, #tpu.memory_space<vmem>>, vector<12x1xf32>
    %34 = vector.broadcast %33 : vector<12x1xf32> to vector<12x120xf32>
    %35 = arith.addf %32, %34 : vector<12x120xf32>
    %36 = math.tanh %35 : vector<12x120xf32>
    %cst_23 = arith.constant dense<0.000000e+00> : vector<12x120xf32>
    %37 = tpu.matmul %36, %6, %cst_23 {dimension_numbers = #tpu.dot_dimension_numbers<[1], [0], [0], [1], [0, 0, 1, 1], [], []>} : vector<12x120xf32>, vector<120x120xf32>, vector<12x120xf32> -> vector<12x120xf32>
    %38 = arith.subf %36, %37 : vector<12x120xf32>
    %39 = arith.mulf %38, %38 : vector<12x120xf32>
    %cst_24 = arith.constant dense<0.000000e+00> : vector<120xf32>
    %40 = vector.multi_reduction <add>, %39, %cst_24 [0] : vector<12x120xf32> to vector<120xf32>
    %41 = vector.shape_cast %40 : vector<120xf32> to vector<1x120xf32>
    %cst_25 = arith.constant 1.000000e+00 : f32
    %42 = vector.broadcast %cst_25 : f32 to vector<1x120xf32>
    %43 = arith.addf %42, %41 : vector<1x120xf32>
    %44 = tpu.reciprocal %43 {approx = true} : vector<1x120xf32> -> vector<1x120xf32>
    %cst_26 = arith.constant dense<0.000000e+00> : vector<1x120xf32>
    %45 = tpu.matmul %44, %9, %cst_26 {dimension_numbers = #tpu.dot_dimension_numbers<[1], [0], [0], [1], [0, 0, 1, 1], [], []>} : vector<1x120xf32>, vector<120x120xf32>, vector<1x120xf32> -> vector<1x120xf32>
    %46 = vector.broadcast %45 : vector<1x120xf32> to vector<12x120xf32>
    %47 = arith.mulf %46, %36 : vector<12x120xf32>
    %cst_27 = arith.constant 8.000000e+00 : f32
    %48 = vector.broadcast %cst_27 : f32 to vector<1x120xf32>
    %49 = arith.mulf %48, %44 : vector<1x120xf32>
    %50 = vector.broadcast %49 : vector<1x120xf32> to vector<12x120xf32>
    %51 = arith.mulf %50, %47 : vector<12x120xf32>
    %cst_28 = arith.constant dense<0.000000e+00> : vector<12x122xf32>
    %52 = tpu.matmul %47, %11, %cst_28 {dimension_numbers = #tpu.dot_dimension_numbers<[1], [0], [0], [1], [0, 0, 1, 1], [], []>} : vector<12x120xf32>, vector<120x122xf32>, vector<12x122xf32> -> vector<12x122xf32>
    %cst_29 = arith.constant dense<0.000000e+00> : vector<12x122xf32>
    %53 = tpu.matmul %51, %13, %cst_29 {dimension_numbers = #tpu.dot_dimension_numbers<[1], [0], [0], [1], [0, 0, 1, 1], [], []>} : vector<12x120xf32>, vector<120x122xf32>, vector<12x122xf32> -> vector<12x122xf32>
    %54 = arith.addf %52, %53 : vector<12x122xf32>
    %c0_30 = arith.constant 0 : index
    %c0_31 = arith.constant 0 : index
    %c0_32 = arith.constant 0 : index
    %55 = vector.load %arg4[%c0_30, %c0_31, %c0_32] : memref<9x12x12xf32, #tpu.memory_space<vmem>>, vector<1x12x12xf32>
    %56 = vector.shape_cast %55 : vector<1x12x12xf32> to vector<12x12xf32>
    %57 = vector.extract_strided_slice %54 {offsets = [0, 0], sizes = [12, 120], strides = [1, 1]} : vector<12x122xf32> to vector<12x120xf32>
    %cst_33 = arith.constant dense<0.000000e+00> : vector<12x120xf32>
    %58 = tpu.matmul %56, %57, %cst_33 {dimension_numbers = #tpu.dot_dimension_numbers<[1], [0], [0], [1], [0, 0, 1, 1], [], []>} : vector<12x12xf32>, vector<12x120xf32>, vector<12x120xf32> -> vector<12x120xf32>
    %c1_34 = arith.constant 1 : index
    %c0_35 = arith.constant 0 : index
    %c0_36 = arith.constant 0 : index
    %59 = vector.load %arg4[%c1_34, %c0_35, %c0_36] : memref<9x12x12xf32, #tpu.memory_space<vmem>>, vector<1x12x12xf32>
    %60 = vector.shape_cast %59 : vector<1x12x12xf32> to vector<12x12xf32>
    %61 = vector.extract_strided_slice %54 {offsets = [0, 1], sizes = [12, 120], strides = [1, 1]} : vector<12x122xf32> to vector<12x120xf32>
    %cst_37 = arith.constant dense<0.000000e+00> : vector<12x120xf32>
    %62 = tpu.matmul %60, %61, %cst_37 {dimension_numbers = #tpu.dot_dimension_numbers<[1], [0], [0], [1], [0, 0, 1, 1], [], []>} : vector<12x12xf32>, vector<12x120xf32>, vector<12x120xf32> -> vector<12x120xf32>
    %63 = arith.addf %58, %62 : vector<12x120xf32>
    %c2_38 = arith.constant 2 : index
    %c0_39 = arith.constant 0 : index
    %c0_40 = arith.constant 0 : index
    %64 = vector.load %arg4[%c2_38, %c0_39, %c0_40] : memref<9x12x12xf32, #tpu.memory_space<vmem>>, vector<1x12x12xf32>
    %65 = vector.shape_cast %64 : vector<1x12x12xf32> to vector<12x12xf32>
    %66 = vector.extract_strided_slice %54 {offsets = [0, 2], sizes = [12, 120], strides = [1, 1]} : vector<12x122xf32> to vector<12x120xf32>
    %cst_41 = arith.constant dense<0.000000e+00> : vector<12x120xf32>
    %67 = tpu.matmul %65, %66, %cst_41 {dimension_numbers = #tpu.dot_dimension_numbers<[1], [0], [0], [1], [0, 0, 1, 1], [], []>} : vector<12x12xf32>, vector<12x120xf32>, vector<12x120xf32> -> vector<12x120xf32>
    %68 = arith.addf %63, %67 : vector<12x120xf32>
    %c0_42 = arith.constant 0 : index
    %c0_43 = arith.constant 0 : index
    %c0_44 = arith.constant 0 : index
    %69 = vector.load %arg5[%c0_42, %c0_43, %c0_44] : memref<3x12x1xf32, #tpu.memory_space<vmem>>, vector<1x12x1xf32>
    %70 = vector.shape_cast %69 : vector<1x12x1xf32> to vector<12x1xf32>
    %71 = vector.broadcast %70 : vector<12x1xf32> to vector<12x120xf32>
    %72 = arith.addf %68, %71 : vector<12x120xf32>
    %73 = math.tanh %72 : vector<12x120xf32>
    %cst_45 = arith.constant dense<0.000000e+00> : vector<12x122xf32>
    %74 = tpu.matmul %73, %15, %cst_45 {dimension_numbers = #tpu.dot_dimension_numbers<[1], [0], [0], [1], [0, 0, 1, 1], [], []>} : vector<12x120xf32>, vector<120x122xf32>, vector<12x122xf32> -> vector<12x122xf32>
    %c3_46 = arith.constant 3 : index
    %c0_47 = arith.constant 0 : index
    %c0_48 = arith.constant 0 : index
    %75 = vector.load %arg4[%c3_46, %c0_47, %c0_48] : memref<9x12x12xf32, #tpu.memory_space<vmem>>, vector<1x12x12xf32>
    %76 = vector.shape_cast %75 : vector<1x12x12xf32> to vector<12x12xf32>
    %77 = vector.extract_strided_slice %74 {offsets = [0, 0], sizes = [12, 120], strides = [1, 1]} : vector<12x122xf32> to vector<12x120xf32>
    %cst_49 = arith.constant dense<0.000000e+00> : vector<12x120xf32>
    %78 = tpu.matmul %76, %77, %cst_49 {dimension_numbers = #tpu.dot_dimension_numbers<[1], [0], [0], [1], [0, 0, 1, 1], [], []>} : vector<12x12xf32>, vector<12x120xf32>, vector<12x120xf32> -> vector<12x120xf32>
    %c4_50 = arith.constant 4 : index
    %c0_51 = arith.constant 0 : index
    %c0_52 = arith.constant 0 : index
    %79 = vector.load %arg4[%c4_50, %c0_51, %c0_52] : memref<9x12x12xf32, #tpu.memory_space<vmem>>, vector<1x12x12xf32>
    %80 = vector.shape_cast %79 : vector<1x12x12xf32> to vector<12x12xf32>
    %81 = vector.extract_strided_slice %74 {offsets = [0, 1], sizes = [12, 120], strides = [1, 1]} : vector<12x122xf32> to vector<12x120xf32>
    %cst_53 = arith.constant dense<0.000000e+00> : vector<12x120xf32>
    %82 = tpu.matmul %80, %81, %cst_53 {dimension_numbers = #tpu.dot_dimension_numbers<[1], [0], [0], [1], [0, 0, 1, 1], [], []>} : vector<12x12xf32>, vector<12x120xf32>, vector<12x120xf32> -> vector<12x120xf32>
    %83 = arith.addf %78, %82 : vector<12x120xf32>
    %c5 = arith.constant 5 : index
    %c0_54 = arith.constant 0 : index
    %c0_55 = arith.constant 0 : index
    %84 = vector.load %arg4[%c5, %c0_54, %c0_55] : memref<9x12x12xf32, #tpu.memory_space<vmem>>, vector<1x12x12xf32>
    %85 = vector.shape_cast %84 : vector<1x12x12xf32> to vector<12x12xf32>
    %86 = vector.extract_strided_slice %74 {offsets = [0, 2], sizes = [12, 120], strides = [1, 1]} : vector<12x122xf32> to vector<12x120xf32>
    %cst_56 = arith.constant dense<0.000000e+00> : vector<12x120xf32>
    %87 = tpu.matmul %85, %86, %cst_56 {dimension_numbers = #tpu.dot_dimension_numbers<[1], [0], [0], [1], [0, 0, 1, 1], [], []>} : vector<12x12xf32>, vector<12x120xf32>, vector<12x120xf32> -> vector<12x120xf32>
    %88 = arith.addf %83, %87 : vector<12x120xf32>
    %c1_57 = arith.constant 1 : index
    %c0_58 = arith.constant 0 : index
    %c0_59 = arith.constant 0 : index
    %89 = vector.load %arg5[%c1_57, %c0_58, %c0_59] : memref<3x12x1xf32, #tpu.memory_space<vmem>>, vector<1x12x1xf32>
    %90 = vector.shape_cast %89 : vector<1x12x1xf32> to vector<12x1xf32>
    %91 = vector.broadcast %90 : vector<12x1xf32> to vector<12x120xf32>
    %92 = arith.addf %88, %91 : vector<12x120xf32>
    %93 = math.tanh %92 : vector<12x120xf32>
    %cst_60 = arith.constant dense<0.000000e+00> : vector<12x122xf32>
    %94 = tpu.matmul %93, %15, %cst_60 {dimension_numbers = #tpu.dot_dimension_numbers<[1], [0], [0], [1], [0, 0, 1, 1], [], []>} : vector<12x120xf32>, vector<120x122xf32>, vector<12x122xf32> -> vector<12x122xf32>
    %c6 = arith.constant 6 : index
    %c0_61 = arith.constant 0 : index
    %c0_62 = arith.constant 0 : index
    %95 = vector.load %arg4[%c6, %c0_61, %c0_62] : memref<9x12x12xf32, #tpu.memory_space<vmem>>, vector<1x12x12xf32>
    %96 = vector.shape_cast %95 : vector<1x12x12xf32> to vector<12x12xf32>
    %97 = vector.extract_strided_slice %94 {offsets = [0, 0], sizes = [12, 120], strides = [1, 1]} : vector<12x122xf32> to vector<12x120xf32>
    %cst_63 = arith.constant dense<0.000000e+00> : vector<12x120xf32>
    %98 = tpu.matmul %96, %97, %cst_63 {dimension_numbers = #tpu.dot_dimension_numbers<[1], [0], [0], [1], [0, 0, 1, 1], [], []>} : vector<12x12xf32>, vector<12x120xf32>, vector<12x120xf32> -> vector<12x120xf32>
    %c7 = arith.constant 7 : index
    %c0_64 = arith.constant 0 : index
    %c0_65 = arith.constant 0 : index
    %99 = vector.load %arg4[%c7, %c0_64, %c0_65] : memref<9x12x12xf32, #tpu.memory_space<vmem>>, vector<1x12x12xf32>
    %100 = vector.shape_cast %99 : vector<1x12x12xf32> to vector<12x12xf32>
    %101 = vector.extract_strided_slice %94 {offsets = [0, 1], sizes = [12, 120], strides = [1, 1]} : vector<12x122xf32> to vector<12x120xf32>
    %cst_66 = arith.constant dense<0.000000e+00> : vector<12x120xf32>
    %102 = tpu.matmul %100, %101, %cst_66 {dimension_numbers = #tpu.dot_dimension_numbers<[1], [0], [0], [1], [0, 0, 1, 1], [], []>} : vector<12x12xf32>, vector<12x120xf32>, vector<12x120xf32> -> vector<12x120xf32>
    %103 = arith.addf %98, %102 : vector<12x120xf32>
    %c8 = arith.constant 8 : index
    %c0_67 = arith.constant 0 : index
    %c0_68 = arith.constant 0 : index
    %104 = vector.load %arg4[%c8, %c0_67, %c0_68] : memref<9x12x12xf32, #tpu.memory_space<vmem>>, vector<1x12x12xf32>
    %105 = vector.shape_cast %104 : vector<1x12x12xf32> to vector<12x12xf32>
    %106 = vector.extract_strided_slice %94 {offsets = [0, 2], sizes = [12, 120], strides = [1, 1]} : vector<12x122xf32> to vector<12x120xf32>
    %cst_69 = arith.constant dense<0.000000e+00> : vector<12x120xf32>
    %107 = tpu.matmul %105, %106, %cst_69 {dimension_numbers = #tpu.dot_dimension_numbers<[1], [0], [0], [1], [0, 0, 1, 1], [], []>} : vector<12x12xf32>, vector<12x120xf32>, vector<12x120xf32> -> vector<12x120xf32>
    %108 = arith.addf %103, %107 : vector<12x120xf32>
    %c2_70 = arith.constant 2 : index
    %c0_71 = arith.constant 0 : index
    %c0_72 = arith.constant 0 : index
    %109 = vector.load %arg5[%c2_70, %c0_71, %c0_72] : memref<3x12x1xf32, #tpu.memory_space<vmem>>, vector<1x12x1xf32>
    %110 = vector.shape_cast %109 : vector<1x12x1xf32> to vector<12x1xf32>
    %111 = vector.broadcast %110 : vector<12x1xf32> to vector<12x120xf32>
    %112 = arith.addf %108, %111 : vector<12x120xf32>
    %113 = math.tanh %112 : vector<12x120xf32>
    %c0_73 = arith.constant 0 : index
    %c0_74 = arith.constant 0 : index
    %114 = vector.load %arg8[%c0_73, %c0_74] : memref<1x384xf32, #tpu.memory_space<vmem>>, vector<1x384xf32>
    %115 = vector.extract_strided_slice %113 {offsets = [0, 0], sizes = [1, 120], strides = [1, 1]} : vector<12x120xf32> to vector<1x120xf32>
    %c0_75 = arith.constant 0 : index
    %c0_76 = arith.constant 0 : index
    %c0_77 = arith.constant 0 : index
    %116 = vector.load %arg7[%c0_75, %c0_76, %c0_77] : memref<12x120x384xf32, #tpu.memory_space<vmem>>, vector<1x120x384xf32>
    %117 = vector.shape_cast %116 : vector<1x120x384xf32> to vector<120x384xf32>
    %cst_78 = arith.constant dense<0.000000e+00> : vector<1x384xf32>
    %118 = tpu.matmul %115, %117, %cst_78 {dimension_numbers = #tpu.dot_dimension_numbers<[1], [0], [0], [1], [0, 0, 1, 1], [], []>} : vector<1x120xf32>, vector<120x384xf32>, vector<1x384xf32> -> vector<1x384xf32>
    %119 = vector.extract_strided_slice %113 {offsets = [1, 0], sizes = [1, 120], strides = [1, 1]} : vector<12x120xf32> to vector<1x120xf32>
    %c1_79 = arith.constant 1 : index
    %c0_80 = arith.constant 0 : index
    %c0_81 = arith.constant 0 : index
    %120 = vector.load %arg7[%c1_79, %c0_80, %c0_81] : memref<12x120x384xf32, #tpu.memory_space<vmem>>, vector<1x120x384xf32>
    %121 = vector.shape_cast %120 : vector<1x120x384xf32> to vector<120x384xf32>
    %cst_82 = arith.constant dense<0.000000e+00> : vector<1x384xf32>
    %122 = tpu.matmul %119, %121, %cst_82 {dimension_numbers = #tpu.dot_dimension_numbers<[1], [0], [0], [1], [0, 0, 1, 1], [], []>} : vector<1x120xf32>, vector<120x384xf32>, vector<1x384xf32> -> vector<1x384xf32>
    %123 = vector.extract_strided_slice %113 {offsets = [2, 0], sizes = [1, 120], strides = [1, 1]} : vector<12x120xf32> to vector<1x120xf32>
    %c2_83 = arith.constant 2 : index
    %c0_84 = arith.constant 0 : index
    %c0_85 = arith.constant 0 : index
    %124 = vector.load %arg7[%c2_83, %c0_84, %c0_85] : memref<12x120x384xf32, #tpu.memory_space<vmem>>, vector<1x120x384xf32>
    %125 = vector.shape_cast %124 : vector<1x120x384xf32> to vector<120x384xf32>
    %cst_86 = arith.constant dense<0.000000e+00> : vector<1x384xf32>
    %126 = tpu.matmul %123, %125, %cst_86 {dimension_numbers = #tpu.dot_dimension_numbers<[1], [0], [0], [1], [0, 0, 1, 1], [], []>} : vector<1x120xf32>, vector<120x384xf32>, vector<1x384xf32> -> vector<1x384xf32>
    %127 = vector.extract_strided_slice %113 {offsets = [3, 0], sizes = [1, 120], strides = [1, 1]} : vector<12x120xf32> to vector<1x120xf32>
    %c3_87 = arith.constant 3 : index
    %c0_88 = arith.constant 0 : index
    %c0_89 = arith.constant 0 : index
    %128 = vector.load %arg7[%c3_87, %c0_88, %c0_89] : memref<12x120x384xf32, #tpu.memory_space<vmem>>, vector<1x120x384xf32>
    %129 = vector.shape_cast %128 : vector<1x120x384xf32> to vector<120x384xf32>
    %cst_90 = arith.constant dense<0.000000e+00> : vector<1x384xf32>
    %130 = tpu.matmul %127, %129, %cst_90 {dimension_numbers = #tpu.dot_dimension_numbers<[1], [0], [0], [1], [0, 0, 1, 1], [], []>} : vector<1x120xf32>, vector<120x384xf32>, vector<1x384xf32> -> vector<1x384xf32>
    %131 = vector.extract_strided_slice %113 {offsets = [4, 0], sizes = [1, 120], strides = [1, 1]} : vector<12x120xf32> to vector<1x120xf32>
    %c4_91 = arith.constant 4 : index
    %c0_92 = arith.constant 0 : index
    %c0_93 = arith.constant 0 : index
    %132 = vector.load %arg7[%c4_91, %c0_92, %c0_93] : memref<12x120x384xf32, #tpu.memory_space<vmem>>, vector<1x120x384xf32>
    %133 = vector.shape_cast %132 : vector<1x120x384xf32> to vector<120x384xf32>
    %cst_94 = arith.constant dense<0.000000e+00> : vector<1x384xf32>
    %134 = tpu.matmul %131, %133, %cst_94 {dimension_numbers = #tpu.dot_dimension_numbers<[1], [0], [0], [1], [0, 0, 1, 1], [], []>} : vector<1x120xf32>, vector<120x384xf32>, vector<1x384xf32> -> vector<1x384xf32>
    %135 = vector.extract_strided_slice %113 {offsets = [5, 0], sizes = [1, 120], strides = [1, 1]} : vector<12x120xf32> to vector<1x120xf32>
    %c5_95 = arith.constant 5 : index
    %c0_96 = arith.constant 0 : index
    %c0_97 = arith.constant 0 : index
    %136 = vector.load %arg7[%c5_95, %c0_96, %c0_97] : memref<12x120x384xf32, #tpu.memory_space<vmem>>, vector<1x120x384xf32>
    %137 = vector.shape_cast %136 : vector<1x120x384xf32> to vector<120x384xf32>
    %cst_98 = arith.constant dense<0.000000e+00> : vector<1x384xf32>
    %138 = tpu.matmul %135, %137, %cst_98 {dimension_numbers = #tpu.dot_dimension_numbers<[1], [0], [0], [1], [0, 0, 1, 1], [], []>} : vector<1x120xf32>, vector<120x384xf32>, vector<1x384xf32> -> vector<1x384xf32>
    %139 = vector.extract_strided_slice %113 {offsets = [6, 0], sizes = [1, 120], strides = [1, 1]} : vector<12x120xf32> to vector<1x120xf32>
    %c6_99 = arith.constant 6 : index
    %c0_100 = arith.constant 0 : index
    %c0_101 = arith.constant 0 : index
    %140 = vector.load %arg7[%c6_99, %c0_100, %c0_101] : memref<12x120x384xf32, #tpu.memory_space<vmem>>, vector<1x120x384xf32>
    %141 = vector.shape_cast %140 : vector<1x120x384xf32> to vector<120x384xf32>
    %cst_102 = arith.constant dense<0.000000e+00> : vector<1x384xf32>
    %142 = tpu.matmul %139, %141, %cst_102 {dimension_numbers = #tpu.dot_dimension_numbers<[1], [0], [0], [1], [0, 0, 1, 1], [], []>} : vector<1x120xf32>, vector<120x384xf32>, vector<1x384xf32> -> vector<1x384xf32>
    %143 = vector.extract_strided_slice %113 {offsets = [7, 0], sizes = [1, 120], strides = [1, 1]} : vector<12x120xf32> to vector<1x120xf32>
    %c7_103 = arith.constant 7 : index
    %c0_104 = arith.constant 0 : index
    %c0_105 = arith.constant 0 : index
    %144 = vector.load %arg7[%c7_103, %c0_104, %c0_105] : memref<12x120x384xf32, #tpu.memory_space<vmem>>, vector<1x120x384xf32>
    %145 = vector.shape_cast %144 : vector<1x120x384xf32> to vector<120x384xf32>
    %cst_106 = arith.constant dense<0.000000e+00> : vector<1x384xf32>
    %146 = tpu.matmul %143, %145, %cst_106 {dimension_numbers = #tpu.dot_dimension_numbers<[1], [0], [0], [1], [0, 0, 1, 1], [], []>} : vector<1x120xf32>, vector<120x384xf32>, vector<1x384xf32> -> vector<1x384xf32>
    %147 = vector.extract_strided_slice %113 {offsets = [8, 0], sizes = [1, 120], strides = [1, 1]} : vector<12x120xf32> to vector<1x120xf32>
    %c8_107 = arith.constant 8 : index
    %c0_108 = arith.constant 0 : index
    %c0_109 = arith.constant 0 : index
    %148 = vector.load %arg7[%c8_107, %c0_108, %c0_109] : memref<12x120x384xf32, #tpu.memory_space<vmem>>, vector<1x120x384xf32>
    %149 = vector.shape_cast %148 : vector<1x120x384xf32> to vector<120x384xf32>
    %cst_110 = arith.constant dense<0.000000e+00> : vector<1x384xf32>
    %150 = tpu.matmul %147, %149, %cst_110 {dimension_numbers = #tpu.dot_dimension_numbers<[1], [0], [0], [1], [0, 0, 1, 1], [], []>} : vector<1x120xf32>, vector<120x384xf32>, vector<1x384xf32> -> vector<1x384xf32>
    %151 = vector.extract_strided_slice %113 {offsets = [9, 0], sizes = [1, 120], strides = [1, 1]} : vector<12x120xf32> to vector<1x120xf32>
    %c9 = arith.constant 9 : index
    %c0_111 = arith.constant 0 : index
    %c0_112 = arith.constant 0 : index
    %152 = vector.load %arg7[%c9, %c0_111, %c0_112] : memref<12x120x384xf32, #tpu.memory_space<vmem>>, vector<1x120x384xf32>
    %153 = vector.shape_cast %152 : vector<1x120x384xf32> to vector<120x384xf32>
    %cst_113 = arith.constant dense<0.000000e+00> : vector<1x384xf32>
    %154 = tpu.matmul %151, %153, %cst_113 {dimension_numbers = #tpu.dot_dimension_numbers<[1], [0], [0], [1], [0, 0, 1, 1], [], []>} : vector<1x120xf32>, vector<120x384xf32>, vector<1x384xf32> -> vector<1x384xf32>
    %155 = vector.extract_strided_slice %113 {offsets = [10, 0], sizes = [1, 120], strides = [1, 1]} : vector<12x120xf32> to vector<1x120xf32>
    %c10 = arith.constant 10 : index
    %c0_114 = arith.constant 0 : index
    %c0_115 = arith.constant 0 : index
    %156 = vector.load %arg7[%c10, %c0_114, %c0_115] : memref<12x120x384xf32, #tpu.memory_space<vmem>>, vector<1x120x384xf32>
    %157 = vector.shape_cast %156 : vector<1x120x384xf32> to vector<120x384xf32>
    %cst_116 = arith.constant dense<0.000000e+00> : vector<1x384xf32>
    %158 = tpu.matmul %155, %157, %cst_116 {dimension_numbers = #tpu.dot_dimension_numbers<[1], [0], [0], [1], [0, 0, 1, 1], [], []>} : vector<1x120xf32>, vector<120x384xf32>, vector<1x384xf32> -> vector<1x384xf32>
    %159 = vector.extract_strided_slice %113 {offsets = [11, 0], sizes = [1, 120], strides = [1, 1]} : vector<12x120xf32> to vector<1x120xf32>
    %c11 = arith.constant 11 : index
    %c0_117 = arith.constant 0 : index
    %c0_118 = arith.constant 0 : index
    %160 = vector.load %arg7[%c11, %c0_117, %c0_118] : memref<12x120x384xf32, #tpu.memory_space<vmem>>, vector<1x120x384xf32>
    %161 = vector.shape_cast %160 : vector<1x120x384xf32> to vector<120x384xf32>
    %cst_119 = arith.constant dense<0.000000e+00> : vector<1x384xf32>
    %162 = tpu.matmul %159, %161, %cst_119 {dimension_numbers = #tpu.dot_dimension_numbers<[1], [0], [0], [1], [0, 0, 1, 1], [], []>} : vector<1x120xf32>, vector<120x384xf32>, vector<1x384xf32> -> vector<1x384xf32>
    %163 = arith.addf %114, %118 : vector<1x384xf32>
    %164 = arith.addf %122, %126 : vector<1x384xf32>
    %165 = arith.addf %130, %134 : vector<1x384xf32>
    %166 = arith.addf %138, %142 : vector<1x384xf32>
    %167 = arith.addf %146, %150 : vector<1x384xf32>
    %168 = arith.addf %154, %158 : vector<1x384xf32>
    %169 = arith.addf %163, %164 : vector<1x384xf32>
    %170 = arith.addf %165, %166 : vector<1x384xf32>
    %171 = arith.addf %167, %168 : vector<1x384xf32>
    %172 = arith.addf %169, %170 : vector<1x384xf32>
    %173 = arith.addf %171, %162 : vector<1x384xf32>
    %174 = arith.addf %172, %173 : vector<1x384xf32>
    %cst_120 = arith.constant 0.000000e+00 : f32
    %175 = vector.broadcast %cst_120 : f32 to vector<1x384xf32>
    %176 = arith.maximumf %174, %175 : vector<1x384xf32>
    %c0_121 = arith.constant 0 : index
    %c0_122 = arith.constant 0 : index
    %177 = vector.load %arg9[%c0_121, %c0_122] : memref<384x128xf32, #tpu.memory_space<vmem>>, vector<384x128xf32>
    %cst_123 = arith.constant dense<0.000000e+00> : vector<1x128xf32>
    %178 = tpu.matmul %176, %177, %cst_123 {dimension_numbers = #tpu.dot_dimension_numbers<[1], [0], [0], [1], [0, 0, 1, 1], [], []>} : vector<1x384xf32>, vector<384x128xf32>, vector<1x128xf32> -> vector<1x128xf32>
    %c0_124 = arith.constant 0 : index
    %c0_125 = arith.constant 0 : index
    %179 = vector.load %arg10[%c0_124, %c0_125] : memref<1x128xf32, #tpu.memory_space<vmem>>, vector<1x128xf32>
    %180 = arith.addf %178, %179 : vector<1x128xf32>
    %c0_126 = arith.constant 0 : index
    %c0_127 = arith.constant 0 : index
    %c0_128 = arith.constant 0 : index
    %181 = vector.load %arg11[%c0_126, %c0_127, %c0_128] : memref<1x1x128xf32, #tpu.memory_space<vmem>>, vector<1x1x128xf32>
    %182 = vector.shape_cast %181 : vector<1x1x128xf32> to vector<1x128xf32>
    %183 = vector.shape_cast %180 : vector<1x128xf32> to vector<1x1x128xf32>
    tpu.vector_store %arg11[%c0_126, %c0_127, %c0_128], %183 {strides = array<i32>} : memref<1x1x128xf32, #tpu.memory_space<vmem>>, vector<1x1x128xf32>,
    return
  }
  func.func @transform_0(%arg0: i32) -> (i32, i32, i32) {
    %c0_i32 = arith.constant 0 : i32
    %c0_i32_0 = arith.constant 0 : i32
    %c0_i32_1 = arith.constant 0 : i32
    return %arg0, %c0_i32, %c0_i32_0 : i32, i32, i32
  }
  func.func @transform_1(%arg0: i32) -> (i32, i32) {
    %c0_i32 = arith.constant 0 : i32
    %c0_i32_0 = arith.constant 0 : i32
    %c0_i32_1 = arith.constant 0 : i32
    return %c0_i32, %c0_i32_0 : i32, i32
  }
  func.func @transform_2(%arg0: i32) -> (i32, i32) {
    %c0_i32 = arith.constant 0 : i32
    %c0_i32_0 = arith.constant 0 : i32
    %c0_i32_1 = arith.constant 0 : i32
    return %c0_i32, %c0_i32_0 : i32, i32
  }
  func.func @transform_3(%arg0: i32) -> (i32, i32, i32) {
    %c0_i32 = arith.constant 0 : i32
    %c0_i32_0 = arith.constant 0 : i32
    %c0_i32_1 = arith.constant 0 : i32
    %c0_i32_2 = arith.constant 0 : i32
    return %c0_i32, %c0_i32_0, %c0_i32_1 : i32, i32, i32
  }
  func.func @transform_4(%arg0: i32) -> (i32, i32, i32) {
    %c0_i32 = arith.constant 0 : i32
    %c0_i32_0 = arith.constant 0 : i32
    %c0_i32_1 = arith.constant 0 : i32
    %c0_i32_2 = arith.constant 0 : i32
    return %c0_i32, %c0_i32_0, %c0_i32_1 : i32, i32, i32
  }
  func.func @transform_5(%arg0: i32) -> (i32, i32, i32) {
    %c0_i32 = arith.constant 0 : i32
    %c0_i32_0 = arith.constant 0 : i32
    %c0_i32_1 = arith.constant 0 : i32
    %c0_i32_2 = arith.constant 0 : i32
    return %c0_i32, %c0_i32_0, %c0_i32_1 : i32, i32, i32
  }
  func.func @transform_6(%arg0: i32) -> (i32, i32, i32) {
    %c0_i32 = arith.constant 0 : i32
    %c0_i32_0 = arith.constant 0 : i32
    %c0_i32_1 = arith.constant 0 : i32
    %c0_i32_2 = arith.constant 0 : i32
    return %c0_i32, %c0_i32_0, %c0_i32_1 : i32, i32, i32
  }
  func.func @transform_7(%arg0: i32) -> (i32, i32) {
    %c0_i32 = arith.constant 0 : i32
    %c0_i32_0 = arith.constant 0 : i32
    %c0_i32_1 = arith.constant 0 : i32
    return %c0_i32, %c0_i32_0 : i32, i32
  }
  func.func @transform_8(%arg0: i32) -> (i32, i32) {
    %c0_i32 = arith.constant 0 : i32
    %c0_i32_0 = arith.constant 0 : i32
    %c0_i32_1 = arith.constant 0 : i32
    return %c0_i32, %c0_i32_0 : i32, i32
  }
  func.func @transform_9(%arg0: i32) -> (i32, i32) {
    %c0_i32 = arith.constant 0 : i32
    %c0_i32_0 = arith.constant 0 : i32
    %c0_i32_1 = arith.constant 0 : i32
    return %c0_i32, %c0_i32_0 : i32, i32
  }
  func.func @transform_10(%arg0: i32) -> (i32, i32, i32) {
    %c0_i32 = arith.constant 0 : i32
    %c0_i32_0 = arith.constant 0 : i32
    %c0_i32_1 = arith.constant 0 : i32
    return %arg0, %c0_i32, %c0_i32_0 : i32, i32, i32
  }
}

</mosaic_0001>

<llo_original>
// kernel: abcnn_forward.1
$region0: #{abcnn_forward.1}
  #allocation0 [shape = 'u32[]', space=smem, size = 0x4, offset = 0x4, fixed_abs, tag = 'smem constant byte address 0x4 - core index']
  #allocation1 [shape = 'u32[144,128]{1,0:T(1,128)}', space=vmem, size = 0x12000, scoped, tag = 'internal scratch']
  %s0 = inlined_call_operand.vmem [shape: f32[2,1,96], index: 0, kind: input, shape index: {}]
  %s1 = inlined_call_operand.hbm [shape: f32[96,122], index: 1, kind: input, shape index: {}]
  %s2 = inlined_call_operand.vmem [shape: f32[12,4], index: 2, kind: input, shape index: {}]
  %s3 = inlined_call_operand.hbm [shape: f32[9,12,12], index: 3, kind: input, shape index: {}]
  %s4 = inlined_call_operand.vmem [shape: f32[3,12,1], index: 4, kind: input, shape index: {}]
  %s5 = inlined_call_operand.hbm [shape: f32[5,120,122], index: 5, kind: input, shape index: {}]
  %s6 = inlined_call_operand.hbm [shape: f32[12,120,384], index: 6, kind: input, shape index: {}]
  %s7 = inlined_call_operand.hbm [shape: f32[1,384], index: 7, kind: input, shape index: {}]
  %s8 = inlined_call_operand.hbm [shape: f32[384,128], index: 8, kind: input, shape index: {}]
  %s9 = inlined_call_operand.hbm [shape: f32[1,128], index: 9, kind: input, shape index: {}]
  %s10 = inlined_call_operand.vmem [shape: f32[2,1,128], index: 10, kind: output, shape index: {}]
  %s11 = sld [smem:[#allocation0]]
  $region101: #{abcnn_forward.1} parent=0
    _
  %s13 = ssub.s32 1, %s11
  %s14 = scalar_select 0, %s13, %s11
  $region1: #{abcnn_forward.1} parent=0
    #allocation2 [shape = 'u8[49152]{0}', space=vmem, size = 0xc000, scoped, tag = 'input window, operand 1, single buffered']
    #allocation3 [shape = 's32[2]{0}', space=sflag, size = 0x8, scoped, tag = 'scoped memory for abcnn_forward.1']
    #allocation4 [shape = 'u8[73728]{0}', space=vmem, size = 0x12000, scoped, tag = 'input window, operand 3, single buffered']
    #allocation5 [shape = 's32[1]{0}', space=sflag, size = 0x4, scoped, tag = 'scoped memory for abcnn_forward.1']
    #allocation6 [shape = 'u8[307200]{0}', space=vmem, size = 0x4b000, scoped, tag = 'input window, operand 5, single buffered']
    #allocation7 [shape = 'u8[2211840]{0}', space=vmem, size = 0x21c000, scoped, tag = 'input window, operand 6, single buffered']
    #allocation8 [shape = 's32[1]{0}', space=sflag, size = 0x4, scoped, tag = 'scoped memory for abcnn_forward.1']
    #allocation9 [shape = 'u8[1536]{0}', space=vmem, size = 0x800, scoped, tag = 'input window, operand 7, single buffered']
    #allocation10 [shape = 'u8[196608]{0}', space=vmem, size = 0x30000, scoped, tag = 'input window, operand 8, single buffered']
    #allocation11 [shape = 's32[1]{0}', space=sflag, size = 0x4, scoped, tag = 'scoped memory for abcnn_forward.1']
    #allocation12 [shape = 'u8[512]{0}', space=vmem, size = 0x400, scoped, tag = 'input window, operand 9, single buffered']
    %15 = vsyncpa [#allocation3], 0
    %16 = vsyncpa [#allocation5], 0
    %17 = vsyncpa [#allocation8], 0
    %18 = vsyncpa [#allocation11], 0
    loop: start=0, step=1, limit=4
    $region2: #{abcnn_forward.1} parent=1 // loop_pre_header
      _
    $region3: #{abcnn_forward.1} parent=1 // loop_header
      %s20 = sphi 0, %s24
      %p21 = scmp.ge.s32.totalorder %s20, 4
      %s30 = sphi 0, %s32
      %s33 = sphi 0, %s30
      %s34 = sphi 0, %s33
      %s50 = sphi 0, %s34
      %s54 = sphi 0, %s54
      %s56 = sphi 0, %s54
      %s57 = sphi 0, %s56
      %s71 = sphi 0, %s57
      %s75 = sphi 0, %s75
      %s77 = sphi 0, %s75
      %s78 = sphi 0, %s77
      %s92 = sphi 0, %s78
      %s96 = sphi 0, %s96
      %s98 = sphi 0, %s96
      %s99 = sphi 0, %s98
      %s113 = sphi 0, %s99
      %s117 = sphi 0, %s117
      %s119 = sphi 0, %s117
      %s120 = sphi 0, %s119
      %s134 = sphi 0, %s120
      %s138 = sphi 0, %s138
      %s140 = sphi 0, %s138
      %s141 = sphi 0, %s140
      %s155 = sphi 0, %s141
      %s159 = sphi 0, %s159
      %s161 = sphi 0, %s159
      %s162 = sphi 0, %s161
      %s176 = sphi 0, %s162
      %s180 = sphi 0, %s180
      %s182 = sphi 0, %s180
      %s183 = sphi 0, %s182
      %s197 = sphi 0, %s183
      %s201 = sphi 0, %s201
      %s203 = sphi 0, %s201
      %s204 = sphi 0, %s203
      %s218 = sphi 0, %s204
      %s222 = sphi 0, %s222
      %s224 = sphi 0, %s222
      %s225 = sphi 0, %s224
      %s239 = sphi 0, %s225
      %s245 = sphi 0, %s247
      %s248 = sphi 0, %s245
      %s249 = sphi 0, %s248
      %s265 = sphi 0, %s249
    $region4: #{abcnn_forward.1} parent=1 // loop_header_branch
      %23 = sbr.rel (%p21) target = $region8
    $region5: #{abcnn_forward.1} parent=1 // loop_body
      %s25 = ssub.s32 %s20, 1
      %s26 = ssub.s32 %s20, 2
      %s27 = sadd.s32 %s20, 1
      %s28 = ssub.s32 %s20, %s27
      %p29 = scmp.eq.s32.totalorder %s28, 0
      %s31 = sadd.s32 %s30, 1
      %s32 = scalar_select %p29, %s30, %s31
      %p35 = pneg %p29
      %p36 = scmp.eq.s32.totalorder %s20, 1
      %p37 = por %p35, %p36
      %p38 = scmp.ne.s32.totalorder %s30, %s33
      %p39 = scmp.eq.s32.totalorder %s20, 0
      %p40 = por %p38, %p39
      %p41 = scmp.ne.s32.totalorder %s30, %s33
      %p42 = scmp.eq.s32.totalorder %s25, 1
      %p43 = por %p41, %p42
      %p44 = scmp.ne.s32.totalorder %s33, %s34
      %p45 = scmp.eq.s32.totalorder %s25, 0
      %p46 = por %p44, %p45
      %p47 = scmp.ne.s32.totalorder %s33, %s34
      %p48 = scmp.eq.s32.totalorder %s26, 1
      %p49 = por %p47, %p48
      %p51 = scmp.ne.s32.totalorder %s34, %s50
      %p52 = scmp.eq.s32.totalorder %s26, 0
      %p53 = por %p51, %p52
      %s55 = sadd.s32 %s54, 1
      %p58 = scmp.eq.s32.totalorder %s20, 1
      %p59 = scmp.ne.s32.totalorder %s54, %s56
      %p60 = scmp.eq.s32.totalorder %s20, 0
      %p61 = por %p59, %p60
      %p62 = scmp.ne.s32.totalorder %s54, %s56
      %p63 = scmp.eq.s32.totalorder %s25, 1
      %p64 = por %p62, %p63
      %p65 = scmp.ne.s32.totalorder %s56, %s57
      %p66 = scmp.eq.s32.totalorder %s25, 0
      %p67 = por %p65, %p66
      %p68 = scmp.ne.s32.totalorder %s56, %s57
      %p69 = scmp.eq.s32.totalorder %s26, 1
      %p70 = por %p68, %p69
      %p72 = scmp.ne.s32.totalorder %s57, %s71
      %p73 = scmp.eq.s32.totalorder %s26, 0
      %p74 = por %p72, %p73
      %s76 = sadd.s32 %s75, 1
      %p79 = scmp.eq.s32.totalorder %s20, 1
      %p80 = scmp.ne.s32.totalorder %s75, %s77
      %p81 = scmp.eq.s32.totalorder %s20, 0
      %p82 = por %p80, %p81
      %p83 = scmp.ne.s32.totalorder %s75, %s77
      %p84 = scmp.eq.s32.totalorder %s25, 1
      %p85 = por %p83, %p84
      %p86 = scmp.ne.s32.totalorder %s77, %s78
      %p87 = scmp.eq.s32.totalorder %s25, 0
      %p88 = por %p86, %p87
      %p89 = scmp.ne.s32.totalorder %s77, %s78
      %p90 = scmp.eq.s32.totalorder %s26, 1
      %p91 = por %p89, %p90
      %p93 = scmp.ne.s32.totalorder %s78, %s92
      %p94 = scmp.eq.s32.totalorder %s26, 0
      %p95 = por %p93, %p94
      %s97 = sadd.s32 %s96, 1
      %p100 = scmp.eq.s32.totalorder %s20, 1
      %p101 = scmp.ne.s32.totalorder %s96, %s98
      %p102 = scmp.eq.s32.totalorder %s20, 0
      %p103 = por %p101, %p102
      %p104 = scmp.ne.s32.totalorder %s96, %s98
      %p105 = scmp.eq.s32.totalorder %s25, 1
      %p106 = por %p104, %p105
      %p107 = scmp.ne.s32.totalorder %s98, %s99
      %p108 = scmp.eq.s32.totalorder %s25, 0
      %p109 = por %p107, %p108
      %p110 = scmp.ne.s32.totalorder %s98, %s99
      %p111 = scmp.eq.s32.totalorder %s26, 1
      %p112 = por %p110, %p111
      %p114 = scmp.ne.s32.totalorder %s99, %s113
      %p115 = scmp.eq.s32.totalorder %s26, 0
      %p116 = por %p114, %p115
      %s118 = sadd.s32 %s117, 1
      %p121 = scmp.eq.s32.totalorder %s20, 1
      %p122 = scmp.ne.s32.totalorder %s117, %s119
      %p123 = scmp.eq.s32.totalorder %s20, 0
      %p124 = por %p122, %p123
      %p125 = scmp.ne.s32.totalorder %s117, %s119
      %p126 = scmp.eq.s32.totalorder %s25, 1
      %p127 = por %p125, %p126
      %p128 = scmp.ne.s32.totalorder %s119, %s120
      %p129 = scmp.eq.s32.totalorder %s25, 0
      %p130 = por %p128, %p129
      %p131 = scmp.ne.s32.totalorder %s119, %s120
      %p132 = scmp.eq.s32.totalorder %s26, 1
      %p133 = por %p131, %p132
      %p135 = scmp.ne.s32.totalorder %s120, %s134
      %p136 = scmp.eq.s32.totalorder %s26, 0
      %p137 = por %p135, %p136
      %s139 = sadd.s32 %s138, 1
      %p142 = scmp.eq.s32.totalorder %s20, 1
      %p143 = scmp.ne.s32.totalorder %s138, %s140
      %p144 = scmp.eq.s32.totalorder %s20, 0
      %p145 = por %p143, %p144
      %p146 = scmp.ne.s32.totalorder %s138, %s140
      %p147 = scmp.eq.s32.totalorder %s25, 1
      %p148 = por %p146, %p147
      %p149 = scmp.ne.s32.totalorder %s140, %s141
      %p150 = scmp.eq.s32.totalorder %s25, 0
      %p151 = por %p149, %p150
      %p152 = scmp.ne.s32.totalorder %s140, %s141
      %p153 = scmp.eq.s32.totalorder %s26, 1
      %p154 = por %p152, %p153
      %p156 = scmp.ne.s32.totalorder %s141, %s155
      %p157 = scmp.eq.s32.totalorder %s26, 0
      %p158 = por %p156, %p157
      %s160 = sadd.s32 %s159, 1
      %p163 = scmp.eq.s32.totalorder %s20, 1
      %p164 = scmp.ne.s32.totalorder %s159, %s161
      %p165 = scmp.eq.s32.totalorder %s20, 0
      %p166 = por %p164, %p165
      %p167 = scmp.ne.s32.totalorder %s159, %s161
      %p168 = scmp.eq.s32.totalorder %s25, 1
      %p169 = por %p167, %p168
      %p170 = scmp.ne.s32.totalorder %s161, %s162
      %p171 = scmp.eq.s32.totalorder %s25, 0
      %p172 = por %p170, %p171
      %p173 = scmp.ne.s32.totalorder %s161, %s162
      %p174 = scmp.eq.s32.totalorder %s26, 1
      %p175 = por %p173, %p174
      %p177 = scmp.ne.s32.totalorder %s162, %s176
      %p178 = scmp.eq.s32.totalorder %s26, 0
      %p179 = por %p177, %p178
      %s181 = sadd.s32 %s180, 1
      %p184 = scmp.eq.s32.totalorder %s20, 1
      %p185 = scmp.ne.s32.totalorder %s180, %s182
      %p186 = scmp.eq.s32.totalorder %s20, 0
      %p187 = por %p185, %p186
      %p188 = scmp.ne.s32.totalorder %s180, %s182
      %p189 = scmp.eq.s32.totalorder %s25, 1
      %p190 = por %p188, %p189
      %p191 = scmp.ne.s32.totalorder %s182, %s183
      %p192 = scmp.eq.s32.totalorder %s25, 0
      %p193 = por %p191, %p192
      %p194 = scmp.ne.s32.totalorder %s182, %s183
      %p195 = scmp.eq.s32.totalorder %s26, 1
      %p196 = por %p194, %p195
      %p198 = scmp.ne.s32.totalorder %s183, %s197
      %p199 = scmp.eq.s32.totalorder %s26, 0
      %p200 = por %p198, %p199
      %s202 = sadd.s32 %s201, 1
      %p205 = scmp.eq.s32.totalorder %s20, 1
      %p206 = scmp.ne.s32.totalorder %s201, %s203
      %p207 = scmp.eq.s32.totalorder %s20, 0
      %p208 = por %p206, %p207
      %p209 = scmp.ne.s32.totalorder %s201, %s203
      %p210 = scmp.eq.s32.totalorder %s25, 1
      %p211 = por %p209, %p210
      %p212 = scmp.ne.s32.totalorder %s203, %s204
      %p213 = scmp.eq.s32.totalorder %s25, 0
      %p214 = por %p212, %p213
      %p215 = scmp.ne.s32.totalorder %s203, %s204
      %p216 = scmp.eq.s32.totalorder %s26, 1
      %p217 = por %p215, %p216
      %p219 = scmp.ne.s32.totalorder %s204, %s218
      %p220 = scmp.eq.s32.totalorder %s26, 0
      %p221 = por %p219, %p220
      %s223 = sadd.s32 %s222, 1
      %p226 = scmp.eq.s32.totalorder %s20, 1
      %p227 = scmp.ne.s32.totalorder %s222, %s224
      %p228 = scmp.eq.s32.totalorder %s20, 0
      %p229 = por %p227, %p228
      %p230 = scmp.ne.s32.totalorder %s222, %s224
      %p231 = scmp.eq.s32.totalorder %s25, 1
      %p232 = por %p230, %p231
      %p233 = scmp.ne.s32.totalorder %s224, %s225
      %p234 = scmp.eq.s32.totalorder %s25, 0
      %p235 = por %p233, %p234
      %p236 = scmp.ne.s32.totalorder %s224, %s225
      %p237 = scmp.eq.s32.totalorder %s26, 1
      %p238 = por %p236, %p237
      %p240 = scmp.ne.s32.totalorder %s225, %s239
      %p241 = scmp.eq.s32.totalorder %s26, 0
      %p242 = por %p240, %p241
      %s243 = ssub.s32 %s20, %s27
      %p244 = scmp.eq.s32.totalorder %s243, 0
      %s246 = sadd.s32 %s245, 1
      %s247 = scalar_select %p244, %s245, %s246
      %p250 = pneg %p244
      %p251 = scmp.eq.s32.totalorder %s20, 1
      %p252 = por %p250, %p251
      %p253 = scmp.ne.s32.totalorder %s245, %s248
      %p254 = scmp.eq.s32.totalorder %s20, 0
      %p255 = por %p253, %p254
      %p256 = scmp.ne.s32.totalorder %s245, %s248
      %p257 = scmp.eq.s32.totalorder %s25, 1
      %p258 = por %p256, %p257
      %p259 = scmp.ne.s32.totalorder %s248, %s249
      %p260 = scmp.eq.s32.totalorder %s25, 0
      %p261 = por %p259, %p260
      %p262 = scmp.ne.s32.totalorder %s248, %s249
      %p263 = scmp.eq.s32.totalorder %s26, 1
      %p264 = por %p262, %p263
      %p266 = scmp.ne.s32.totalorder %s249, %s265
      %p267 = scmp.eq.s32.totalorder %s26, 0
      %p268 = por %p266, %p267
      %p269 = scmp.le.s32.totalorder 1, %s20
      %p270 = scmp.lt.s32.totalorder %s20, 3
      %p271 = pnand %p269, %p270
      %p272 = pneg %p271
      // Predicated region
      $region9: #{abcnn_forward.1} parent=5 // pred_check
        _
      $region10: #{abcnn_forward.1} parent=5 // pred_check_branch
        %274 = sbr.rel (%p271) target = $region12
      $region11: #{abcnn_forward.1} parent=5 // pred_region
        %s275 = ssub.s32 %s20, 1
        // Predicated region
        $region13: #{abcnn_forward.1} parent=11 // pred_check
          %p276 = pneg %p67
        $region14: #{abcnn_forward.1} parent=11 // pred_check_branch
          %278 = sbr.rel (%p276) target = $region16
        $region15: #{abcnn_forward.1} parent=11 // pred_region
          %s280 = ssub.s32 1536, 1536
          %281 = vsyncadd [#allocation3], %s280
          %s282 = sshll.u32 [#allocation2], 4
          %s283 = int_to_ptr.vmem [resolvable:$true] %s282
          %288 = dma.hbm_to_vmem [thread:$0]  %s1, 1536, %s283, [#allocation3], 128, 128, 8
        $region16: #{abcnn_forward.1} parent=11 // pred_fallthru
          _
        // Predicated region
        $region17: #{abcnn_forward.1} parent=11 // pred_check
          %p289 = pneg %p88
        $region18: #{abcnn_forward.1} parent=11 // pred_check_branch
          %291 = sbr.rel (%p289) target = $region20
        $region19: #{abcnn_forward.1} parent=11 // pred_region
          _
        $region20: #{abcnn_forward.1} parent=11 // pred_fallthru
          _
        // Predicated region
        $region21: #{abcnn_forward.1} parent=11 // pred_check
          %p292 = pneg %p109
        $region22: #{abcnn_forward.1} parent=11 // pred_check_branch
          %294 = sbr.rel (%p292) target = $region24
        $region23: #{abcnn_forward.1} parent=11 // pred_region
          %s296 = ssub.s32 2304, 2304
          %297 = vsyncadd [#allocation5], %s296
          %s298 = sshll.u32 [#allocation4], 4
          %s299 = int_to_ptr.vmem [resolvable:$true] %s298
          %304 = dma.hbm_to_vmem [thread:$0]  %s3, 2304, %s299, [#allocation5], 128, 128, 8
        $region24: #{abcnn_forward.1} parent=11 // pred_fallthru
          _
        // Predicated region
        $region25: #{abcnn_forward.1} parent=11 // pred_check
          %p305 = pneg %p130
        $region26: #{abcnn_forward.1} parent=11 // pred_check_branch
          %307 = sbr.rel (%p305) target = $region28
        $region27: #{abcnn_forward.1} parent=11 // pred_region
          _
        $region28: #{abcnn_forward.1} parent=11 // pred_fallthru
          _
        // Predicated region
        $region29: #{abcnn_forward.1} parent=11 // pred_check
          %p308 = pneg %p151
        $region30: #{abcnn_forward.1} parent=11 // pred_check_branch
          %310 = sbr.rel (%p308) target = $region32
        $region31: #{abcnn_forward.1} parent=11 // pred_region
          %s312 = ssub.s32 9600, 9600
          %313 = vsyncadd [#allocation5], %s312
          %s314 = sshll.u32 [#allocation6], 4
          %s315 = int_to_ptr.vmem [resolvable:$true] %s314
          %320 = dma.hbm_to_vmem [thread:$0]  %s5, 9600, %s315, [#allocation5], 128, 128, 8
        $region32: #{abcnn_forward.1} parent=11 // pred_fallthru
          _
        // Predicated region
        $region33: #{abcnn_forward.1} parent=11 // pred_check
          %p321 = pneg %p172
        $region34: #{abcnn_forward.1} parent=11 // pred_check_branch
          %323 = sbr.rel (%p321) target = $region36
        $region35: #{abcnn_forward.1} parent=11 // pred_region
          %s325 = ssub.s32 69120, 69120
          %326 = vsyncadd [#allocation8], %s325
          %s327 = sshll.u32 [#allocation7], 4
          %s328 = int_to_ptr.vmem [resolvable:$true] %s327
          %333 = dma.hbm_to_vmem [thread:$0]  %s6, 69120, %s328, [#allocation8], 384, 384, 24
        $region36: #{abcnn_forward.1} parent=11 // pred_fallthru
          _
        // Predicated region
        $region37: #{abcnn_forward.1} parent=11 // pred_check
          %p334 = pneg %p193
        $region38: #{abcnn_forward.1} parent=11 // pred_check_branch
          %336 = sbr.rel (%p334) target = $region40
        $region39: #{abcnn_forward.1} parent=11 // pred_region
          %s338 = ssub.s32 48, 48
          %339 = vsyncadd [#allocation8], %s338
          %s341 = sshll.u32 [#allocation9], 4
          %s342 = int_to_ptr.vmem [resolvable:$true] %s341
          %344 = dma.hbm_to_vmem [thread:$0]  %s7, 48, %s342, [#allocation8]
        $region40: #{abcnn_forward.1} parent=11 // pred_fallthru
          _
        // Predicated region
        $region41: #{abcnn_forward.1} parent=11 // pred_check
          %p345 = pneg %p214
        $region42: #{abcnn_forward.1} parent=11 // pred_check_branch
          %347 = sbr.rel (%p345) target = $region44
        $region43: #{abcnn_forward.1} parent=11 // pred_region
          %s349 = ssub.s32 6144, 6144
          %350 = vsyncadd [#allocation11], %s349
          %s351 = sshll.u32 [#allocation10], 4
          %s352 = int_to_ptr.vmem [resolvable:$true] %s351
          %357 = dma.hbm_to_vmem [thread:$0]  %s8, 6144, %s352, [#allocation11], 128, 128, 8
        $region44: #{abcnn_forward.1} parent=11 // pred_fallthru
          _
        // Predicated region
        $region45: #{abcnn_forward.1} parent=11 // pred_check
          %p358 = pneg %p235
        $region46: #{abcnn_forward.1} parent=11 // pred_check_branch
          %360 = sbr.rel (%p358) target = $region48
        $region47: #{abcnn_forward.1} parent=11 // pred_region
          %s362 = ssub.s32 16, 16
          %363 = vsyncadd [#allocation11], %s362
          %s365 = sshll.u32 [#allocation12], 4
          %s366 = int_to_ptr.vmem [resolvable:$true] %s365
          %368 = dma.hbm_to_vmem [thread:$0]  %s9, 16, %s366, [#allocation11]
        $region48: #{abcnn_forward.1} parent=11 // pred_fallthru
          _
      $region12: #{abcnn_forward.1} parent=5 // pred_fallthru
        _
      %p369 = scmp.lt.s32.totalorder %s20, 2
      // Predicated region
      $region49: #{abcnn_forward.1} parent=5 // pred_check
        %p370 = pneg %p369
      $region50: #{abcnn_forward.1} parent=5 // pred_check_branch
        %372 = sbr.rel (%p370) target = $region52
      $region51: #{abcnn_forward.1} parent=5 // pred_region
        // Predicated region
        $region53: #{abcnn_forward.1} parent=51 // pred_check
          %p373 = pneg %p40
        $region54: #{abcnn_forward.1} parent=51 // pred_check_branch
          %375 = sbr.rel (%p373) target = $region56
        $region55: #{abcnn_forward.1} parent=51 // pred_region
          %p376 = scmp.lt.s32.totalorder %s20, 1
          %s377 = scalar_select %p376, %s20, 1
          %s378 = scalar_lea.vmem %s0, %s377
        $region56: #{abcnn_forward.1} parent=51 // pred_fallthru
          _
      $region52: #{abcnn_forward.1} parent=5 // pred_fallthru
        _
      %p379 = scmp.le.s32.totalorder 1, %s20
      %p380 = scmp.lt.s32.totalorder %s20, 3
      %p381 = pnand %p379, %p380
      %p382 = pneg %p381
      // Predicated region
      $region57: #{abcnn_forward.1} parent=5 // pred_check
        _
      $region58: #{abcnn_forward.1} parent=5 // pred_check_branch
        %384 = sbr.rel (%p381) target = $region60
      $region59: #{abcnn_forward.1} parent=5 // pred_region
        %s385 = ssub.s32 %s20, 1
        // Predicated region
        $region61: #{abcnn_forward.1} parent=59 // pred_check
          %p386 = pneg %p67
        $region62: #{abcnn_forward.1} parent=59 // pred_check_branch
          %388 = sbr.rel (%p386) target = $region64
        $region63: #{abcnn_forward.1} parent=59 // pred_region
          %389 = dma.done [#allocation3], 1536
        $region64: #{abcnn_forward.1} parent=59 // pred_fallthru
          _
        // Predicated region
        $region65: #{abcnn_forward.1} parent=59 // pred_check
          %p390 = pneg %p109
        $region66: #{abcnn_forward.1} parent=59 // pred_check_branch
          %392 = sbr.rel (%p390) target = $region68
        $region67: #{abcnn_forward.1} parent=59 // pred_region
          %393 = dma.done [#allocation5], 2304
        $region68: #{abcnn_forward.1} parent=59 // pred_fallthru
          _
        // Predicated region
        $region69: #{abcnn_forward.1} parent=59 // pred_check
          %p394 = pneg %p151
        $region70: #{abcnn_forward.1} parent=59 // pred_check_branch
          %396 = sbr.rel (%p394) target = $region72
        $region71: #{abcnn_forward.1} parent=59 // pred_region
          %397 = dma.done [#allocation5], 9600
        $region72: #{abcnn_forward.1} parent=59 // pred_fallthru
          _
        // Predicated region
        $region73: #{abcnn_forward.1} parent=59 // pred_check
          %p398 = pneg %p172
        $region74: #{abcnn_forward.1} parent=59 // pred_check_branch
          %400 = sbr.rel (%p398) target = $region76
        $region75: #{abcnn_forward.1} parent=59 // pred_region
          %401 = dma.done [#allocation8], 69120
        $region76: #{abcnn_forward.1} parent=59 // pred_fallthru
          _
        // Predicated region
        $region77: #{abcnn_forward.1} parent=59 // pred_check
          %p402 = pneg %p193
        $region78: #{abcnn_forward.1} parent=59 // pred_check_branch
          %404 = sbr.rel (%p402) target = $region80
        $region79: #{abcnn_forward.1} parent=59 // pred_region
          %405 = dma.done [#allocation8], 48
        $region80: #{abcnn_forward.1} parent=59 // pred_fallthru
          _
        // Predicated region
        $region81: #{abcnn_forward.1} parent=59 // pred_check
          %p406 = pneg %p214
        $region82: #{abcnn_forward.1} parent=59 // pred_check_branch
          %408 = sbr.rel (%p406) target = $region84
        $region83: #{abcnn_forward.1} parent=59 // pred_region
          %409 = dma.done [#allocation11], 6144
        $region84: #{abcnn_forward.1} parent=59 // pred_fallthru
          _
        // Predicated region
        $region85: #{abcnn_forward.1} parent=59 // pred_check
          %p410 = pneg %p235
        $region86: #{abcnn_forward.1} parent=59 // pred_check_branch
          %412 = sbr.rel (%p410) target = $region88
        $region87: #{abcnn_forward.1} parent=59 // pred_region
          %413 = dma.done [#allocation11], 16
        $region88: #{abcnn_forward.1} parent=59 // pred_fallthru
          _
        %p414 = scmp.lt.s32.totalorder %s25, 1
        %s415 = scalar_select %p414, %s25, 1
        %s416 = scalar_lea.vmem %s0, %s415
        %p417 = pneg %p46
        %p418 = pneg %p43
        %p419 = pneg %p67
        %p420 = pneg %p64
        %p421 = pneg %p88
        %p422 = pneg %p85
        %p423 = pneg %p109
        %p424 = pneg %p106
        %p425 = pneg %p130
        %p426 = pneg %p127
        %p427 = pneg %p151
        %p428 = pneg %p148
        %p429 = pneg %p172
        %p430 = pneg %p169
        %p431 = pneg %p193
        %p432 = pneg %p190
        %p433 = pneg %p214
        %p434 = pneg %p211
        %p435 = pneg %p235
        %p436 = pneg %p232
        %p437 = pneg %p261
        %p438 = pneg %p258
        %p439 = scmp.lt.s32.totalorder %s25, 1
        %s440 = scalar_select %p439, %s25, 1
        %s441 = scalar_lea.vmem %s10, %s440
        %p442 = scmp.lt.s32.totalorder %s25, 1
        %s443 = scalar_select %p442, %s25, 1
        %s444 = scalar_lea.vmem %s0, %s443
        %p445 = scmp.lt.s32.totalorder %s25, 1
        %s446 = scalar_select %p445, %s25, 1
        %s447 = scalar_lea.vmem %s10, %s446
        %v448 = vld [vmem:[%s444] sm:$0x1]
        %v449 = vld [vmem:[#allocation2] sm:$0xff]
        %v450 = vld [vmem:[#allocation2 + $0x8] sm:$0xff]
        %v451 = vld [vmem:[#allocation2 + $0x10] sm:$0xff]
        %v452 = vld [vmem:[#allocation2 + $0x18] sm:$0xff]
        %v453 = vld [vmem:[#allocation2 + $0x20] sm:$0xff]
        %v454 = vld [vmem:[#allocation2 + $0x28] sm:$0xff]
        %v455 = vld [vmem:[#allocation2 + $0x30] sm:$0xff]
        %v456 = vld [vmem:[#allocation2 + $0x38] sm:$0xff]
        %v457 = vld [vmem:[#allocation2 + $0x40] sm:$0xff]
        %v458 = vld [vmem:[#allocation2 + $0x48] sm:$0xff]
        %v459 = vld [vmem:[#allocation2 + $0x50] sm:$0xff]
        %v460 = vld [vmem:[#allocation2 + $0x58] sm:$0xff]
        %vm461 = vcmask 785408
        %v463 = vsel %vm461, %v448, 0
        %465 = vmatprep.subr.mxu0 0.0
        %466 = vmatpush1.msra.mxu0 %v449
        %467 = vmatprep.subr.mxu0 0.0
        %468 = vmatpush1.msra.mxu0 %v450
        %469 = vmatprep.subr.mxu0 0.0
        %470 = vmatpush1.msra.mxu0 %v451
        %471 = vmatprep.subr.mxu0 0.0
        %472 = vmatpush1.msra.mxu0 %v452
        %473 = vmatprep.subr.mxu0 0.0
        %474 = vmatpush1.msra.mxu0 %v453
        %475 = vmatprep.subr.mxu0 0.0
        %476 = vmatpush1.msra.mxu0 %v454
        %477 = vmatprep.subr.mxu0 0.0
        %478 = vmatpush1.msra.mxu0 %v455
        %479 = vmatprep.subr.mxu0 0.0
        %480 = vmatpush1.msra.mxu0 %v456
        %481 = vmatprep.subr.mxu0 0.0
        %482 = vmatpush1.msra.mxu0 %v457
        %483 = vmatprep.subr.mxu0 0.0
        %484 = vmatpush1.msra.mxu0 %v458
        %485 = vmatprep.subr.mxu0 0.0
        %486 = vmatpush1.msra.mxu0 %v459
        %487 = vmatprep.subr.mxu0 0.0
        %488 = vmatpush1.msra.mxu0 %v460
        %489 = vmatprep.subr.mxu0 0.0
        %490 = vmatpush1.msra.mxu0 0.0
        %491 = vmatprep.subr.mxu0 0.0
        %492 = vmatpush1.msra.mxu0 0.0
        %493 = vmatprep.subr.mxu0 0.0
        %494 = vmatpush1.msra.mxu0 0.0
        %495 = vmatprep.subr.mxu0 0.0
        %496 = vmatpush1.msra.mxu0 0.0
        %497 = vmatprep.subr.mxu0 0.0
        %498 = vmatpush1.msra.mxu0 0.0
        %499 = vmatprep.subr.mxu0 0.0
        %500 = vmatpush1.msra.mxu0 0.0
        %501 = vmatprep.subr.mxu0 0.0
        %502 = vmatpush1.msra.mxu0 0.0
        %503 = vmatprep.subr.mxu0 0.0
        %504 = vmatpush1.msra.mxu0 0.0
        %505 = vmatprep.subr.mxu0 0.0
        %506 = vmatpush1.msra.mxu0 0.0
        %507 = vmatprep.subr.mxu0 0.0
        %508 = vmatpush1.msra.mxu0 0.0
        %509 = vmatprep.subr.mxu0 0.0
        %510 = vmatpush1.msra.mxu0 0.0
        %511 = vmatprep.subr.mxu0 0.0
        %512 = vmatpush1.msra.mxu0 0.0
        %513 = vmatprep.subr.mxu0 0.0
        %514 = vmatpush1.msra.mxu0 0.0
        %515 = vmatprep.subr.mxu0 0.0
        %516 = vmatpush1.msra.mxu0 0.0
        %517 = vmatprep.subr.mxu0 0.0
        %518 = vmatpush1.msra.mxu0 0.0
        %519 = vmatprep.subr.mxu0 0.0
        %520 = vmatpush1.msra.mxu0 0.0
        %521 = vmatprep.subr.mxu0 0.0
        %522 = vmatpush1.msra.mxu0 0.0
        %523 = vmatprep.subr.mxu0 0.0
        %524 = vmatpush1.msra.mxu0 0.0
        %525 = vmatprep.subr.mxu0 0.0
        %526 = vmatpush1.msra.mxu0 0.0
        %527 = vmatprep.subr.mxu0 0.0
        %528 = vmatpush1.msra.mxu0 0.0
        %529 = vmatprep.mubr.f32.mxu0 0.0
        %530 = vmatmul.mubr.f32.gmra.mrb[0].mxu0 %v463
        %v531 = vpop.f32.mrb[0].mxu0
        %v532 = vadd.f32 0.0, %v531
        %v533 = vpop.f32.mrb[0].mxu0
        %534 = vdwg.mxu0
        %v535 = vld [vmem:[#allocation6] sm:$0xff]
        %v536 = vld [vmem:[#allocation6 + $0x8] sm:$0xff]
        %v537 = vld [vmem:[#allocation6 + $0x10] sm:$0xff]
        %v538 = vld [vmem:[#allocation6 + $0x18] sm:$0xff]
        %v539 = vld [vmem:[#allocation6 + $0x20] sm:$0xff]
        %v540 = vld [vmem:[#allocation6 + $0x28] sm:$0xff]
        %v541 = vld [vmem:[#allocation6 + $0x30] sm:$0xff]
        %v542 = vld [vmem:[#allocation6 + $0x38] sm:$0xff]
        %v543 = vld [vmem:[#allocation6 + $0x40] sm:$0xff]
        %v544 = vld [vmem:[#allocation6 + $0x48] sm:$0xff]
        %v545 = vld [vmem:[#allocation6 + $0x50] sm:$0xff]
        %v546 = vld [vmem:[#allocation6 + $0x58] sm:$0xff]
        %v547 = vld [vmem:[#allocation6 + $0x60] sm:$0xff]
        %v548 = vld [vmem:[#allocation6 + $0x68] sm:$0xff]
        %v549 = vld [vmem:[#allocation6 + $0x70] sm:$0xff]
        %s550 = scalar_lea.vmem [#allocation6], 120
        %v551 = vld [vmem:[%s550] sm:$0xff]
        %v552 = vld [vmem:[%s550 + $0x8] sm:$0xff]
        %v553 = vld [vmem:[%s550 + $0x10] sm:$0xff]
        %v554 = vld [vmem:[%s550 + $0x18] sm:$0xff]
        %v555 = vld [vmem:[%s550 + $0x20] sm:$0xff]
        %v556 = vld [vmem:[%s550 + $0x28] sm:$0xff]
        %v557 = vld [vmem:[%s550 + $0x30] sm:$0xff]
        %v558 = vld [vmem:[%s550 + $0x38] sm:$0xff]
        %v559 = vld [vmem:[%s550 + $0x40] sm:$0xff]
        %v560 = vld [vmem:[%s550 + $0x48] sm:$0xff]
        %v561 = vld [vmem:[%s550 + $0x50] sm:$0xff]
        %v562 = vld [vmem:[%s550 + $0x58] sm:$0xff]
        %v563 = vld [vmem:[%s550 + $0x60] sm:$0xff]
        %v564 = vld [vmem:[%s550 + $0x68] sm:$0xff]
        %v565 = vld [vmem:[%s550 + $0x70] sm:$0xff]
        %s566 = scalar_lea.vmem [#allocation6], 240
        %v567 = vld [vmem:[%s566] sm:$0xff]
        %v568 = vld [vmem:[%s566 + $0x8] sm:$0xff]
        %v569 = vld [vmem:[%s566 + $0x10] sm:$0xff]
        %v570 = vld [vmem:[%s566 + $0x18] sm:$0xff]
        %v571 = vld [vmem:[%s566 + $0x20] sm:$0xff]
        %v572 = vld [vmem:[%s566 + $0x28] sm:$0xff]
        %v573 = vld [vmem:[%s566 + $0x30] sm:$0xff]
        %v574 = vld [vmem:[%s566 + $0x38] sm:$0xff]
        %v575 = vld [vmem:[%s566 + $0x40] sm:$0xff]
        %v576 = vld [vmem:[%s566 + $0x48] sm:$0xff]
        %v577 = vld [vmem:[%s566 + $0x50] sm:$0xff]
        %v578 = vld [vmem:[%s566 + $0x58] sm:$0xff]
        %v579 = vld [vmem:[%s566 + $0x60] sm:$0xff]
        %v580 = vld [vmem:[%s566 + $0x68] sm:$0xff]
        %v581 = vld [vmem:[%s566 + $0x70] sm:$0xff]
        %s582 = scalar_lea.vmem [#allocation6], 360
        %v583 = vld [vmem:[%s582] sm:$0xff]
        %v584 = vld [vmem:[%s582 + $0x8] sm:$0xff]
        %v585 = vld [vmem:[%s582 + $0x10] sm:$0xff]
        %v586 = vld [vmem:[%s582 + $0x18] sm:$0xff]
        %v587 = vld [vmem:[%s582 + $0x20] sm:$0xff]
        %v588 = vld [vmem:[%s582 + $0x28] sm:$0xff]
        %v589 = vld [vmem:[%s582 + $0x30] sm:$0xff]
        %v590 = vld [vmem:[%s582 + $0x38] sm:$0xff]
        %v591 = vld [vmem:[%s582 + $0x40] sm:$0xff]
        %v592 = vld [vmem:[%s582 + $0x48] sm:$0xff]
        %v593 = vld [vmem:[%s582 + $0x50] sm:$0xff]
        %v594 = vld [vmem:[%s582 + $0x58] sm:$0xff]
        %v595 = vld [vmem:[%s582 + $0x60] sm:$0xff]
        %v596 = vld [vmem:[%s582 + $0x68] sm:$0xff]
        %v597 = vld [vmem:[%s582 + $0x70] sm:$0xff]
        %s598 = scalar_lea.vmem [#allocation6], 480
        %v599 = vld [vmem:[%s598] sm:$0xff]
        %v600 = vld [vmem:[%s598 + $0x8] sm:$0xff]
        %v601 = vld [vmem:[%s598 + $0x10] sm:$0xff]
        %v602 = vld [vmem:[%s598 + $0x18] sm:$0xff]
        %v603 = vld [vmem:[%s598 + $0x20] sm:$0xff]
        %v604 = vld [vmem:[%s598 + $0x28] sm:$0xff]
        %v605 = vld [vmem:[%s598 + $0x30] sm:$0xff]
        %v606 = vld [vmem:[%s598 + $0x38] sm:$0xff]
        %v607 = vld [vmem:[%s598 + $0x40] sm:$0xff]
        %v608 = vld [vmem:[%s598 + $0x48] sm:$0xff]
        %v609 = vld [vmem:[%s598 + $0x50] sm:$0xff]
        %v610 = vld [vmem:[%s598 + $0x58] sm:$0xff]
        %v611 = vld [vmem:[%s598 + $0x60] sm:$0xff]
        %v612 = vld [vmem:[%s598 + $0x68] sm:$0xff]
        %v613 = vld [vmem:[%s598 + $0x70] sm:$0xff]
        %v614 = vld [vmem:[%s2] sm:$0xff]
        %v615 = vld [vmem:[%s2 + $0x8] sm:$0xf]
        %617 = vset.pattern.permute.xlu0 0
        %618 = vperm.xlu0 %617, %v614
        %v619 = vpop.permute.xlu0 %618
        %622 = vset.pattern.permute.xlu0 0
        %623 = vperm.xlu0 %622, %v615
        %v624 = vpop.permute.xlu0 %623
        %v626 = vlaneseq
        %v627 = vshrl.u32 %v626, 7
        %v628 = vsub.s32 0, %v627
        %v629 = vrot.slane %v532, %v628
        %v630 = vmul.f32 %v619, %v629
        %v631 = vmul.f32 %v624, %v629
        %632 = vset.pattern.permute.xlu0 1
        %633 = vperm.xlu0 %632, %v614
        %v634 = vpop.permute.xlu0 %633
        %636 = vset.pattern.permute.xlu0 1
        %637 = vperm.xlu0 %636, %v615
        %v638 = vpop.permute.xlu0 %637
        %v640 = vmul.f32 %v634, %v629
        %v641 = vmul.f32 %v638, %v629
        %644 = vrot.lane.b32.xlu0 %v640, 127
        %v645 = vpop.permute.xlu0 %644
        %646 = vrot.lane.b32.xlu0 %v641, 127
        %v647 = vpop.permute.xlu0 %646
        %v650 = vadd.f32 %v630, %v645
        %v651 = vadd.f32 %v631, %v647
        %652 = vset.pattern.permute.xlu0 2
        %653 = vperm.xlu0 %652, %v614
        %v654 = vpop.permute.xlu0 %653
        %656 = vset.pattern.permute.xlu0 2
        %657 = vperm.xlu0 %656, %v615
        %v658 = vpop.permute.xlu0 %657
        %v660 = vmul.f32 %v654, %v629
        %v661 = vmul.f32 %v658, %v629
        %664 = vrot.lane.b32.xlu0 %v660, 126
        %v665 = vpop.permute.xlu0 %664
        %666 = vrot.lane.b32.xlu0 %v661, 126
        %v667 = vpop.permute.xlu0 %666
        %v670 = vadd.f32 %v650, %v665
        %v671 = vadd.f32 %v651, %v667
        %672 = vset.pattern.permute.xlu0 3
        %673 = vperm.xlu0 %672, %v614
        %v674 = vpop.permute.xlu0 %673
        %676 = vset.pattern.permute.xlu0 3
        %677 = vperm.xlu0 %676, %v615
        %v678 = vpop.permute.xlu0 %677
        %v680 = vadd.f32 %v670, %v674
        %v681 = vadd.f32 %v671, %v678
        %v682 = vtanh.pop %v680
        %v683 = vtanh.pop %v681
        %vm684 = vcmask 982016
        %v686 = vsel %vm684, %v682, 0
        %v689 = vsel %vm684, %v683, 0
        %691 = vmatprep.subr.mxu0 0.0
        %692 = vmatpush1.msra.mxu0 %v535
        %693 = vmatprep.subr.mxu0 0.0
        %694 = vmatpush1.msra.mxu0 %v536
        %695 = vmatprep.subr.mxu0 0.0
        %696 = vmatpush1.msra.mxu0 %v537
        %697 = vmatprep.subr.mxu0 0.0
        %698 = vmatpush1.msra.mxu0 %v538
        %699 = vmatprep.subr.mxu0 0.0
        %700 = vmatpush1.msra.mxu0 %v539
        %701 = vmatprep.subr.mxu0 0.0
        %702 = vmatpush1.msra.mxu0 %v540
        %703 = vmatprep.subr.mxu0 0.0
        %704 = vmatpush1.msra.mxu0 %v541
        %705 = vmatprep.subr.mxu0 0.0
        %706 = vmatpush1.msra.mxu0 %v542
        %707 = vmatprep.subr.mxu0 0.0
        %708 = vmatpush1.msra.mxu0 %v543
        %709 = vmatprep.subr.mxu0 0.0
        %710 = vmatpush1.msra.mxu0 %v544
        %711 = vmatprep.subr.mxu0 0.0
        %712 = vmatpush1.msra.mxu0 %v545
        %713 = vmatprep.subr.mxu0 0.0
        %714 = vmatpush1.msra.mxu0 %v546
        %715 = vmatprep.subr.mxu0 0.0
        %716 = vmatpush1.msra.mxu0 %v547
        %717 = vmatprep.subr.mxu0 0.0
        %718 = vmatpush1.msra.mxu0 %v548
        %719 = vmatprep.subr.mxu0 0.0
        %720 = vmatpush1.msra.mxu0 %v549
        %721 = vmatprep.subr.mxu0 0.0
        %722 = vmatpush1.msra.mxu0 0.0
        %723 = vmatprep.subr.mxu0 0.0
        %724 = vmatpush1.msra.mxu0 0.0
        %725 = vmatprep.subr.mxu0 0.0
        %726 = vmatpush1.msra.mxu0 0.0
        %727 = vmatprep.subr.mxu0 0.0
        %728 = vmatpush1.msra.mxu0 0.0
        %729 = vmatprep.subr.mxu0 0.0
        %730 = vmatpush1.msra.mxu0 0.0
        %731 = vmatprep.subr.mxu0 0.0
        %732 = vmatpush1.msra.mxu0 0.0
        %733 = vmatprep.subr.mxu0 0.0
        %734 = vmatpush1.msra.mxu0 0.0
        %735 = vmatprep.subr.mxu0 0.0
        %736 = vmatpush1.msra.mxu0 0.0
        %737 = vmatprep.subr.mxu0 0.0
        %738 = vmatpush1.msra.mxu0 0.0
        %739 = vmatprep.subr.mxu0 0.0
        %740 = vmatpush1.msra.mxu0 0.0
        %741 = vmatprep.subr.mxu0 0.0
        %742 = vmatpush1.msra.mxu0 0.0
        %743 = vmatprep.subr.mxu0 0.0
        %744 = vmatpush1.msra.mxu0 0.0
        %745 = vmatprep.subr.mxu0 0.0
        %746 = vmatpush1.msra.mxu0 0.0
        %747 = vmatprep.subr.mxu0 0.0
        %748 = vmatpush1.msra.mxu0 0.0
        %749 = vmatprep.subr.mxu0 0.0
        %750 = vmatpush1.msra.mxu0 0.0
        %751 = vmatprep.subr.mxu0 0.0
        %752 = vmatpush1.msra.mxu0 0.0
        %753 = vmatprep.subr.mxu0 0.0
        %754 = vmatpush1.msra.mxu0 0.0
        %755 = vmatprep.mubr.f32.mxu0 0.0
        %756 = vmatmul.mubr.f32.gmra.mrb[0].mxu0 %v686
        %v757 = vpop.f32.mrb[0].mxu0
        %v758 = vadd.f32 0.0, %v757
        %v759 = vpop.f32.mrb[0].mxu0
        %760 = vmatprep.mubr.f32.mxu0 0.0
        %761 = vmatmul.mubr.f32.gmra.mrb[0].mxu0 %v689
        %v762 = vpop.f32.mrb[0].mxu0
        %v763 = vadd.f32 0.0, %v762
        %v764 = vpop.f32.mrb[0].mxu0
        %765 = vdwg.mxu0
        %v766 = vsub.f32 %v682, %v758
        %v767 = vsub.f32 %v683, %v763
        %v768 = vmul.f32 %v766, %v766
        %v769 = vmul.f32 %v767, %v767
        %v770 = vsel %vm684, %v768, 0.0
        %vm771 = vcmask 977920
        %v772 = vsel %vm771, %v769, 0.0
        %v773 = vadd.f32 %v770, %v772
        %v774 = vrot.slane %v773, 4
        %v775 = vadd.f32 %v773, %v774
        %v776 = vrot.slane %v775, 2
        %v777 = vadd.f32 %v775, %v776
        %v778 = vrot.slane %v777, 1
        %v779 = vadd.f32 %v777, %v778
        %v780 = vadd.f32 %v779, 1.0
        %v781 = vrcp.pop %v780
        %v783 = vsel %vm684, %v781, 0
        %785 = vmatprep.subr.mxu0 0.0
        %786 = vmatpush1.msra.mxu0 %v551
        %787 = vmatprep.subr.mxu0 0.0
        %788 = vmatpush1.msra.mxu0 %v552
        %789 = vmatprep.subr.mxu0 0.0
        %790 = vmatpush1.msra.mxu0 %v553
        %791 = vmatprep.subr.mxu0 0.0
        %792 = vmatpush1.msra.mxu0 %v554
        %793 = vmatprep.subr.mxu0 0.0
        %794 = vmatpush1.msra.mxu0 %v555
        %795 = vmatprep.subr.mxu0 0.0
        %796 = vmatpush1.msra.mxu0 %v556
        %797 = vmatprep.subr.mxu0 0.0
        %798 = vmatpush1.msra.mxu0 %v557
        %799 = vmatprep.subr.mxu0 0.0
        %800 = vmatpush1.msra.mxu0 %v558
        %801 = vmatprep.subr.mxu0 0.0
        %802 = vmatpush1.msra.mxu0 %v559
        %803 = vmatprep.subr.mxu0 0.0
        %804 = vmatpush1.msra.mxu0 %v560
        %805 = vmatprep.subr.mxu0 0.0
        %806 = vmatpush1.msra.mxu0 %v561
        %807 = vmatprep.subr.mxu0 0.0
        %808 = vmatpush1.msra.mxu0 %v562
        %809 = vmatprep.subr.mxu0 0.0
        %810 = vmatpush1.msra.mxu0 %v563
        %811 = vmatprep.subr.mxu0 0.0
        %812 = vmatpush1.msra.mxu0 %v564
        %813 = vmatprep.subr.mxu0 0.0
        %814 = vmatpush1.msra.mxu0 %v565
        %815 = vmatprep.subr.mxu0 0.0
        %816 = vmatpush1.msra.mxu0 0.0
        %817 = vmatprep.subr.mxu0 0.0
        %818 = vmatpush1.msra.mxu0 0.0
        %819 = vmatprep.subr.mxu0 0.0
        %820 = vmatpush1.msra.mxu0 0.0
        %821 = vmatprep.subr.mxu0 0.0
        %822 = vmatpush1.msra.mxu0 0.0
        %823 = vmatprep.subr.mxu0 0.0
        %824 = vmatpush1.msra.mxu0 0.0
        %825 = vmatprep.subr.mxu0 0.0
        %826 = vmatpush1.msra.mxu0 0.0
        %827 = vmatprep.subr.mxu0 0.0
        %828 = vmatpush1.msra.mxu0 0.0
        %829 = vmatprep.subr.mxu0 0.0
        %830 = vmatpush1.msra.mxu0 0.0
        %831 = vmatprep.subr.mxu0 0.0
        %832 = vmatpush1.msra.mxu0 0.0
        %833 = vmatprep.subr.mxu0 0.0
        %834 = vmatpush1.msra.mxu0 0.0
        %835 = vmatprep.subr.mxu0 0.0
        %836 = vmatpush1.msra.mxu0 0.0
        %837 = vmatprep.subr.mxu0 0.0
        %838 = vmatpush1.msra.mxu0 0.0
        %839 = vmatprep.subr.mxu0 0.0
        %840 = vmatpush1.msra.mxu0 0.0
        %841 = vmatprep.subr.mxu0 0.0
        %842 = vmatpush1.msra.mxu0 0.0
        %843 = vmatprep.subr.mxu0 0.0
        %844 = vmatpush1.msra.mxu0 0.0
        %845 = vmatprep.subr.mxu0 0.0
        %846 = vmatpush1.msra.mxu0 0.0
        %847 = vmatprep.subr.mxu0 0.0
        %848 = vmatpush1.msra.mxu0 0.0
        %849 = vmatprep.mubr.f32.mxu0 0.0
        %850 = vmatmul.mubr.f32.gmra.mrb[0].mxu0 %v783
        %v851 = vpop.f32.mrb[0].mxu0
        %v852 = vadd.f32 0.0, %v851
        %v853 = vpop.f32.mrb[0].mxu0
        %854 = vdwg.mxu0
        %v855 = vlaneseq
        %v856 = vshrl.u32 %v855, 7
        %v857 = vsub.s32 0, %v856
        %v858 = vrot.slane %v852, %v857
        %v859 = vmul.f32 %v858, %v682
        %v860 = vmul.f32 %v858, %v683
        %v861 = vmul.f32 %v781, 8.0
        %v862 = vmul.f32 %v861, %v859
        %v863 = vmul.f32 %v861, %v860
        %v865 = vsel %vm684, %v862, 0
        %v868 = vsel %vm684, %v863, 0
        %870 = vmatprep.subr.mxu0 0.0
        %871 = vmatpush1.msra.mxu0 %v583
        %872 = vmatprep.subr.mxu0 0.0
        %873 = vmatpush1.msra.mxu0 %v584
        %874 = vmatprep.subr.mxu0 0.0
        %875 = vmatpush1.msra.mxu0 %v585
        %876 = vmatprep.subr.mxu0 0.0
        %877 = vmatpush1.msra.mxu0 %v586
        %878 = vmatprep.subr.mxu0 0.0
        %879 = vmatpush1.msra.mxu0 %v587
        %880 = vmatprep.subr.mxu0 0.0
        %881 = vmatpush1.msra.mxu0 %v588
        %882 = vmatprep.subr.mxu0 0.0
        %883 = vmatpush1.msra.mxu0 %v589
        %884 = vmatprep.subr.mxu0 0.0
        %885 = vmatpush1.msra.mxu0 %v590
        %886 = vmatprep.subr.mxu0 0.0
        %887 = vmatpush1.msra.mxu0 %v591
        %888 = vmatprep.subr.mxu0 0.0
        %889 = vmatpush1.msra.mxu0 %v592
        %890 = vmatprep.subr.mxu0 0.0
        %891 = vmatpush1.msra.mxu0 %v593
        %892 = vmatprep.subr.mxu0 0.0
        %893 = vmatpush1.msra.mxu0 %v594
        %894 = vmatprep.subr.mxu0 0.0
        %895 = vmatpush1.msra.mxu0 %v595
        %896 = vmatprep.subr.mxu0 0.0
        %897 = vmatpush1.msra.mxu0 %v596
        %898 = vmatprep.subr.mxu0 0.0
        %899 = vmatpush1.msra.mxu0 %v597
        %900 = vmatprep.subr.mxu0 0.0
        %901 = vmatpush1.msra.mxu0 0.0
        %902 = vmatprep.subr.mxu0 0.0
        %903 = vmatpush1.msra.mxu0 0.0
        %904 = vmatprep.subr.mxu0 0.0
        %905 = vmatpush1.msra.mxu0 0.0
        %906 = vmatprep.subr.mxu0 0.0
        %907 = vmatpush1.msra.mxu0 0.0
        %908 = vmatprep.subr.mxu0 0.0
        %909 = vmatpush1.msra.mxu0 0.0
        %910 = vmatprep.subr.mxu0 0.0
        %911 = vmatpush1.msra.mxu0 0.0
        %912 = vmatprep.subr.mxu0 0.0
        %913 = vmatpush1.msra.mxu0 0.0
        %914 = vmatprep.subr.mxu0 0.0
        %915 = vmatpush1.msra.mxu0 0.0
        %916 = vmatprep.subr.mxu0 0.0
        %917 = vmatpush1.msra.mxu0 0.0
        %918 = vmatprep.subr.mxu0 0.0
        %919 = vmatpush1.msra.mxu0 0.0
        %920 = vmatprep.subr.mxu0 0.0
        %921 = vmatpush1.msra.mxu0 0.0
        %922 = vmatprep.subr.mxu0 0.0
        %923 = vmatpush1.msra.mxu0 0.0
        %924 = vmatprep.subr.mxu0 0.0
        %925 = vmatpush1.msra.mxu0 0.0
        %926 = vmatprep.subr.mxu0 0.0
        %927 = vmatpush1.msra.mxu0 0.0
        %928 = vmatprep.subr.mxu0 0.0
        %929 = vmatpush1.msra.mxu0 0.0
        %930 = vmatprep.subr.mxu0 0.0
        %931 = vmatpush1.msra.mxu0 0.0
        %932 = vmatprep.subr.mxu0 0.0
        %933 = vmatpush1.msra.mxu0 0.0
        %934 = vmatprep.mubr.f32.mxu0 0.0
        %935 = vmatmul.mubr.f32.gmra.mrb[0].mxu0 %v865
        %v936 = vpop.f32.mrb[0].mxu0
        %v937 = vadd.f32 0.0, %v936
        %v938 = vpop.f32.mrb[0].mxu0
        %939 = vmatprep.mubr.f32.mxu0 0.0
        %940 = vmatmul.mubr.f32.gmra.mrb[0].mxu0 %v868
        %v941 = vpop.f32.mrb[0].mxu0
        %v942 = vadd.f32 0.0, %v941
        %v943 = vpop.f32.mrb[0].mxu0
        %944 = vdwg.mxu0
        %v946 = vsel %vm684, %v859, 0
        %v949 = vsel %vm684, %v860, 0
        %951 = vmatprep.subr.mxu0 0.0
        %952 = vmatpush1.msra.mxu0 %v567
        %953 = vmatprep.subr.mxu0 0.0
        %954 = vmatpush1.msra.mxu0 %v568
        %955 = vmatprep.subr.mxu0 0.0
        %956 = vmatpush1.msra.mxu0 %v569
        %957 = vmatprep.subr.mxu0 0.0
        %958 = vmatpush1.msra.mxu0 %v570
        %959 = vmatprep.subr.mxu0 0.0
        %960 = vmatpush1.msra.mxu0 %v571
        %961 = vmatprep.subr.mxu0 0.0
        %962 = vmatpush1.msra.mxu0 %v572
        %963 = vmatprep.subr.mxu0 0.0
        %964 = vmatpush1.msra.mxu0 %v573
        %965 = vmatprep.subr.mxu0 0.0
        %966 = vmatpush1.msra.mxu0 %v574
        %967 = vmatprep.subr.mxu0 0.0
        %968 = vmatpush1.msra.mxu0 %v575
        %969 = vmatprep.subr.mxu0 0.0
        %970 = vmatpush1.msra.mxu0 %v576
        %971 = vmatprep.subr.mxu0 0.0
        %972 = vmatpush1.msra.mxu0 %v577
        %973 = vmatprep.subr.mxu0 0.0
        %974 = vmatpush1.msra.mxu0 %v578
        %975 = vmatprep.subr.mxu0 0.0
        %976 = vmatpush1.msra.mxu0 %v579
        %977 = vmatprep.subr.mxu0 0.0
        %978 = vmatpush1.msra.mxu0 %v580
        %979 = vmatprep.subr.mxu0 0.0
        %980 = vmatpush1.msra.mxu0 %v581
        %981 = vmatprep.subr.mxu0 0.0
        %982 = vmatpush1.msra.mxu0 0.0
        %983 = vmatprep.subr.mxu0 0.0
        %984 = vmatpush1.msra.mxu0 0.0
        %985 = vmatprep.subr.mxu0 0.0
        %986 = vmatpush1.msra.mxu0 0.0
        %987 = vmatprep.subr.mxu0 0.0
        %988 = vmatpush1.msra.mxu0 0.0
        %989 = vmatprep.subr.mxu0 0.0
        %990 = vmatpush1.msra.mxu0 0.0
        %991 = vmatprep.subr.mxu0 0.0
        %992 = vmatpush1.msra.mxu0 0.0
        %993 = vmatprep.subr.mxu0 0.0
        %994 = vmatpush1.msra.mxu0 0.0
        %995 = vmatprep.subr.mxu0 0.0
        %996 = vmatpush1.msra.mxu0 0.0
        %997 = vmatprep.subr.mxu0 0.0
        %998 = vmatpush1.msra.mxu0 0.0
        %999 = vmatprep.subr.mxu0 0.0
        %1000 = vmatpush1.msra.mxu0 0.0
        %1001 = vmatprep.subr.mxu0 0.0
        %1002 = vmatpush1.msra.mxu0 0.0
        %1003 = vmatprep.subr.mxu0 0.0
        %1004 = vmatpush1.msra.mxu0 0.0
        %1005 = vmatprep.subr.mxu0 0.0
        %1006 = vmatpush1.msra.mxu0 0.0
        %1007 = vmatprep.subr.mxu0 0.0
        %1008 = vmatpush1.msra.mxu0 0.0
        %1009 = vmatprep.subr.mxu0 0.0
        %1010 = vmatpush1.msra.mxu0 0.0
        %1011 = vmatprep.subr.mxu0 0.0
        %1012 = vmatpush1.msra.mxu0 0.0
        %1013 = vmatprep.subr.mxu0 0.0
        %1014 = vmatpush1.msra.mxu0 0.0
        %1015 = vmatprep.mubr.f32.mxu0 0.0
        %1016 = vmatmul.mubr.f32.gmra.mrb[0].mxu0 %v946
        %v1017 = vpop.f32.mrb[0].mxu0
        %v1018 = vadd.f32 %v937, %v1017
        %v1019 = vpop.f32.mrb[0].mxu0
        %1020 = vmatprep.mubr.f32.mxu0 0.0
        %1021 = vmatmul.mubr.f32.gmra.mrb[0].mxu0 %v949
        %v1022 = vpop.f32.mrb[0].mxu0
        %v1023 = vadd.f32 %v942, %v1022
        %v1024 = vpop.f32.mrb[0].mxu0
        %1025 = vdwg.mxu0
        %v1026 = vld [vmem:[#allocation4] sm:$0xff]
        %v1027 = vld [vmem:[#allocation4 + $0x8] sm:$0xf]
        %s1028 = scalar_lea.vmem [#allocation4], 16
        %v1029 = vld [vmem:[%s1028] sm:$0xff]
        %v1030 = vld [vmem:[%s1028 + $0x8] sm:$0xf]
        %1033 = vrot.lane.b32.xlu0 %v1018, 127
        %v1034 = vpop.permute.xlu0 %1033
        %1035 = vrot.lane.b32.xlu0 %v1023, 127
        %v1036 = vpop.permute.xlu0 %1035
        %vm1038 = vcmask 97280
        %v1040 = vsel %vm1038, %v1029, 0
        %v1043 = vsel %vm1038, %v1030, 0
        %vm1045 = vcmask 1043456
        %v1046 = vsel %vm1045, %v1036, 0
        %1048 = vmatprep.subr.mxu0 0.0
        %1049 = vmatpush1.msra.mxu0 %v1034
        %1050 = vmatprep.subr.mxu0 0.0
        %1051 = vmatpush1.msra.mxu0 %v1046
        %1052 = vmatprep.subr.mxu0 0.0
        %1053 = vmatpush1.msra.mxu0 0.0
        %1054 = vmatprep.subr.mxu0 0.0
        %1055 = vmatpush1.msra.mxu0 0.0
        %1056 = vmatprep.subr.mxu0 0.0
        %1057 = vmatpush1.msra.mxu0 0.0
        %1058 = vmatprep.subr.mxu0 0.0
        %1059 = vmatpush1.msra.mxu0 0.0
        %1060 = vmatprep.subr.mxu0 0.0
        %1061 = vmatpush1.msra.mxu0 0.0
        %1062 = vmatprep.subr.mxu0 0.0
        %1063 = vmatpush1.msra.mxu0 0.0
        %1064 = vmatprep.subr.mxu0 0.0
        %1065 = vmatpush1.msra.mxu0 0.0
        %1066 = vmatprep.subr.mxu0 0.0
        %1067 = vmatpush1.msra.mxu0 0.0
        %1068 = vmatprep.subr.mxu0 0.0
        %1069 = vmatpush1.msra.mxu0 0.0
        %1070 = vmatprep.subr.mxu0 0.0
        %1071 = vmatpush1.msra.mxu0 0.0
        %1072 = vmatprep.subr.mxu0 0.0
        %1073 = vmatpush1.msra.mxu0 0.0
        %1074 = vmatprep.subr.mxu0 0.0
        %1075 = vmatpush1.msra.mxu0 0.0
        %1076 = vmatprep.subr.mxu0 0.0
        %1077 = vmatpush1.msra.mxu0 0.0
        %1078 = vmatprep.subr.mxu0 0.0
        %1079 = vmatpush1.msra.mxu0 0.0
        %1080 = vmatprep.subr.mxu0 0.0
        %1081 = vmatpush1.msra.mxu0 0.0
        %1082 = vmatprep.subr.mxu0 0.0
        %1083 = vmatpush1.msra.mxu0 0.0
        %1084 = vmatprep.subr.mxu0 0.0
        %1085 = vmatpush1.msra.mxu0 0.0
        %1086 = vmatprep.subr.mxu0 0.0
        %1087 = vmatpush1.msra.mxu0 0.0
        %1088 = vmatprep.subr.mxu0 0.0
        %1089 = vmatpush1.msra.mxu0 0.0
        %1090 = vmatprep.subr.mxu0 0.0
        %1091 = vmatpush1.msra.mxu0 0.0
        %1092 = vmatprep.subr.mxu0 0.0
        %1093 = vmatpush1.msra.mxu0 0.0
        %1094 = vmatprep.subr.mxu0 0.0
        %1095 = vmatpush1.msra.mxu0 0.0
        %1096 = vmatprep.subr.mxu0 0.0
        %1097 = vmatpush1.msra.mxu0 0.0
        %1098 = vmatprep.subr.mxu0 0.0
        %1099 = vmatpush1.msra.mxu0 0.0
        %1100 = vmatprep.subr.mxu0 0.0
        %1101 = vmatpush1.msra.mxu0 0.0
        %1102 = vmatprep.subr.mxu0 0.0
        %1103 = vmatpush1.msra.mxu0 0.0
        %1104 = vmatprep.subr.mxu0 0.0
        %1105 = vmatpush1.msra.mxu0 0.0
        %1106 = vmatprep.subr.mxu0 0.0
        %1107 = vmatpush1.msra.mxu0 0.0
        %1108 = vmatprep.subr.mxu0 0.0
        %1109 = vmatpush1.msra.mxu0 0.0
        %1110 = vmatprep.subr.mxu0 0.0
        %1111 = vmatpush1.msra.mxu0 0.0
        %1112 = vmatprep.mubr.f32.mxu0 0.0
        %1113 = vmatmul.mubr.f32.gmra.mrb[0].mxu0 %v1040
        %v1114 = vpop.f32.mrb[0].mxu0
        %v1115 = vadd.f32 0.0, %v1114
        %v1116 = vpop.f32.mrb[0].mxu0
        %1117 = vmatprep.mubr.f32.mxu0 0.0
        %1118 = vmatmul.mubr.f32.gmra.mrb[0].mxu0 %v1043
        %v1119 = vpop.f32.mrb[0].mxu0
        %v1120 = vadd.f32 0.0, %v1119
        %v1121 = vpop.f32.mrb[0].mxu0
        %1122 = vdwg.mxu0
        %v1124 = vsel %vm1038, %v1026, 0
        %v1127 = vsel %vm1038, %v1027, 0
        %v1129 = vsel %vm1045, %v1023, 0
        %1131 = vmatprep.subr.mxu0 0.0
        %1132 = vmatpush1.msra.mxu0 %v1018
        %1133 = vmatprep.subr.mxu0 0.0
        %1134 = vmatpush1.msra.mxu0 %v1129
        %1135 = vmatprep.subr.mxu0 0.0
        %1136 = vmatpush1.msra.mxu0 0.0
        %1137 = vmatprep.subr.mxu0 0.0
        %1138 = vmatpush1.msra.mxu0 0.0
        %1139 = vmatprep.subr.mxu0 0.0
        %1140 = vmatpush1.msra.mxu0 0.0
        %1141 = vmatprep.subr.mxu0 0.0
        %1142 = vmatpush1.msra.mxu0 0.0
        %1143 = vmatprep.subr.mxu0 0.0
        %1144 = vmatpush1.msra.mxu0 0.0
        %1145 = vmatprep.subr.mxu0 0.0
        %1146 = vmatpush1.msra.mxu0 0.0
        %1147 = vmatprep.subr.mxu0 0.0
        %1148 = vmatpush1.msra.mxu0 0.0
        %1149 = vmatprep.subr.mxu0 0.0
        %1150 = vmatpush1.msra.mxu0 0.0
        %1151 = vmatprep.subr.mxu0 0.0
        %1152 = vmatpush1.msra.mxu0 0.0
        %1153 = vmatprep.subr.mxu0 0.0
        %1154 = vmatpush1.msra.mxu0 0.0
        %1155 = vmatprep.subr.mxu0 0.0
        %1156 = vmatpush1.msra.mxu0 0.0
        %1157 = vmatprep.subr.mxu0 0.0
        %1158 = vmatpush1.msra.mxu0 0.0
        %1159 = vmatprep.subr.mxu0 0.0
        %1160 = vmatpush1.msra.mxu0 0.0
        %1161 = vmatprep.subr.mxu0 0.0
        %1162 = vmatpush1.msra.mxu0 0.0
        %1163 = vmatprep.subr.mxu0 0.0
        %1164 = vmatpush1.msra.mxu0 0.0
        %1165 = vmatprep.subr.mxu0 0.0
        %1166 = vmatpush1.msra.mxu0 0.0
        %1167 = vmatprep.subr.mxu0 0.0
        %1168 = vmatpush1.msra.mxu0 0.0
        %1169 = vmatprep.subr.mxu0 0.0
        %1170 = vmatpush1.msra.mxu0 0.0
        %1171 = vmatprep.subr.mxu0 0.0
        %1172 = vmatpush1.msra.mxu0 0.0
        %1173 = vmatprep.subr.mxu0 0.0
        %1174 = vmatpush1.msra.mxu0 0.0
        %1175 = vmatprep.subr.mxu0 0.0
        %1176 = vmatpush1.msra.mxu0 0.0
        %1177 = vmatprep.subr.mxu0 0.0
        %1178 = vmatpush1.msra.mxu0 0.0
        %1179 = vmatprep.subr.mxu0 0.0
        %1180 = vmatpush1.msra.mxu0 0.0
        %1181 = vmatprep.subr.mxu0 0.0
        %1182 = vmatpush1.msra.mxu0 0.0
        %1183 = vmatprep.subr.mxu0 0.0
        %1184 = vmatpush1.msra.mxu0 0.0
        %1185 = vmatprep.subr.mxu0 0.0
        %1186 = vmatpush1.msra.mxu0 0.0
        %1187 = vmatprep.subr.mxu0 0.0
        %1188 = vmatpush1.msra.mxu0 0.0
        %1189 = vmatprep.subr.mxu0 0.0
        %1190 = vmatpush1.msra.mxu0 0.0
        %1191 = vmatprep.subr.mxu0 0.0
        %1192 = vmatpush1.msra.mxu0 0.0
        %1193 = vmatprep.subr.mxu0 0.0
        %1194 = vmatpush1.msra.mxu0 0.0
        %1195 = vmatprep.mubr.f32.mxu0 0.0
        %1196 = vmatmul.mubr.f32.gmra.mrb[0].mxu0 %v1124
        %v1197 = vpop.f32.mrb[0].mxu0
        %v1198 = vadd.f32 %v1115, %v1197
        %v1199 = vpop.f32.mrb[0].mxu0
        %1200 = vmatprep.mubr.f32.mxu0 0.0
        %1201 = vmatmul.mubr.f32.gmra.mrb[0].mxu0 %v1127
        %v1202 = vpop.f32.mrb[0].mxu0
        %v1203 = vadd.f32 %v1120, %v1202
        %v1204 = vpop.f32.mrb[0].mxu0
        %1205 = vdwg.mxu0
        %s1206 = scalar_lea.vmem [#allocation4], 32
        %v1207 = vld [vmem:[%s1206] sm:$0xff]
        %v1208 = vld [vmem:[%s1206 + $0x8] sm:$0xf]
        %1209 = vrot.lane.b32.xlu0 %v1018, 126
        %v1210 = vpop.permute.xlu0 %1209
        %1211 = vrot.lane.b32.xlu0 %v1023, 126
        %v1212 = vpop.permute.xlu0 %1211
        %v1215 = vsel %vm1038, %v1207, 0
        %v1218 = vsel %vm1038, %v1208, 0
        %v1220 = vsel %vm1045, %v1212, 0
        %1222 = vmatprep.subr.mxu0 0.0
        %1223 = vmatpush1.msra.mxu0 %v1210
        %1224 = vmatprep.subr.mxu0 0.0
        %1225 = vmatpush1.msra.mxu0 %v1220
        %1226 = vmatprep.subr.mxu0 0.0
        %1227 = vmatpush1.msra.mxu0 0.0
        %1228 = vmatprep.subr.mxu0 0.0
        %1229 = vmatpush1.msra.mxu0 0.0
        %1230 = vmatprep.subr.mxu0 0.0
        %1231 = vmatpush1.msra.mxu0 0.0
        %1232 = vmatprep.subr.mxu0 0.0
        %1233 = vmatpush1.msra.mxu0 0.0
        %1234 = vmatprep.subr.mxu0 0.0
        %1235 = vmatpush1.msra.mxu0 0.0
        %1236 = vmatprep.subr.mxu0 0.0
        %1237 = vmatpush1.msra.mxu0 0.0
        %1238 = vmatprep.subr.mxu0 0.0
        %1239 = vmatpush1.msra.mxu0 0.0
        %1240 = vmatprep.subr.mxu0 0.0
        %1241 = vmatpush1.msra.mxu0 0.0
        %1242 = vmatprep.subr.mxu0 0.0
        %1243 = vmatpush1.msra.mxu0 0.0
        %1244 = vmatprep.subr.mxu0 0.0
        %1245 = vmatpush1.msra.mxu0 0.0
        %1246 = vmatprep.subr.mxu0 0.0
        %1247 = vmatpush1.msra.mxu0 0.0
        %1248 = vmatprep.subr.mxu0 0.0
        %1249 = vmatpush1.msra.mxu0 0.0
        %1250 = vmatprep.subr.mxu0 0.0
        %1251 = vmatpush1.msra.mxu0 0.0
        %1252 = vmatprep.subr.mxu0 0.0
        %1253 = vmatpush1.msra.mxu0 0.0
        %1254 = vmatprep.subr.mxu0 0.0
        %1255 = vmatpush1.msra.mxu0 0.0
        %1256 = vmatprep.subr.mxu0 0.0
        %1257 = vmatpush1.msra.mxu0 0.0
        %1258 = vmatprep.subr.mxu0 0.0
        %1259 = vmatpush1.msra.mxu0 0.0
        %1260 = vmatprep.subr.mxu0 0.0
        %1261 = vmatpush1.msra.mxu0 0.0
        %1262 = vmatprep.subr.mxu0 0.0
        %1263 = vmatpush1.msra.mxu0 0.0
        %1264 = vmatprep.subr.mxu0 0.0
        %1265 = vmatpush1.msra.mxu0 0.0
        %1266 = vmatprep.subr.mxu0 0.0
        %1267 = vmatpush1.msra.mxu0 0.0
        %1268 = vmatprep.subr.mxu0 0.0
        %1269 = vmatpush1.msra.mxu0 0.0
        %1270 = vmatprep.subr.mxu0 0.0
        %1271 = vmatpush1.msra.mxu0 0.0
        %1272 = vmatprep.subr.mxu0 0.0
        %1273 = vmatpush1.msra.mxu0 0.0
        %1274 = vmatprep.subr.mxu0 0.0
        %1275 = vmatpush1.msra.mxu0 0.0
        %1276 = vmatprep.subr.mxu0 0.0
        %1277 = vmatpush1.msra.mxu0 0.0
        %1278 = vmatprep.subr.mxu0 0.0
        %1279 = vmatpush1.msra.mxu0 0.0
        %1280 = vmatprep.subr.mxu0 0.0
        %1281 = vmatpush1.msra.mxu0 0.0
        %1282 = vmatprep.subr.mxu0 0.0
        %1283 = vmatpush1.msra.mxu0 0.0
        %1284 = vmatprep.subr.mxu0 0.0
        %1285 = vmatpush1.msra.mxu0 0.0
        %1286 = vmatprep.mubr.f32.mxu0 0.0
        %1287 = vmatmul.mubr.f32.gmra.mrb[0].mxu0 %v1215
        %v1288 = vpop.f32.mrb[0].mxu0
        %v1289 = vadd.f32 0.0, %v1288
        %v1290 = vpop.f32.mrb[0].mxu0
        %1291 = vmatprep.mubr.f32.mxu0 0.0
        %1292 = vmatmul.mubr.f32.gmra.mrb[0].mxu0 %v1218
        %v1293 = vpop.f32.mrb[0].mxu0
        %v1294 = vadd.f32 0.0, %v1293
        %v1295 = vpop.f32.mrb[0].mxu0
        %1296 = vdwg.mxu0
        %v1297 = vadd.f32 %v1198, %v1289
        %v1298 = vadd.f32 %v1203, %v1294
        %v1299 = vld [vmem:[%s4] sm:$0xff]
        %v1300 = vld [vmem:[%s4 + $0x8] sm:$0xf]
        %1302 = vset.pattern.permute.xlu0 0
        %1303 = vperm.xlu0 %1302, %v1299
        %v1304 = vpop.permute.xlu0 %1303
        %1307 = vset.pattern.permute.xlu0 0
        %1308 = vperm.xlu0 %1307, %v1300
        %v1309 = vpop.permute.xlu0 %1308
        %v1311 = vadd.f32 %v1297, %v1304
        %v1312 = vadd.f32 %v1298, %v1309
        %v1313 = vtanh.pop %v1311
        %v1314 = vtanh.pop %v1312
        %v1316 = vsel %vm684, %v1313, 0
        %v1319 = vsel %vm684, %v1314, 0
        %1321 = vmatprep.subr.mxu0 0.0
        %1322 = vmatpush1.msra.mxu0 %v599
        %1323 = vmatprep.subr.mxu0 0.0
        %1324 = vmatpush1.msra.mxu0 %v600
        %1325 = vmatprep.subr.mxu0 0.0
        %1326 = vmatpush1.msra.mxu0 %v601
        %1327 = vmatprep.subr.mxu0 0.0
        %1328 = vmatpush1.msra.mxu0 %v602
        %1329 = vmatprep.subr.mxu0 0.0
        %1330 = vmatpush1.msra.mxu0 %v603
        %1331 = vmatprep.subr.mxu0 0.0
        %1332 = vmatpush1.msra.mxu0 %v604
        %1333 = vmatprep.subr.mxu0 0.0
        %1334 = vmatpush1.msra.mxu0 %v605
        %1335 = vmatprep.subr.mxu0 0.0
        %1336 = vmatpush1.msra.mxu0 %v606
        %1337 = vmatprep.subr.mxu0 0.0
        %1338 = vmatpush1.msra.mxu0 %v607
        %1339 = vmatprep.subr.mxu0 0.0
        %1340 = vmatpush1.msra.mxu0 %v608
        %1341 = vmatprep.subr.mxu0 0.0
        %1342 = vmatpush1.msra.mxu0 %v609
        %1343 = vmatprep.subr.mxu0 0.0
        %1344 = vmatpush1.msra.mxu0 %v610
        %1345 = vmatprep.subr.mxu0 0.0
        %1346 = vmatpush1.msra.mxu0 %v611
        %1347 = vmatprep.subr.mxu0 0.0
        %1348 = vmatpush1.msra.mxu0 %v612
        %1349 = vmatprep.subr.mxu0 0.0
        %1350 = vmatpush1.msra.mxu0 %v613
        %1351 = vmatprep.subr.mxu0 0.0
        %1352 = vmatpush1.msra.mxu0 0.0
        %1353 = vmatprep.subr.mxu0 0.0
        %1354 = vmatpush1.msra.mxu0 0.0
        %1355 = vmatprep.subr.mxu0 0.0
        %1356 = vmatpush1.msra.mxu0 0.0
        %1357 = vmatprep.subr.mxu0 0.0
        %1358 = vmatpush1.msra.mxu0 0.0
        %1359 = vmatprep.subr.mxu0 0.0
        %1360 = vmatpush1.msra.mxu0 0.0
        %1361 = vmatprep.subr.mxu0 0.0
        %1362 = vmatpush1.msra.mxu0 0.0
        %1363 = vmatprep.subr.mxu0 0.0
        %1364 = vmatpush1.msra.mxu0 0.0
        %1365 = vmatprep.subr.mxu0 0.0
        %1366 = vmatpush1.msra.mxu0 0.0
        %1367 = vmatprep.subr.mxu0 0.0
        %1368 = vmatpush1.msra.mxu0 0.0
        %1369 = vmatprep.subr.mxu0 0.0
        %1370 = vmatpush1.msra.mxu0 0.0
        %1371 = vmatprep.subr.mxu0 0.0
        %1372 = vmatpush1.msra.mxu0 0.0
        %1373 = vmatprep.subr.mxu0 0.0
        %1374 = vmatpush1.msra.mxu0 0.0
        %1375 = vmatprep.subr.mxu0 0.0
        %1376 = vmatpush1.msra.mxu0 0.0
        %1377 = vmatprep.subr.mxu0 0.0
        %1378 = vmatpush1.msra.mxu0 0.0
        %1379 = vmatprep.subr.mxu0 0.0
        %1380 = vmatpush1.msra.mxu0 0.0
        %1381 = vmatprep.subr.mxu0 0.0
        %1382 = vmatpush1.msra.mxu0 0.0
        %1383 = vmatprep.subr.mxu0 0.0
        %1384 = vmatpush1.msra.mxu0 0.0
        %1385 = vmatprep.mubr.f32.mxu0 0.0
        %1386 = vmatmul.mubr.f32.gmra.mrb[0].mxu0 %v1316
        %v1387 = vpop.f32.mrb[0].mxu0
        %v1388 = vadd.f32 0.0, %v1387
        %v1389 = vpop.f32.mrb[0].mxu0
        %1390 = vmatprep.mubr.f32.mxu0 0.0
        %1391 = vmatmul.mubr.f32.gmra.mrb[0].mxu0 %v1319
        %v1392 = vpop.f32.mrb[0].mxu0
        %v1393 = vadd.f32 0.0, %v1392
        %v1394 = vpop.f32.mrb[0].mxu0
        %1395 = vdwg.mxu0
        %s1396 = scalar_lea.vmem [#allocation4], 48
        %v1397 = vld [vmem:[%s1396] sm:$0xff]
        %v1398 = vld [vmem:[%s1396 + $0x8] sm:$0xf]
        %s1399 = scalar_lea.vmem [#allocation4], 64
        %v1400 = vld [vmem:[%s1399] sm:$0xff]
        %v1401 = vld [vmem:[%s1399 + $0x8] sm:$0xf]
        %1404 = vrot.lane.b32.xlu0 %v1388, 127
        %v1405 = vpop.permute.xlu0 %1404
        %1406 = vrot.lane.b32.xlu0 %v1393, 127
        %v1407 = vpop.permute.xlu0 %1406
        %v1410 = vsel %vm1038, %v1400, 0
        %v1413 = vsel %vm1038, %v1401, 0
        %v1415 = vsel %vm1045, %v1407, 0
        %1417 = vmatprep.subr.mxu0 0.0
        %1418 = vmatpush1.msra.mxu0 %v1405
        %1419 = vmatprep.subr.mxu0 0.0
        %1420 = vmatpush1.msra.mxu0 %v1415
        %1421 = vmatprep.subr.mxu0 0.0
        %1422 = vmatpush1.msra.mxu0 0.0
        %1423 = vmatprep.subr.mxu0 0.0
        %1424 = vmatpush1.msra.mxu0 0.0
        %1425 = vmatprep.subr.mxu0 0.0
        %1426 = vmatpush1.msra.mxu0 0.0
        %1427 = vmatprep.subr.mxu0 0.0
        %1428 = vmatpush1.msra.mxu0 0.0
        %1429 = vmatprep.subr.mxu0 0.0
        %1430 = vmatpush1.msra.mxu0 0.0
        %1431 = vmatprep.subr.mxu0 0.0
        %1432 = vmatpush1.msra.mxu0 0.0
        %1433 = vmatprep.subr.mxu0 0.0
        %1434 = vmatpush1.msra.mxu0 0.0
        %1435 = vmatprep.subr.mxu0 0.0
        %1436 = vmatpush1.msra.mxu0 0.0
        %1437 = vmatprep.subr.mxu0 0.0
        %1438 = vmatpush1.msra.mxu0 0.0
        %1439 = vmatprep.subr.mxu0 0.0
        %1440 = vmatpush1.msra.mxu0 0.0
        %1441 = vmatprep.subr.mxu0 0.0
        %1442 = vmatpush1.msra.mxu0 0.0
        %1443 = vmatprep.subr.mxu0 0.0
        %1444 = vmatpush1.msra.mxu0 0.0
        %1445 = vmatprep.subr.mxu0 0.0
        %1446 = vmatpush1.msra.mxu0 0.0
        %1447 = vmatprep.subr.mxu0 0.0
        %1448 = vmatpush1.msra.mxu0 0.0
        %1449 = vmatprep.subr.mxu0 0.0
        %1450 = vmatpush1.msra.mxu0 0.0
        %1451 = vmatprep.subr.mxu0 0.0
        %1452 = vmatpush1.msra.mxu0 0.0
        %1453 = vmatprep.subr.mxu0 0.0
        %1454 = vmatpush1.msra.mxu0 0.0
        %1455 = vmatprep.subr.mxu0 0.0
        %1456 = vmatpush1.msra.mxu0 0.0
        %1457 = vmatprep.subr.mxu0 0.0
        %1458 = vmatpush1.msra.mxu0 0.0
        %1459 = vmatprep.subr.mxu0 0.0
        %1460 = vmatpush1.msra.mxu0 0.0
        %1461 = vmatprep.subr.mxu0 0.0
        %1462 = vmatpush1.msra.mxu0 0.0
        %1463 = vmatprep.subr.mxu0 0.0
        %1464 = vmatpush1.msra.mxu0 0.0
        %1465 = vmatprep.subr.mxu0 0.0
        %1466 = vmatpush1.msra.mxu0 0.0
        %1467 = vmatprep.subr.mxu0 0.0
        %1468 = vmatpush1.msra.mxu0 0.0
        %1469 = vmatprep.subr.mxu0 0.0
        %1470 = vmatpush1.msra.mxu0 0.0
        %1471 = vmatprep.subr.mxu0 0.0
        %1472 = vmatpush1.msra.mxu0 0.0
        %1473 = vmatprep.subr.mxu0 0.0
        %1474 = vmatpush1.msra.mxu0 0.0
        %1475 = vmatprep.subr.mxu0 0.0
        %1476 = vmatpush1.msra.mxu0 0.0
        %1477 = vmatprep.subr.mxu0 0.0
        %1478 = vmatpush1.msra.mxu0 0.0
        %1479 = vmatprep.subr.mxu0 0.0
        %1480 = vmatpush1.msra.mxu0 0.0
        %1481 = vmatprep.mubr.f32.mxu0 0.0
        %1482 = vmatmul.mubr.f32.gmra.mrb[0].mxu0 %v1410
        %v1483 = vpop.f32.mrb[0].mxu0
        %v1484 = vadd.f32 0.0, %v1483
        %v1485 = vpop.f32.mrb[0].mxu0
        %1486 = vmatprep.mubr.f32.mxu0 0.0
        %1487 = vmatmul.mubr.f32.gmra.mrb[0].mxu0 %v1413
        %v1488 = vpop.f32.mrb[0].mxu0
        %v1489 = vadd.f32 0.0, %v1488
        %v1490 = vpop.f32.mrb[0].mxu0
        %1491 = vdwg.mxu0
        %v1493 = vsel %vm1038, %v1397, 0
        %v1496 = vsel %vm1038, %v1398, 0
        %v1498 = vsel %vm1045, %v1393, 0
        %1500 = vmatprep.subr.mxu0 0.0
        %1501 = vmatpush1.msra.mxu0 %v1388
        %1502 = vmatprep.subr.mxu0 0.0
        %1503 = vmatpush1.msra.mxu0 %v1498
        %1504 = vmatprep.subr.mxu0 0.0
        %1505 = vmatpush1.msra.mxu0 0.0
        %1506 = vmatprep.subr.mxu0 0.0
        %1507 = vmatpush1.msra.mxu0 0.0
        %1508 = vmatprep.subr.mxu0 0.0
        %1509 = vmatpush1.msra.mxu0 0.0
        %1510 = vmatprep.subr.mxu0 0.0
        %1511 = vmatpush1.msra.mxu0 0.0
        %1512 = vmatprep.subr.mxu0 0.0
        %1513 = vmatpush1.msra.mxu0 0.0
        %1514 = vmatprep.subr.mxu0 0.0
        %1515 = vmatpush1.msra.mxu0 0.0
        %1516 = vmatprep.subr.mxu0 0.0
        %1517 = vmatpush1.msra.mxu0 0.0
        %1518 = vmatprep.subr.mxu0 0.0
        %1519 = vmatpush1.msra.mxu0 0.0
        %1520 = vmatprep.subr.mxu0 0.0
        %1521 = vmatpush1.msra.mxu0 0.0
        %1522 = vmatprep.subr.mxu0 0.0
        %1523 = vmatpush1.msra.mxu0 0.0
        %1524 = vmatprep.subr.mxu0 0.0
        %1525 = vmatpush1.msra.mxu0 0.0
        %1526 = vmatprep.subr.mxu0 0.0
        %1527 = vmatpush1.msra.mxu0 0.0
        %1528 = vmatprep.subr.mxu0 0.0
        %1529 = vmatpush1.msra.mxu0 0.0
        %1530 = vmatprep.subr.mxu0 0.0
        %1531 = vmatpush1.msra.mxu0 0.0
        %1532 = vmatprep.subr.mxu0 0.0
        %1533 = vmatpush1.msra.mxu0 0.0
        %1534 = vmatprep.subr.mxu0 0.0
        %1535 = vmatpush1.msra.mxu0 0.0
        %1536 = vmatprep.subr.mxu0 0.0
        %1537 = vmatpush1.msra.mxu0 0.0
        %1538 = vmatprep.subr.mxu0 0.0
        %1539 = vmatpush1.msra.mxu0 0.0
        %1540 = vmatprep.subr.mxu0 0.0
        %1541 = vmatpush1.msra.mxu0 0.0
        %1542 = vmatprep.subr.mxu0 0.0
        %1543 = vmatpush1.msra.mxu0 0.0
        %1544 = vmatprep.subr.mxu0 0.0
        %1545 = vmatpush1.msra.mxu0 0.0
        %1546 = vmatprep.subr.mxu0 0.0
        %1547 = vmatpush1.msra.mxu0 0.0
        %1548 = vmatprep.subr.mxu0 0.0
        %1549 = vmatpush1.msra.mxu0 0.0
        %1550 = vmatprep.subr.mxu0 0.0
        %1551 = vmatpush1.msra.mxu0 0.0
        %1552 = vmatprep.subr.mxu0 0.0
        %1553 = vmatpush1.msra.mxu0 0.0
        %1554 = vmatprep.subr.mxu0 0.0
        %1555 = vmatpush1.msra.mxu0 0.0
        %1556 = vmatprep.subr.mxu0 0.0
        %1557 = vmatpush1.msra.mxu0 0.0
        %1558 = vmatprep.subr.mxu0 0.0
        %1559 = vmatpush1.msra.mxu0 0.0
        %1560 = vmatprep.subr.mxu0 0.0
        %1561 = vmatpush1.msra.mxu0 0.0
        %1562 = vmatprep.subr.mxu0 0.0
        %1563 = vmatpush1.msra.mxu0 0.0
        %1564 = vmatprep.mubr.f32.mxu0 0.0
        %1565 = vmatmul.mubr.f32.gmra.mrb[0].mxu0 %v1493
        %v1566 = vpop.f32.mrb[0].mxu0
        %v1567 = vadd.f32 %v1484, %v1566
        %v1568 = vpop.f32.mrb[0].mxu0
        %1569 = vmatprep.mubr.f32.mxu0 0.0
        %1570 = vmatmul.mubr.f32.gmra.mrb[0].mxu0 %v1496
        %v1571 = vpop.f32.mrb[0].mxu0
        %v1572 = vadd.f32 %v1489, %v1571
        %v1573 = vpop.f32.mrb[0].mxu0
        %1574 = vdwg.mxu0
        %s1575 = scalar_lea.vmem [#allocation4], 80
        %v1576 = vld [vmem:[%s1575] sm:$0xff]
        %v1577 = vld [vmem:[%s1575 + $0x8] sm:$0xf]
        %1578 = vrot.lane.b32.xlu0 %v1388, 126
        %v1579 = vpop.permute.xlu0 %1578
        %1580 = vrot.lane.b32.xlu0 %v1393, 126
        %v1581 = vpop.permute.xlu0 %1580
        %v1584 = vsel %vm1038, %v1576, 0
        %v1587 = vsel %vm1038, %v1577, 0
        %v1589 = vsel %vm1045, %v1581, 0
        %1591 = vmatprep.subr.mxu0 0.0
        %1592 = vmatpush1.msra.mxu0 %v1579
        %1593 = vmatprep.subr.mxu0 0.0
        %1594 = vmatpush1.msra.mxu0 %v1589
        %1595 = vmatprep.subr.mxu0 0.0
        %1596 = vmatpush1.msra.mxu0 0.0
        %1597 = vmatprep.subr.mxu0 0.0
        %1598 = vmatpush1.msra.mxu0 0.0
        %1599 = vmatprep.subr.mxu0 0.0
        %1600 = vmatpush1.msra.mxu0 0.0
        %1601 = vmatprep.subr.mxu0 0.0
        %1602 = vmatpush1.msra.mxu0 0.0
        %1603 = vmatprep.subr.mxu0 0.0
        %1604 = vmatpush1.msra.mxu0 0.0
        %1605 = vmatprep.subr.mxu0 0.0
        %1606 = vmatpush1.msra.mxu0 0.0
        %1607 = vmatprep.subr.mxu0 0.0
        %1608 = vmatpush1.msra.mxu0 0.0
        %1609 = vmatprep.subr.mxu0 0.0
        %1610 = vmatpush1.msra.mxu0 0.0
        %1611 = vmatprep.subr.mxu0 0.0
        %1612 = vmatpush1.msra.mxu0 0.0
        %1613 = vmatprep.subr.mxu0 0.0
        %1614 = vmatpush1.msra.mxu0 0.0
        %1615 = vmatprep.subr.mxu0 0.0
        %1616 = vmatpush1.msra.mxu0 0.0
        %1617 = vmatprep.subr.mxu0 0.0
        %1618 = vmatpush1.msra.mxu0 0.0
        %1619 = vmatprep.subr.mxu0 0.0
        %1620 = vmatpush1.msra.mxu0 0.0
        %1621 = vmatprep.subr.mxu0 0.0
        %1622 = vmatpush1.msra.mxu0 0.0
        %1623 = vmatprep.subr.mxu0 0.0
        %1624 = vmatpush1.msra.mxu0 0.0
        %1625 = vmatprep.subr.mxu0 0.0
        %1626 = vmatpush1.msra.mxu0 0.0
        %1627 = vmatprep.subr.mxu0 0.0
        %1628 = vmatpush1.msra.mxu0 0.0
        %1629 = vmatprep.subr.mxu0 0.0
        %1630 = vmatpush1.msra.mxu0 0.0
        %1631 = vmatprep.subr.mxu0 0.0
        %1632 = vmatpush1.msra.mxu0 0.0
        %1633 = vmatprep.subr.mxu0 0.0
        %1634 = vmatpush1.msra.mxu0 0.0
        %1635 = vmatprep.subr.mxu0 0.0
        %1636 = vmatpush1.msra.mxu0 0.0
        %1637 = vmatprep.subr.mxu0 0.0
        %1638 = vmatpush1.msra.mxu0 0.0
        %1639 = vmatprep.subr.mxu0 0.0
        %1640 = vmatpush1.msra.mxu0 0.0
        %1641 = vmatprep.subr.mxu0 0.0
        %1642 = vmatpush1.msra.mxu0 0.0
        %1643 = vmatprep.subr.mxu0 0.0
        %1644 = vmatpush1.msra.mxu0 0.0
        %1645 = vmatprep.subr.mxu0 0.0
        %1646 = vmatpush1.msra.mxu0 0.0
        %1647 = vmatprep.subr.mxu0 0.0
        %1648 = vmatpush1.msra.mxu0 0.0
        %1649 = vmatprep.subr.mxu0 0.0
        %1650 = vmatpush1.msra.mxu0 0.0
        %1651 = vmatprep.subr.mxu0 0.0
        %1652 = vmatpush1.msra.mxu0 0.0
        %1653 = vmatprep.subr.mxu0 0.0
        %1654 = vmatpush1.msra.mxu0 0.0
        %1655 = vmatprep.mubr.f32.mxu0 0.0
        %1656 = vmatmul.mubr.f32.gmra.mrb[0].mxu0 %v1584
        %v1657 = vpop.f32.mrb[0].mxu0
        %v1658 = vadd.f32 0.0, %v1657
        %v1659 = vpop.f32.mrb[0].mxu0
        %1660 = vmatprep.mubr.f32.mxu0 0.0
        %1661 = vmatmul.mubr.f32.gmra.mrb[0].mxu0 %v1587
        %v1662 = vpop.f32.mrb[0].mxu0
        %v1663 = vadd.f32 0.0, %v1662
        %v1664 = vpop.f32.mrb[0].mxu0
        %1665 = vdwg.mxu0
        %v1666 = vadd.f32 %v1567, %v1658
        %v1667 = vadd.f32 %v1572, %v1663
        %s1668 = scalar_lea.vmem %s4, 16
        %v1669 = vld [vmem:[%s1668] sm:$0xff]
        %v1670 = vld [vmem:[%s1668 + $0x8] sm:$0xf]
        %1672 = vset.pattern.permute.xlu0 0
        %1673 = vperm.xlu0 %1672, %v1669
        %v1674 = vpop.permute.xlu0 %1673
        %1677 = vset.pattern.permute.xlu0 0
        %1678 = vperm.xlu0 %1677, %v1670
        %v1679 = vpop.permute.xlu0 %1678
        %v1681 = vadd.f32 %v1666, %v1674
        %v1682 = vadd.f32 %v1667, %v1679
        %v1683 = vtanh.pop %v1681
        %v1684 = vtanh.pop %v1682
        %v1686 = vsel %vm684, %v1683, 0
        %v1689 = vsel %vm684, %v1684, 0
        %1691 = vmatprep.subr.mxu0 0.0
        %1692 = vmatpush1.msra.mxu0 %v599
        %1693 = vmatprep.subr.mxu0 0.0
        %1694 = vmatpush1.msra.mxu0 %v600
        %1695 = vmatprep.subr.mxu0 0.0
        %1696 = vmatpush1.msra.mxu0 %v601
        %1697 = vmatprep.subr.mxu0 0.0
        %1698 = vmatpush1.msra.mxu0 %v602
        %1699 = vmatprep.subr.mxu0 0.0
        %1700 = vmatpush1.msra.mxu0 %v603
        %1701 = vmatprep.subr.mxu0 0.0
        %1702 = vmatpush1.msra.mxu0 %v604
        %1703 = vmatprep.subr.mxu0 0.0
        %1704 = vmatpush1.msra.mxu0 %v605
        %1705 = vmatprep.subr.mxu0 0.0
        %1706 = vmatpush1.msra.mxu0 %v606
        %1707 = vmatprep.subr.mxu0 0.0
        %1708 = vmatpush1.msra.mxu0 %v607
        %1709 = vmatprep.subr.mxu0 0.0
        %1710 = vmatpush1.msra.mxu0 %v608
        %1711 = vmatprep.subr.mxu0 0.0
        %1712 = vmatpush1.msra.mxu0 %v609
        %1713 = vmatprep.subr.mxu0 0.0
        %1714 = vmatpush1.msra.mxu0 %v610
        %1715 = vmatprep.subr.mxu0 0.0
        %1716 = vmatpush1.msra.mxu0 %v611
        %1717 = vmatprep.subr.mxu0 0.0
        %1718 = vmatpush1.msra.mxu0 %v612
        %1719 = vmatprep.subr.mxu0 0.0
        %1720 = vmatpush1.msra.mxu0 %v613
        %1721 = vmatprep.subr.mxu0 0.0
        %1722 = vmatpush1.msra.mxu0 0.0
        %1723 = vmatprep.subr.mxu0 0.0
        %1724 = vmatpush1.msra.mxu0 0.0
        %1725 = vmatprep.subr.mxu0 0.0
        %1726 = vmatpush1.msra.mxu0 0.0
        %1727 = vmatprep.subr.mxu0 0.0
        %1728 = vmatpush1.msra.mxu0 0.0
        %1729 = vmatprep.subr.mxu0 0.0
        %1730 = vmatpush1.msra.mxu0 0.0
        %1731 = vmatprep.subr.mxu0 0.0
        %1732 = vmatpush1.msra.mxu0 0.0
        %1733 = vmatprep.subr.mxu0 0.0
        %1734 = vmatpush1.msra.mxu0 0.0
        %1735 = vmatprep.subr.mxu0 0.0
        %1736 = vmatpush1.msra.mxu0 0.0
        %1737 = vmatprep.subr.mxu0 0.0
        %1738 = vmatpush1.msra.mxu0 0.0
        %1739 = vmatprep.subr.mxu0 0.0
        %1740 = vmatpush1.msra.mxu0 0.0
        %1741 = vmatprep.subr.mxu0 0.0
        %1742 = vmatpush1.msra.mxu0 0.0
        %1743 = vmatprep.subr.mxu0 0.0
        %1744 = vmatpush1.msra.mxu0 0.0
        %1745 = vmatprep.subr.mxu0 0.0
        %1746 = vmatpush1.msra.mxu0 0.0
        %1747 = vmatprep.subr.mxu0 0.0
        %1748 = vmatpush1.msra.mxu0 0.0
        %1749 = vmatprep.subr.mxu0 0.0
        %1750 = vmatpush1.msra.mxu0 0.0
        %1751 = vmatprep.subr.mxu0 0.0
        %1752 = vmatpush1.msra.mxu0 0.0
        %1753 = vmatprep.subr.mxu0 0.0
        %1754 = vmatpush1.msra.mxu0 0.0
        %1755 = vmatprep.mubr.f32.mxu0 0.0
        %1756 = vmatmul.mubr.f32.gmra.mrb[0].mxu0 %v1686
        %v1757 = vpop.f32.mrb[0].mxu0
        %v1758 = vadd.f32 0.0, %v1757
        %v1759 = vpop.f32.mrb[0].mxu0
        %1760 = vmatprep.mubr.f32.mxu0 0.0
        %1761 = vmatmul.mubr.f32.gmra.mrb[0].mxu0 %v1689
        %v1762 = vpop.f32.mrb[0].mxu0
        %v1763 = vadd.f32 0.0, %v1762
        %v1764 = vpop.f32.mrb[0].mxu0
        %1765 = vdwg.mxu0
        %s1766 = scalar_lea.vmem [#allocation4], 96
        %v1767 = vld [vmem:[%s1766] sm:$0xff]
        %v1768 = vld [vmem:[%s1766 + $0x8] sm:$0xf]
        %s1769 = scalar_lea.vmem [#allocation4], 112
        %v1770 = vld [vmem:[%s1769] sm:$0xff]
        %v1771 = vld [vmem:[%s1769 + $0x8] sm:$0xf]
        %1774 = vrot.lane.b32.xlu0 %v1758, 127
        %v1775 = vpop.permute.xlu0 %1774
        %1776 = vrot.lane.b32.xlu0 %v1763, 127
        %v1777 = vpop.permute.xlu0 %1776
        %v1780 = vsel %vm1038, %v1770, 0
        %v1783 = vsel %vm1038, %v1771, 0
        %v1785 = vsel %vm1045, %v1777, 0
        %1787 = vmatprep.subr.mxu0 0.0
        %1788 = vmatpush1.msra.mxu0 %v1775
        %1789 = vmatprep.subr.mxu0 0.0
        %1790 = vmatpush1.msra.mxu0 %v1785
        %1791 = vmatprep.subr.mxu0 0.0
        %1792 = vmatpush1.msra.mxu0 0.0
        %1793 = vmatprep.subr.mxu0 0.0
        %1794 = vmatpush1.msra.mxu0 0.0
        %1795 = vmatprep.subr.mxu0 0.0
        %1796 = vmatpush1.msra.mxu0 0.0
        %1797 = vmatprep.subr.mxu0 0.0
        %1798 = vmatpush1.msra.mxu0 0.0
        %1799 = vmatprep.subr.mxu0 0.0
        %1800 = vmatpush1.msra.mxu0 0.0
        %1801 = vmatprep.subr.mxu0 0.0
        %1802 = vmatpush1.msra.mxu0 0.0
        %1803 = vmatprep.subr.mxu0 0.0
        %1804 = vmatpush1.msra.mxu0 0.0
        %1805 = vmatprep.subr.mxu0 0.0
        %1806 = vmatpush1.msra.mxu0 0.0
        %1807 = vmatprep.subr.mxu0 0.0
        %1808 = vmatpush1.msra.mxu0 0.0
        %1809 = vmatprep.subr.mxu0 0.0
        %1810 = vmatpush1.msra.mxu0 0.0
        %1811 = vmatprep.subr.mxu0 0.0
        %1812 = vmatpush1.msra.mxu0 0.0
        %1813 = vmatprep.subr.mxu0 0.0
        %1814 = vmatpush1.msra.mxu0 0.0
        %1815 = vmatprep.subr.mxu0 0.0
        %1816 = vmatpush1.msra.mxu0 0.0
        %1817 = vmatprep.subr.mxu0 0.0
        %1818 = vmatpush1.msra.mxu0 0.0
        %1819 = vmatprep.subr.mxu0 0.0
        %1820 = vmatpush1.msra.mxu0 0.0
        %1821 = vmatprep.subr.mxu0 0.0
        %1822 = vmatpush1.msra.mxu0 0.0
        %1823 = vmatprep.subr.mxu0 0.0
        %1824 = vmatpush1.msra.mxu0 0.0
        %1825 = vmatprep.subr.mxu0 0.0
        %1826 = vmatpush1.msra.mxu0 0.0
        %1827 = vmatprep.subr.mxu0 0.0
        %1828 = vmatpush1.msra.mxu0 0.0
        %1829 = vmatprep.subr.mxu0 0.0
        %1830 = vmatpush1.msra.mxu0 0.0
        %1831 = vmatprep.subr.mxu0 0.0
        %1832 = vmatpush1.msra.mxu0 0.0
        %1833 = vmatprep.subr.mxu0 0.0
        %1834 = vmatpush1.msra.mxu0 0.0
        %1835 = vmatprep.subr.mxu0 0.0
        %1836 = vmatpush1.msra.mxu0 0.0
        %1837 = vmatprep.subr.mxu0 0.0
        %1838 = vmatpush1.msra.mxu0 0.0
        %1839 = vmatprep.subr.mxu0 0.0
        %1840 = vmatpush1.msra.mxu0 0.0
        %1841 = vmatprep.subr.mxu0 0.0
        %1842 = vmatpush1.msra.mxu0 0.0
        %1843 = vmatprep.subr.mxu0 0.0
        %1844 = vmatpush1.msra.mxu0 0.0
        %1845 = vmatprep.subr.mxu0 0.0
        %1846 = vmatpush1.msra.mxu0 0.0
        %1847 = vmatprep.subr.mxu0 0.0
        %1848 = vmatpush1.msra.mxu0 0.0
        %1849 = vmatprep.subr.mxu0 0.0
        %1850 = vmatpush1.msra.mxu0 0.0
        %1851 = vmatprep.mubr.f32.mxu0 0.0
        %1852 = vmatmul.mubr.f32.gmra.mrb[0].mxu0 %v1780
        %v1853 = vpop.f32.mrb[0].mxu0
        %v1854 = vadd.f32 0.0, %v1853
        %v1855 = vpop.f32.mrb[0].mxu0
        %1856 = vmatprep.mubr.f32.mxu0 0.0
        %1857 = vmatmul.mubr.f32.gmra.mrb[0].mxu0 %v1783
        %v1858 = vpop.f32.mrb[0].mxu0
        %v1859 = vadd.f32 0.0, %v1858
        %v1860 = vpop.f32.mrb[0].mxu0
        %1861 = vdwg.mxu0
        %v1863 = vsel %vm1038, %v1767, 0
        %v1866 = vsel %vm1038, %v1768, 0
        %v1868 = vsel %vm1045, %v1763, 0
        %1870 = vmatprep.subr.mxu0 0.0
        %1871 = vmatpush1.msra.mxu0 %v1758
        %1872 = vmatprep.subr.mxu0 0.0
        %1873 = vmatpush1.msra.mxu0 %v1868
        %1874 = vmatprep.subr.mxu0 0.0
        %1875 = vmatpush1.msra.mxu0 0.0
        %1876 = vmatprep.subr.mxu0 0.0
        %1877 = vmatpush1.msra.mxu0 0.0
        %1878 = vmatprep.subr.mxu0 0.0
        %1879 = vmatpush1.msra.mxu0 0.0
        %1880 = vmatprep.subr.mxu0 0.0
        %1881 = vmatpush1.msra.mxu0 0.0
        %1882 = vmatprep.subr.mxu0 0.0
        %1883 = vmatpush1.msra.mxu0 0.0
        %1884 = vmatprep.subr.mxu0 0.0
        %1885 = vmatpush1.msra.mxu0 0.0
        %1886 = vmatprep.subr.mxu0 0.0
        %1887 = vmatpush1.msra.mxu0 0.0
        %1888 = vmatprep.subr.mxu0 0.0
        %1889 = vmatpush1.msra.mxu0 0.0
        %1890 = vmatprep.subr.mxu0 0.0
        %1891 = vmatpush1.msra.mxu0 0.0
        %1892 = vmatprep.subr.mxu0 0.0
        %1893 = vmatpush1.msra.mxu0 0.0
        %1894 = vmatprep.subr.mxu0 0.0
        %1895 = vmatpush1.msra.mxu0 0.0
        %1896 = vmatprep.subr.mxu0 0.0
        %1897 = vmatpush1.msra.mxu0 0.0
        %1898 = vmatprep.subr.mxu0 0.0
        %1899 = vmatpush1.msra.mxu0 0.0
        %1900 = vmatprep.subr.mxu0 0.0
        %1901 = vmatpush1.msra.mxu0 0.0
        %1902 = vmatprep.subr.mxu0 0.0
        %1903 = vmatpush1.msra.mxu0 0.0
        %1904 = vmatprep.subr.mxu0 0.0
        %1905 = vmatpush1.msra.mxu0 0.0
        %1906 = vmatprep.subr.mxu0 0.0
        %1907 = vmatpush1.msra.mxu0 0.0
        %1908 = vmatprep.subr.mxu0 0.0
        %1909 = vmatpush1.msra.mxu0 0.0
        %1910 = vmatprep.subr.mxu0 0.0
        %1911 = vmatpush1.msra.mxu0 0.0
        %1912 = vmatprep.subr.mxu0 0.0
        %1913 = vmatpush1.msra.mxu0 0.0
        %1914 = vmatprep.subr.mxu0 0.0
        %1915 = vmatpush1.msra.mxu0 0.0
        %1916 = vmatprep.subr.mxu0 0.0
        %1917 = vmatpush1.msra.mxu0 0.0
        %1918 = vmatprep.subr.mxu0 0.0
        %1919 = vmatpush1.msra.mxu0 0.0
        %1920 = vmatprep.subr.mxu0 0.0
        %1921 = vmatpush1.msra.mxu0 0.0
        %1922 = vmatprep.subr.mxu0 0.0
        %1923 = vmatpush1.msra.mxu0 0.0
        %1924 = vmatprep.subr.mxu0 0.0
        %1925 = vmatpush1.msra.mxu0 0.0
        %1926 = vmatprep.subr.mxu0 0.0
        %1927 = vmatpush1.msra.mxu0 0.0
        %1928 = vmatprep.subr.mxu0 0.0
        %1929 = vmatpush1.msra.mxu0 0.0
        %1930 = vmatprep.subr.mxu0 0.0
        %1931 = vmatpush1.msra.mxu0 0.0
        %1932 = vmatprep.subr.mxu0 0.0
        %1933 = vmatpush1.msra.mxu0 0.0
        %1934 = vmatprep.mubr.f32.mxu0 0.0
        %1935 = vmatmul.mubr.f32.gmra.mrb[0].mxu0 %v1863
        %v1936 = vpop.f32.mrb[0].mxu0
        %v1937 = vadd.f32 %v1854, %v1936
        %v1938 = vpop.f32.mrb[0].mxu0
        %1939 = vmatprep.mubr.f32.mxu0 0.0
        %1940 = vmatmul.mubr.f32.gmra.mrb[0].mxu0 %v1866
        %v1941 = vpop.f32.mrb[0].mxu0
        %v1942 = vadd.f32 %v1859, %v1941
        %v1943 = vpop.f32.mrb[0].mxu0
        %1944 = vdwg.mxu0
        %s1945 = scalar_lea.vmem [#allocation4], 128
        %v1946 = vld [vmem:[%s1945] sm:$0xff]
        %v1947 = vld [vmem:[%s1945 + $0x8] sm:$0xf]
        %1948 = vrot.lane.b32.xlu0 %v1758, 126
        %v1949 = vpop.permute.xlu0 %1948
        %1950 = vrot.lane.b32.xlu0 %v1763, 126
        %v1951 = vpop.permute.xlu0 %1950
        %v1954 = vsel %vm1038, %v1946, 0
        %v1957 = vsel %vm1038, %v1947, 0
        %v1959 = vsel %vm1045, %v1951, 0
        %1961 = vmatprep.subr.mxu0 0.0
        %1962 = vmatpush1.msra.mxu0 %v1949
        %1963 = vmatprep.subr.mxu0 0.0
        %1964 = vmatpush1.msra.mxu0 %v1959
        %1965 = vmatprep.subr.mxu0 0.0
        %1966 = vmatpush1.msra.mxu0 0.0
        %1967 = vmatprep.subr.mxu0 0.0
        %1968 = vmatpush1.msra.mxu0 0.0
        %1969 = vmatprep.subr.mxu0 0.0
        %1970 = vmatpush1.msra.mxu0 0.0
        %1971 = vmatprep.subr.mxu0 0.0
        %1972 = vmatpush1.msra.mxu0 0.0
        %1973 = vmatprep.subr.mxu0 0.0
        %1974 = vmatpush1.msra.mxu0 0.0
        %1975 = vmatprep.subr.mxu0 0.0
        %1976 = vmatpush1.msra.mxu0 0.0
        %1977 = vmatprep.subr.mxu0 0.0
        %1978 = vmatpush1.msra.mxu0 0.0
        %1979 = vmatprep.subr.mxu0 0.0
        %1980 = vmatpush1.msra.mxu0 0.0
        %1981 = vmatprep.subr.mxu0 0.0
        %1982 = vmatpush1.msra.mxu0 0.0
        %1983 = vmatprep.subr.mxu0 0.0
        %1984 = vmatpush1.msra.mxu0 0.0
        %1985 = vmatprep.subr.mxu0 0.0
        %1986 = vmatpush1.msra.mxu0 0.0
        %1987 = vmatprep.subr.mxu0 0.0
        %1988 = vmatpush1.msra.mxu0 0.0
        %1989 = vmatprep.subr.mxu0 0.0
        %1990 = vmatpush1.msra.mxu0 0.0
        %1991 = vmatprep.subr.mxu0 0.0
        %1992 = vmatpush1.msra.mxu0 0.0
        %1993 = vmatprep.subr.mxu0 0.0
        %1994 = vmatpush1.msra.mxu0 0.0
        %1995 = vmatprep.subr.mxu0 0.0
        %1996 = vmatpush1.msra.mxu0 0.0
        %1997 = vmatprep.subr.mxu0 0.0
        %1998 = vmatpush1.msra.mxu0 0.0
        %1999 = vmatprep.subr.mxu0 0.0
        %2000 = vmatpush1.msra.mxu0 0.0
        %2001 = vmatprep.subr.mxu0 0.0
        %2002 = vmatpush1.msra.mxu0 0.0
        %2003 = vmatprep.subr.mxu0 0.0
        %2004 = vmatpush1.msra.mxu0 0.0
        %2005 = vmatprep.subr.mxu0 0.0
        %2006 = vmatpush1.msra.mxu0 0.0
        %2007 = vmatprep.subr.mxu0 0.0
        %2008 = vmatpush1.msra.mxu0 0.0
        %2009 = vmatprep.subr.mxu0 0.0
        %2010 = vmatpush1.msra.mxu0 0.0
        %2011 = vmatprep.subr.mxu0 0.0
        %2012 = vmatpush1.msra.mxu0 0.0
        %2013 = vmatprep.subr.mxu0 0.0
        %2014 = vmatpush1.msra.mxu0 0.0
        %2015 = vmatprep.subr.mxu0 0.0
        %2016 = vmatpush1.msra.mxu0 0.0
        %2017 = vmatprep.subr.mxu0 0.0
        %2018 = vmatpush1.msra.mxu0 0.0
        %2019 = vmatprep.subr.mxu0 0.0
        %2020 = vmatpush1.msra.mxu0 0.0
        %2021 = vmatprep.subr.mxu0 0.0
        %2022 = vmatpush1.msra.mxu0 0.0
        %2023 = vmatprep.subr.mxu0 0.0
        %2024 = vmatpush1.msra.mxu0 0.0
        %2025 = vmatprep.mubr.f32.mxu0 0.0
        %2026 = vmatmul.mubr.f32.gmra.mrb[0].mxu0 %v1954
        %v2027 = vpop.f32.mrb[0].mxu0
        %v2028 = vadd.f32 0.0, %v2027
        %v2029 = vpop.f32.mrb[0].mxu0
        %2030 = vmatprep.mubr.f32.mxu0 0.0
        %2031 = vmatmul.mubr.f32.gmra.mrb[0].mxu0 %v1957
        %v2032 = vpop.f32.mrb[0].mxu0
        %v2033 = vadd.f32 0.0, %v2032
        %v2034 = vpop.f32.mrb[0].mxu0
        %2035 = vdwg.mxu0
        %v2036 = vadd.f32 %v1937, %v2028
        %v2037 = vadd.f32 %v1942, %v2033
        %s2038 = scalar_lea.vmem %s4, 32
        %v2039 = vld [vmem:[%s2038] sm:$0xff]
        %v2040 = vld [vmem:[%s2038 + $0x8] sm:$0xf]
        %2042 = vset.pattern.permute.xlu0 0
        %2043 = vperm.xlu0 %2042, %v2039
        %v2044 = vpop.permute.xlu0 %2043
        %2047 = vset.pattern.permute.xlu0 0
        %2048 = vperm.xlu0 %2047, %v2040
        %v2049 = vpop.permute.xlu0 %2048
        %v2051 = vadd.f32 %v2036, %v2044
        %v2052 = vadd.f32 %v2037, %v2049
        %v2053 = vtanh.pop %v2051
        %v2054 = vtanh.pop %v2052
        %v2055 = vld [vmem:[#allocation9] sm:$0x7]
        %v2056 = vld [vmem:[#allocation7] sm:$0xff]
        %v2057 = vld [vmem:[#allocation7 + $0x8] sm:$0xff]
        %v2058 = vld [vmem:[#allocation7 + $0x10] sm:$0xff]
        %v2059 = vld [vmem:[#allocation7 + $0x18] sm:$0xff]
        %v2060 = vld [vmem:[#allocation7 + $0x20] sm:$0xff]
        %v2061 = vld [vmem:[#allocation7 + $0x28] sm:$0xff]
        %v2062 = vld [vmem:[#allocation7 + $0x30] sm:$0xff]
        %v2063 = vld [vmem:[#allocation7 + $0x38] sm:$0xff]
        %v2064 = vld [vmem:[#allocation7 + $0x40] sm:$0xff]
        %v2065 = vld [vmem:[#allocation7 + $0x48] sm:$0xff]
        %v2066 = vld [vmem:[#allocation7 + $0x50] sm:$0xff]
        %v2067 = vld [vmem:[#allocation7 + $0x58] sm:$0xff]
        %v2068 = vld [vmem:[#allocation7 + $0x60] sm:$0xff]
        %v2069 = vld [vmem:[#allocation7 + $0x68] sm:$0xff]
        %v2070 = vld [vmem:[#allocation7 + $0x70] sm:$0xff]
        %v2071 = vld [vmem:[#allocation7 + $0x78] sm:$0xff]
        %v2072 = vld [vmem:[#allocation7 + $0x80] sm:$0xff]
        %v2073 = vld [vmem:[#allocation7 + $0x88] sm:$0xff]
        %v2074 = vld [vmem:[#allocation7 + $0x90] sm:$0xff]
        %v2075 = vld [vmem:[#allocation7 + $0x98] sm:$0xff]
        %v2076 = vld [vmem:[#allocation7 + $0xa0] sm:$0xff]
        %v2077 = vld [vmem:[#allocation7 + $0xa8] sm:$0xff]
        %v2078 = vld [vmem:[#allocation7 + $0xb0] sm:$0xff]
        %v2079 = vld [vmem:[#allocation7 + $0xb8] sm:$0xff]
        %v2080 = vld [vmem:[#allocation7 + $0xc0] sm:$0xff]
        %v2081 = vld [vmem:[#allocation7 + $0xc8] sm:$0xff]
        %v2082 = vld [vmem:[#allocation7 + $0xd0] sm:$0xff]
        %v2083 = vld [vmem:[#allocation7 + $0xd8] sm:$0xff]
        %v2084 = vld [vmem:[#allocation7 + $0xe0] sm:$0xff]
        %v2085 = vld [vmem:[#allocation7 + $0xe8] sm:$0xff]
        %v2086 = vld [vmem:[#allocation7 + $0xf0] sm:$0xff]
        %v2087 = vld [vmem:[#allocation7 + $0xf8] sm:$0xff]
        %v2088 = vld [vmem:[#allocation7 + $0x100] sm:$0xff]
        %v2089 = vld [vmem:[#allocation7 + $0x108] sm:$0xff]
        %v2090 = vld [vmem:[#allocation7 + $0x110] sm:$0xff]
        %v2091 = vld [vmem:[#allocation7 + $0x118] sm:$0xff]
        %v2092 = vld [vmem:[#allocation7 + $0x120] sm:$0xff]
        %v2093 = vld [vmem:[#allocation7 + $0x128] sm:$0xff]
        %v2094 = vld [vmem:[#allocation7 + $0x130] sm:$0xff]
        %v2095 = vld [vmem:[#allocation7 + $0x138] sm:$0xff]
        %v2096 = vld [vmem:[#allocation7 + $0x140] sm:$0xff]
        %v2097 = vld [vmem:[#allocation7 + $0x148] sm:$0xff]
        %v2098 = vld [vmem:[#allocation7 + $0x150] sm:$0xff]
        %v2099 = vld [vmem:[#allocation7 + $0x158] sm:$0xff]
        %v2100 = vld [vmem:[#allocation7 + $0x160] sm:$0xff]
        %v2102 = vsel %vm684, %v2053, 0
        %2104 = vmatprep.subr.mxu0 %v2057
        %2105 = vmatpush1.msra.mxu0 %v2056
        %2106 = vmatprep.subr.mxu0 %v2060
        %2107 = vmatpush1.msra.mxu0 %v2059
        %2108 = vmatprep.subr.mxu0 %v2063
        %2109 = vmatpush1.msra.mxu0 %v2062
        %2110 = vmatprep.subr.mxu0 %v2066
        %2111 = vmatpush1.msra.mxu0 %v2065
        %2112 = vmatprep.subr.mxu0 %v2069
        %2113 = vmatpush1.msra.mxu0 %v2068
        %2114 = vmatprep.subr.mxu0 %v2072
        %2115 = vmatpush1.msra.mxu0 %v2071
        %2116 = vmatprep.subr.mxu0 %v2075
        %2117 = vmatpush1.msra.mxu0 %v2074
        %2118 = vmatprep.subr.mxu0 %v2078
        %2119 = vmatpush1.msra.mxu0 %v2077
        %2120 = vmatprep.subr.mxu0 %v2081
        %2121 = vmatpush1.msra.mxu0 %v2080
        %2122 = vmatprep.subr.mxu0 %v2084
        %2123 = vmatpush1.msra.mxu0 %v2083
        %2124 = vmatprep.subr.mxu0 %v2087
        %2125 = vmatpush1.msra.mxu0 %v2086
        %2126 = vmatprep.subr.mxu0 %v2090
        %2127 = vmatpush1.msra.mxu0 %v2089
        %2128 = vmatprep.subr.mxu0 %v2093
        %2129 = vmatpush1.msra.mxu0 %v2092
        %2130 = vmatprep.subr.mxu0 %v2096
        %2131 = vmatpush1.msra.mxu0 %v2095
        %2132 = vmatprep.subr.mxu0 %v2099
        %2133 = vmatpush1.msra.mxu0 %v2098
        %2134 = vmatprep.subr.mxu0 0.0
        %2135 = vmatpush1.msra.mxu0 0.0
        %2136 = vmatprep.subr.mxu0 0.0
        %2137 = vmatpush1.msra.mxu0 0.0
        %2138 = vmatprep.subr.mxu0 0.0
        %2139 = vmatpush1.msra.mxu0 0.0
        %2140 = vmatprep.subr.mxu0 0.0
        %2141 = vmatpush1.msra.mxu0 0.0
        %2142 = vmatprep.subr.mxu0 0.0
        %2143 = vmatpush1.msra.mxu0 0.0
        %2144 = vmatprep.subr.mxu0 0.0
        %2145 = vmatpush1.msra.mxu0 0.0
        %2146 = vmatprep.subr.mxu0 0.0
        %2147 = vmatpush1.msra.mxu0 0.0
        %2148 = vmatprep.subr.mxu0 0.0
        %2149 = vmatpush1.msra.mxu0 0.0
        %2150 = vmatprep.subr.mxu0 0.0
        %2151 = vmatpush1.msra.mxu0 0.0
        %2152 = vmatprep.subr.mxu0 0.0
        %2153 = vmatpush1.msra.mxu0 0.0
        %2154 = vmatprep.subr.mxu0 0.0
        %2155 = vmatpush1.msra.mxu0 0.0
        %2156 = vmatprep.subr.mxu0 0.0
        %2157 = vmatpush1.msra.mxu0 0.0
        %2158 = vmatprep.subr.mxu0 0.0
        %2159 = vmatpush1.msra.mxu0 0.0
        %2160 = vmatprep.subr.mxu0 0.0
        %2161 = vmatpush1.msra.mxu0 0.0
        %2162 = vmatprep.subr.mxu0 0.0
        %2163 = vmatpush1.msra.mxu0 0.0
        %2164 = vmatprep.subr.mxu0 0.0
        %2165 = vmatpush1.msra.mxu0 0.0
        %2166 = vmatprep.subr.mxu0 0.0
        %2167 = vmatpush1.msra.mxu0 0.0
        %2168 = vmatprep.mubr.f32.mxu0 0.0
        %2169 = vmatmul.mubr.f32.gmra.mrb[0].mxu0 %v2102
        %v2170 = vpop.f32.mrb[0].mxu0
        %v2171 = vadd.f32 0.0, %v2170
        %v2172 = vpop.f32.mrb[0].mxu0
        %v2173 = vadd.f32 0.0, %v2172
        %2174 = vdwg.mxu0
        %2175 = vmatprep.subr.mxu0 0.0
        %2176 = vmatpush1.msra.mxu0 %v2058
        %2177 = vmatprep.subr.mxu0 0.0
        %2178 = vmatpush1.msra.mxu0 %v2061
        %2179 = vmatprep.subr.mxu0 0.0
        %2180 = vmatpush1.msra.mxu0 %v2064
        %2181 = vmatprep.subr.mxu0 0.0
        %2182 = vmatpush1.msra.mxu0 %v2067
        %2183 = vmatprep.subr.mxu0 0.0
        %2184 = vmatpush1.msra.mxu0 %v2070
        %2185 = vmatprep.subr.mxu0 0.0
        %2186 = vmatpush1.msra.mxu0 %v2073
        %2187 = vmatprep.subr.mxu0 0.0
        %2188 = vmatpush1.msra.mxu0 %v2076
        %2189 = vmatprep.subr.mxu0 0.0
        %2190 = vmatpush1.msra.mxu0 %v2079
        %2191 = vmatprep.subr.mxu0 0.0
        %2192 = vmatpush1.msra.mxu0 %v2082
        %2193 = vmatprep.subr.mxu0 0.0
        %2194 = vmatpush1.msra.mxu0 %v2085
        %2195 = vmatprep.subr.mxu0 0.0
        %2196 = vmatpush1.msra.mxu0 %v2088
        %2197 = vmatprep.subr.mxu0 0.0
        %2198 = vmatpush1.msra.mxu0 %v2091
        %2199 = vmatprep.subr.mxu0 0.0
        %2200 = vmatpush1.msra.mxu0 %v2094
        %2201 = vmatprep.subr.mxu0 0.0
        %2202 = vmatpush1.msra.mxu0 %v2097
        %2203 = vmatprep.subr.mxu0 0.0
        %2204 = vmatpush1.msra.mxu0 %v2100
        %2205 = vmatprep.subr.mxu0 0.0
        %2206 = vmatpush1.msra.mxu0 0.0
        %2207 = vmatprep.subr.mxu0 0.0
        %2208 = vmatpush1.msra.mxu0 0.0
        %2209 = vmatprep.subr.mxu0 0.0
        %2210 = vmatpush1.msra.mxu0 0.0
        %2211 = vmatprep.subr.mxu0 0.0
        %2212 = vmatpush1.msra.mxu0 0.0
        %2213 = vmatprep.subr.mxu0 0.0
        %2214 = vmatpush1.msra.mxu0 0.0
        %2215 = vmatprep.subr.mxu0 0.0
        %2216 = vmatpush1.msra.mxu0 0.0
        %2217 = vmatprep.subr.mxu0 0.0
        %2218 = vmatpush1.msra.mxu0 0.0
        %2219 = vmatprep.subr.mxu0 0.0
        %2220 = vmatpush1.msra.mxu0 0.0
        %2221 = vmatprep.subr.mxu0 0.0
        %2222 = vmatpush1.msra.mxu0 0.0
        %2223 = vmatprep.subr.mxu0 0.0
        %2224 = vmatpush1.msra.mxu0 0.0
        %2225 = vmatprep.subr.mxu0 0.0
        %2226 = vmatpush1.msra.mxu0 0.0
        %2227 = vmatprep.subr.mxu0 0.0
        %2228 = vmatpush1.msra.mxu0 0.0
        %2229 = vmatprep.subr.mxu0 0.0
        %2230 = vmatpush1.msra.mxu0 0.0
        %2231 = vmatprep.subr.mxu0 0.0
        %2232 = vmatpush1.msra.mxu0 0.0
        %2233 = vmatprep.subr.mxu0 0.0
        %2234 = vmatpush1.msra.mxu0 0.0
        %2235 = vmatprep.subr.mxu0 0.0
        %2236 = vmatpush1.msra.mxu0 0.0
        %2237 = vmatprep.subr.mxu0 0.0
        %2238 = vmatpush1.msra.mxu0 0.0
        %2239 = vmatprep.mubr.f32.mxu0 0.0
        %2240 = vmatmul.mubr.f32.gmra.mrb[0].mxu0 %v2102
        %v2241 = vpop.f32.mrb[0].mxu0
        %v2242 = vadd.f32 0.0, %v2241
        %v2243 = vpop.f32.mrb[0].mxu0
        %2244 = vdwg.mxu0
        %s2245 = scalar_lea.vmem [#allocation7], 360
        %v2246 = vld [vmem:[%s2245] sm:$0xff]
        %v2247 = vld [vmem:[%s2245 + $0x8] sm:$0xff]
        %v2248 = vld [vmem:[%s2245 + $0x10] sm:$0xff]
        %v2249 = vld [vmem:[%s2245 + $0x18] sm:$0xff]
        %v2250 = vld [vmem:[%s2245 + $0x20] sm:$0xff]
        %v2251 = vld [vmem:[%s2245 + $0x28] sm:$0xff]
        %v2252 = vld [vmem:[%s2245 + $0x30] sm:$0xff]
        %v2253 = vld [vmem:[%s2245 + $0x38] sm:$0xff]
        %v2254 = vld [vmem:[%s2245 + $0x40] sm:$0xff]
        %v2255 = vld [vmem:[%s2245 + $0x48] sm:$0xff]
        %v2256 = vld [vmem:[%s2245 + $0x50] sm:$0xff]
        %v2257 = vld [vmem:[%s2245 + $0x58] sm:$0xff]
        %v2258 = vld [vmem:[%s2245 + $0x60] sm:$0xff]
        %v2259 = vld [vmem:[%s2245 + $0x68] sm:$0xff]
        %v2260 = vld [vmem:[%s2245 + $0x70] sm:$0xff]
        %v2261 = vld [vmem:[%s2245 + $0x78] sm:$0xff]
        %v2262 = vld [vmem:[%s2245 + $0x80] sm:$0xff]
        %v2263 = vld [vmem:[%s2245 + $0x88] sm:$0xff]
        %v2264 = vld [vmem:[%s2245 + $0x90] sm:$0xff]
        %v2265 = vld [vmem:[%s2245 + $0x98] sm:$0xff]
        %v2266 = vld [vmem:[%s2245 + $0xa0] sm:$0xff]
        %v2267 = vld [vmem:[%s2245 + $0xa8] sm:$0xff]
        %v2268 = vld [vmem:[%s2245 + $0xb0] sm:$0xff]
        %v2269 = vld [vmem:[%s2245 + $0xb8] sm:$0xff]
        %v2270 = vld [vmem:[%s2245 + $0xc0] sm:$0xff]
        %v2271 = vld [vmem:[%s2245 + $0xc8] sm:$0xff]
        %v2272 = vld [vmem:[%s2245 + $0xd0] sm:$0xff]
        %v2273 = vld [vmem:[%s2245 + $0xd8] sm:$0xff]
        %v2274 = vld [vmem:[%s2245 + $0xe0] sm:$0xff]
        %v2275 = vld [vmem:[%s2245 + $0xe8] sm:$0xff]
        %v2276 = vld [vmem:[%s2245 + $0xf0] sm:$0xff]
        %v2277 = vld [vmem:[%s2245 + $0xf8] sm:$0xff]
        %v2278 = vld [vmem:[%s2245 + $0x100] sm:$0xff]
        %v2279 = vld [vmem:[%s2245 + $0x108] sm:$0xff]
        %v2280 = vld [vmem:[%s2245 + $0x110] sm:$0xff]
        %v2281 = vld [vmem:[%s2245 + $0x118] sm:$0xff]
        %v2282 = vld [vmem:[%s2245 + $0x120] sm:$0xff]
        %v2283 = vld [vmem:[%s2245 + $0x128] sm:$0xff]
        %v2284 = vld [vmem:[%s2245 + $0x130] sm:$0xff]
        %v2285 = vld [vmem:[%s2245 + $0x138] sm:$0xff]
        %v2286 = vld [vmem:[%s2245 + $0x140] sm:$0xff]
        %v2287 = vld [vmem:[%s2245 + $0x148] sm:$0xff]
        %v2288 = vld [vmem:[%s2245 + $0x150] sm:$0xff]
        %v2289 = vld [vmem:[%s2245 + $0x158] sm:$0xff]
        %v2290 = vld [vmem:[%s2245 + $0x160] sm:$0xff]
        %s2291 = scalar_lea.vmem [#allocation7], 720
        %v2292 = vld [vmem:[%s2291] sm:$0xff]
        %v2293 = vld [vmem:[%s2291 + $0x8] sm:$0xff]
        %v2294 = vld [vmem:[%s2291 + $0x10] sm:$0xff]
        %v2295 = vld [vmem:[%s2291 + $0x18] sm:$0xff]
        %v2296 = vld [vmem:[%s2291 + $0x20] sm:$0xff]
        %v2297 = vld [vmem:[%s2291 + $0x28] sm:$0xff]
        %v2298 = vld [vmem:[%s2291 + $0x30] sm:$0xff]
        %v2299 = vld [vmem:[%s2291 + $0x38] sm:$0xff]
        %v2300 = vld [vmem:[%s2291 + $0x40] sm:$0xff]
        %v2301 = vld [vmem:[%s2291 + $0x48] sm:$0xff]
        %v2302 = vld [vmem:[%s2291 + $0x50] sm:$0xff]
        %v2303 = vld [vmem:[%s2291 + $0x58] sm:$0xff]
        %v2304 = vld [vmem:[%s2291 + $0x60] sm:$0xff]
        %v2305 = vld [vmem:[%s2291 + $0x68] sm:$0xff]
        %v2306 = vld [vmem:[%s2291 + $0x70] sm:$0xff]
        %v2307 = vld [vmem:[%s2291 + $0x78] sm:$0xff]
        %v2308 = vld [vmem:[%s2291 + $0x80] sm:$0xff]
        %v2309 = vld [vmem:[%s2291 + $0x88] sm:$0xff]
        %v2310 = vld [vmem:[%s2291 + $0x90] sm:$0xff]
        %v2311 = vld [vmem:[%s2291 + $0x98] sm:$0xff]
        %v2312 = vld [vmem:[%s2291 + $0xa0] sm:$0xff]
        %v2313 = vld [vmem:[%s2291 + $0xa8] sm:$0xff]
        %v2314 = vld [vmem:[%s2291 + $0xb0] sm:$0xff]
        %v2315 = vld [vmem:[%s2291 + $0xb8] sm:$0xff]
        %v2316 = vld [vmem:[%s2291 + $0xc0] sm:$0xff]
        %v2317 = vld [vmem:[%s2291 + $0xc8] sm:$0xff]
        %v2318 = vld [vmem:[%s2291 + $0xd0] sm:$0xff]
        %v2319 = vld [vmem:[%s2291 + $0xd8] sm:$0xff]
        %v2320 = vld [vmem:[%s2291 + $0xe0] sm:$0xff]
        %v2321 = vld [vmem:[%s2291 + $0xe8] sm:$0xff]
        %v2322 = vld [vmem:[%s2291 + $0xf0] sm:$0xff]
        %v2323 = vld [vmem:[%s2291 + $0xf8] sm:$0xff]
        %v2324 = vld [vmem:[%s2291 + $0x100] sm:$0xff]
        %v2325 = vld [vmem:[%s2291 + $0x108] sm:$0xff]
        %v2326 = vld [vmem:[%s2291 + $0x110] sm:$0xff]
        %v2327 = vld [vmem:[%s2291 + $0x118] sm:$0xff]
        %v2328 = vld [vmem:[%s2291 + $0x120] sm:$0xff]
        %v2329 = vld [vmem:[%s2291 + $0x128] sm:$0xff]
        %v2330 = vld [vmem:[%s2291 + $0x130] sm:$0xff]
        %v2331 = vld [vmem:[%s2291 + $0x138] sm:$0xff]
        %v2332 = vld [vmem:[%s2291 + $0x140] sm:$0xff]
        %v2333 = vld [vmem:[%s2291 + $0x148] sm:$0xff]
        %v2334 = vld [vmem:[%s2291 + $0x150] sm:$0xff]
        %v2335 = vld [vmem:[%s2291 + $0x158] sm:$0xff]
        %v2336 = vld [vmem:[%s2291 + $0x160] sm:$0xff]
        %v2337 = vrot.slane %v2053, 2
        %v2338 = vsel %vm684, %v2337, 0
        %2340 = vmatprep.subr.mxu0 %v2293
        %2341 = vmatpush1.msra.mxu0 %v2292
        %2342 = vmatprep.subr.mxu0 %v2296
        %2343 = vmatpush1.msra.mxu0 %v2295
        %2344 = vmatprep.subr.mxu0 %v2299
        %2345 = vmatpush1.msra.mxu0 %v2298
        %2346 = vmatprep.subr.mxu0 %v2302
        %2347 = vmatpush1.msra.mxu0 %v2301
        %2348 = vmatprep.subr.mxu0 %v2305
        %2349 = vmatpush1.msra.mxu0 %v2304
        %2350 = vmatprep.subr.mxu0 %v2308
        %2351 = vmatpush1.msra.mxu0 %v2307
        %2352 = vmatprep.subr.mxu0 %v2311
        %2353 = vmatpush1.msra.mxu0 %v2310
        %2354 = vmatprep.subr.mxu0 %v2314
        %2355 = vmatpush1.msra.mxu0 %v2313
        %2356 = vmatprep.subr.mxu0 %v2317
        %2357 = vmatpush1.msra.mxu0 %v2316
        %2358 = vmatprep.subr.mxu0 %v2320
        %2359 = vmatpush1.msra.mxu0 %v2319
        %2360 = vmatprep.subr.mxu0 %v2323
        %2361 = vmatpush1.msra.mxu0 %v2322
        %2362 = vmatprep.subr.mxu0 %v2326
        %2363 = vmatpush1.msra.mxu0 %v2325
        %2364 = vmatprep.subr.mxu0 %v2329
        %2365 = vmatpush1.msra.mxu0 %v2328
        %2366 = vmatprep.subr.mxu0 %v2332
        %2367 = vmatpush1.msra.mxu0 %v2331
        %2368 = vmatprep.subr.mxu0 %v2335
        %2369 = vmatpush1.msra.mxu0 %v2334
        %2370 = vmatprep.subr.mxu0 0.0
        %2371 = vmatpush1.msra.mxu0 0.0
        %2372 = vmatprep.subr.mxu0 0.0
        %2373 = vmatpush1.msra.mxu0 0.0
        %2374 = vmatprep.subr.mxu0 0.0
        %2375 = vmatpush1.msra.mxu0 0.0
        %2376 = vmatprep.subr.mxu0 0.0
        %2377 = vmatpush1.msra.mxu0 0.0
        %2378 = vmatprep.subr.mxu0 0.0
        %2379 = vmatpush1.msra.mxu0 0.0
        %2380 = vmatprep.subr.mxu0 0.0
        %2381 = vmatpush1.msra.mxu0 0.0
        %2382 = vmatprep.subr.mxu0 0.0
        %2383 = vmatpush1.msra.mxu0 0.0
        %2384 = vmatprep.subr.mxu0 0.0
        %2385 = vmatpush1.msra.mxu0 0.0
        %2386 = vmatprep.subr.mxu0 0.0
        %2387 = vmatpush1.msra.mxu0 0.0
        %2388 = vmatprep.subr.mxu0 0.0
        %2389 = vmatpush1.msra.mxu0 0.0
        %2390 = vmatprep.subr.mxu0 0.0
        %2391 = vmatpush1.msra.mxu0 0.0
        %2392 = vmatprep.subr.mxu0 0.0
        %2393 = vmatpush1.msra.mxu0 0.0
        %2394 = vmatprep.subr.mxu0 0.0
        %2395 = vmatpush1.msra.mxu0 0.0
        %2396 = vmatprep.subr.mxu0 0.0
        %2397 = vmatpush1.msra.mxu0 0.0
        %2398 = vmatprep.subr.mxu0 0.0
        %2399 = vmatpush1.msra.mxu0 0.0
        %2400 = vmatprep.subr.mxu0 0.0
        %2401 = vmatpush1.msra.mxu0 0.0
        %2402 = vmatprep.subr.mxu0 0.0
        %2403 = vmatpush1.msra.mxu0 0.0
        %2404 = vmatprep.mubr.f32.mxu0 0.0
        %2405 = vmatmul.mubr.f32.gmra.mrb[0].mxu0 %v2338
        %v2406 = vpop.f32.mrb[0].mxu0
        %v2407 = vadd.f32 0.0, %v2406
        %v2408 = vpop.f32.mrb[0].mxu0
        %v2409 = vadd.f32 0.0, %v2408
        %2410 = vdwg.mxu0
        %2411 = vmatprep.subr.mxu0 0.0
        %2412 = vmatpush1.msra.mxu0 %v2294
        %2413 = vmatprep.subr.mxu0 0.0
        %2414 = vmatpush1.msra.mxu0 %v2297
        %2415 = vmatprep.subr.mxu0 0.0
        %2416 = vmatpush1.msra.mxu0 %v2300
        %2417 = vmatprep.subr.mxu0 0.0
        %2418 = vmatpush1.msra.mxu0 %v2303
        %2419 = vmatprep.subr.mxu0 0.0
        %2420 = vmatpush1.msra.mxu0 %v2306
        %2421 = vmatprep.subr.mxu0 0.0
        %2422 = vmatpush1.msra.mxu0 %v2309
        %2423 = vmatprep.subr.mxu0 0.0
        %2424 = vmatpush1.msra.mxu0 %v2312
        %2425 = vmatprep.subr.mxu0 0.0
        %2426 = vmatpush1.msra.mxu0 %v2315
        %2427 = vmatprep.subr.mxu0 0.0
        %2428 = vmatpush1.msra.mxu0 %v2318
        %2429 = vmatprep.subr.mxu0 0.0
        %2430 = vmatpush1.msra.mxu0 %v2321
        %2431 = vmatprep.subr.mxu0 0.0
        %2432 = vmatpush1.msra.mxu0 %v2324
        %2433 = vmatprep.subr.mxu0 0.0
        %2434 = vmatpush1.msra.mxu0 %v2327
        %2435 = vmatprep.subr.mxu0 0.0
        %2436 = vmatpush1.msra.mxu0 %v2330
        %2437 = vmatprep.subr.mxu0 0.0
        %2438 = vmatpush1.msra.mxu0 %v2333
        %2439 = vmatprep.subr.mxu0 0.0
        %2440 = vmatpush1.msra.mxu0 %v2336
        %2441 = vmatprep.subr.mxu0 0.0
        %2442 = vmatpush1.msra.mxu0 0.0
        %2443 = vmatprep.subr.mxu0 0.0
        %2444 = vmatpush1.msra.mxu0 0.0
        %2445 = vmatprep.subr.mxu0 0.0
        %2446 = vmatpush1.msra.mxu0 0.0
        %2447 = vmatprep.subr.mxu0 0.0
        %2448 = vmatpush1.msra.mxu0 0.0
        %2449 = vmatprep.subr.mxu0 0.0
        %2450 = vmatpush1.msra.mxu0 0.0
        %2451 = vmatprep.subr.mxu0 0.0
        %2452 = vmatpush1.msra.mxu0 0.0
        %2453 = vmatprep.subr.mxu0 0.0
        %2454 = vmatpush1.msra.mxu0 0.0
        %2455 = vmatprep.subr.mxu0 0.0
        %2456 = vmatpush1.msra.mxu0 0.0
        %2457 = vmatprep.subr.mxu0 0.0
        %2458 = vmatpush1.msra.mxu0 0.0
        %2459 = vmatprep.subr.mxu0 0.0
        %2460 = vmatpush1.msra.mxu0 0.0
        %2461 = vmatprep.subr.mxu0 0.0
        %2462 = vmatpush1.msra.mxu0 0.0
        %2463 = vmatprep.subr.mxu0 0.0
        %2464 = vmatpush1.msra.mxu0 0.0
        %2465 = vmatprep.subr.mxu0 0.0
        %2466 = vmatpush1.msra.mxu0 0.0
        %2467 = vmatprep.subr.mxu0 0.0
        %2468 = vmatpush1.msra.mxu0 0.0
        %2469 = vmatprep.subr.mxu0 0.0
        %2470 = vmatpush1.msra.mxu0 0.0
        %2471 = vmatprep.subr.mxu0 0.0
        %2472 = vmatpush1.msra.mxu0 0.0
        %2473 = vmatprep.subr.mxu0 0.0
        %2474 = vmatpush1.msra.mxu0 0.0
        %2475 = vmatprep.mubr.f32.mxu0 0.0
        %2476 = vmatmul.mubr.f32.gmra.mrb[0].mxu0 %v2338
        %v2477 = vpop.f32.mrb[0].mxu0
        %v2478 = vadd.f32 0.0, %v2477
        %v2479 = vpop.f32.mrb[0].mxu0
        %2480 = vdwg.mxu0
        %s2481 = scalar_lea.vmem [#allocation7], 1080
        %v2482 = vld [vmem:[%s2481] sm:$0xff]
        %v2483 = vld [vmem:[%s2481 + $0x8] sm:$0xff]
        %v2484 = vld [vmem:[%s2481 + $0x10] sm:$0xff]
        %v2485 = vld [vmem:[%s2481 + $0x18] sm:$0xff]
        %v2486 = vld [vmem:[%s2481 + $0x20] sm:$0xff]
        %v2487 = vld [vmem:[%s2481 + $0x28] sm:$0xff]
        %v2488 = vld [vmem:[%s2481 + $0x30] sm:$0xff]
        %v2489 = vld [vmem:[%s2481 + $0x38] sm:$0xff]
        %v2490 = vld [vmem:[%s2481 + $0x40] sm:$0xff]
        %v2491 = vld [vmem:[%s2481 + $0x48] sm:$0xff]
        %v2492 = vld [vmem:[%s2481 + $0x50] sm:$0xff]
        %v2493 = vld [vmem:[%s2481 + $0x58] sm:$0xff]
        %v2494 = vld [vmem:[%s2481 + $0x60] sm:$0xff]
        %v2495 = vld [vmem:[%s2481 + $0x68] sm:$0xff]
        %v2496 = vld [vmem:[%s2481 + $0x70] sm:$0xff]
        %v2497 = vld [vmem:[%s2481 + $0x78] sm:$0xff]
        %v2498 = vld [vmem:[%s2481 + $0x80] sm:$0xff]
        %v2499 = vld [vmem:[%s2481 + $0x88] sm:$0xff]
        %v2500 = vld [vmem:[%s2481 + $0x90] sm:$0xff]
        %v2501 = vld [vmem:[%s2481 + $0x98] sm:$0xff]
        %v2502 = vld [vmem:[%s2481 + $0xa0] sm:$0xff]
        %v2503 = vld [vmem:[%s2481 + $0xa8] sm:$0xff]
        %v2504 = vld [vmem:[%s2481 + $0xb0] sm:$0xff]
        %v2505 = vld [vmem:[%s2481 + $0xb8] sm:$0xff]
        %v2506 = vld [vmem:[%s2481 + $0xc0] sm:$0xff]
        %v2507 = vld [vmem:[%s2481 + $0xc8] sm:$0xff]
        %v2508 = vld [vmem:[%s2481 + $0xd0] sm:$0xff]
        %v2509 = vld [vmem:[%s2481 + $0xd8] sm:$0xff]
        %v2510 = vld [vmem:[%s2481 + $0xe0] sm:$0xff]
        %v2511 = vld [vmem:[%s2481 + $0xe8] sm:$0xff]
        %v2512 = vld [vmem:[%s2481 + $0xf0] sm:$0xff]
        %v2513 = vld [vmem:[%s2481 + $0xf8] sm:$0xff]
        %v2514 = vld [vmem:[%s2481 + $0x100] sm:$0xff]
        %v2515 = vld [vmem:[%s2481 + $0x108] sm:$0xff]
        %v2516 = vld [vmem:[%s2481 + $0x110] sm:$0xff]
        %v2517 = vld [vmem:[%s2481 + $0x118] sm:$0xff]
        %v2518 = vld [vmem:[%s2481 + $0x120] sm:$0xff]
        %v2519 = vld [vmem:[%s2481 + $0x128] sm:$0xff]
        %v2520 = vld [vmem:[%s2481 + $0x130] sm:$0xff]
        %v2521 = vld [vmem:[%s2481 + $0x138] sm:$0xff]
        %v2522 = vld [vmem:[%s2481 + $0x140] sm:$0xff]
        %v2523 = vld [vmem:[%s2481 + $0x148] sm:$0xff]
        %v2524 = vld [vmem:[%s2481 + $0x150] sm:$0xff]
        %v2525 = vld [vmem:[%s2481 + $0x158] sm:$0xff]
        %v2526 = vld [vmem:[%s2481 + $0x160] sm:$0xff]
        %s2527 = scalar_lea.vmem [#allocation7], 1440
        %v2528 = vld [vmem:[%s2527] sm:$0xff]
        %v2529 = vld [vmem:[%s2527 + $0x8] sm:$0xff]
        %v2530 = vld [vmem:[%s2527 + $0x10] sm:$0xff]
        %v2531 = vld [vmem:[%s2527 + $0x18] sm:$0xff]
        %v2532 = vld [vmem:[%s2527 + $0x20] sm:$0xff]
        %v2533 = vld [vmem:[%s2527 + $0x28] sm:$0xff]
        %v2534 = vld [vmem:[%s2527 + $0x30] sm:$0xff]
        %v2535 = vld [vmem:[%s2527 + $0x38] sm:$0xff]
        %v2536 = vld [vmem:[%s2527 + $0x40] sm:$0xff]
        %v2537 = vld [vmem:[%s2527 + $0x48] sm:$0xff]
        %v2538 = vld [vmem:[%s2527 + $0x50] sm:$0xff]
        %v2539 = vld [vmem:[%s2527 + $0x58] sm:$0xff]
        %v2540 = vld [vmem:[%s2527 + $0x60] sm:$0xff]
        %v2541 = vld [vmem:[%s2527 + $0x68] sm:$0xff]
        %v2542 = vld [vmem:[%s2527 + $0x70] sm:$0xff]
        %v2543 = vld [vmem:[%s2527 + $0x78] sm:$0xff]
        %v2544 = vld [vmem:[%s2527 + $0x80] sm:$0xff]
        %v2545 = vld [vmem:[%s2527 + $0x88] sm:$0xff]
        %v2546 = vld [vmem:[%s2527 + $0x90] sm:$0xff]
        %v2547 = vld [vmem:[%s2527 + $0x98] sm:$0xff]
        %v2548 = vld [vmem:[%s2527 + $0xa0] sm:$0xff]
        %v2549 = vld [vmem:[%s2527 + $0xa8] sm:$0xff]
        %v2550 = vld [vmem:[%s2527 + $0xb0] sm:$0xff]
        %v2551 = vld [vmem:[%s2527 + $0xb8] sm:$0xff]
        %v2552 = vld [vmem:[%s2527 + $0xc0] sm:$0xff]
        %v2553 = vld [vmem:[%s2527 + $0xc8] sm:$0xff]
        %v2554 = vld [vmem:[%s2527 + $0xd0] sm:$0xff]
        %v2555 = vld [vmem:[%s2527 + $0xd8] sm:$0xff]
        %v2556 = vld [vmem:[%s2527 + $0xe0] sm:$0xff]
        %v2557 = vld [vmem:[%s2527 + $0xe8] sm:$0xff]
        %v2558 = vld [vmem:[%s2527 + $0xf0] sm:$0xff]
        %v2559 = vld [vmem:[%s2527 + $0xf8] sm:$0xff]
        %v2560 = vld [vmem:[%s2527 + $0x100] sm:$0xff]
        %v2561 = vld [vmem:[%s2527 + $0x108] sm:$0xff]
        %v2562 = vld [vmem:[%s2527 + $0x110] sm:$0xff]
        %v2563 = vld [vmem:[%s2527 + $0x118] sm:$0xff]
        %v2564 = vld [vmem:[%s2527 + $0x120] sm:$0xff]
        %v2565 = vld [vmem:[%s2527 + $0x128] sm:$0xff]
        %v2566 = vld [vmem:[%s2527 + $0x130] sm:$0xff]
        %v2567 = vld [vmem:[%s2527 + $0x138] sm:$0xff]
        %v2568 = vld [vmem:[%s2527 + $0x140] sm:$0xff]
        %v2569 = vld [vmem:[%s2527 + $0x148] sm:$0xff]
        %v2570 = vld [vmem:[%s2527 + $0x150] sm:$0xff]
        %v2571 = vld [vmem:[%s2527 + $0x158] sm:$0xff]
        %v2572 = vld [vmem:[%s2527 + $0x160] sm:$0xff]
        %v2573 = vrot.slane %v2053, 4
        %v2574 = vsel %vm684, %v2573, 0
        %2576 = vmatprep.subr.mxu0 %v2529
        %2577 = vmatpush1.msra.mxu0 %v2528
        %2578 = vmatprep.subr.mxu0 %v2532
        %2579 = vmatpush1.msra.mxu0 %v2531
        %2580 = vmatprep.subr.mxu0 %v2535
        %2581 = vmatpush1.msra.mxu0 %v2534
        %2582 = vmatprep.subr.mxu0 %v2538
        %2583 = vmatpush1.msra.mxu0 %v2537
        %2584 = vmatprep.subr.mxu0 %v2541
        %2585 = vmatpush1.msra.mxu0 %v2540
        %2586 = vmatprep.subr.mxu0 %v2544
        %2587 = vmatpush1.msra.mxu0 %v2543
        %2588 = vmatprep.subr.mxu0 %v2547
        %2589 = vmatpush1.msra.mxu0 %v2546
        %2590 = vmatprep.subr.mxu0 %v2550
        %2591 = vmatpush1.msra.mxu0 %v2549
        %2592 = vmatprep.subr.mxu0 %v2553
        %2593 = vmatpush1.msra.mxu0 %v2552
        %2594 = vmatprep.subr.mxu0 %v2556
        %2595 = vmatpush1.msra.mxu0 %v2555
        %2596 = vmatprep.subr.mxu0 %v2559
        %2597 = vmatpush1.msra.mxu0 %v2558
        %2598 = vmatprep.subr.mxu0 %v2562
        %2599 = vmatpush1.msra.mxu0 %v2561
        %2600 = vmatprep.subr.mxu0 %v2565
        %2601 = vmatpush1.msra.mxu0 %v2564
        %2602 = vmatprep.subr.mxu0 %v2568
        %2603 = vmatpush1.msra.mxu0 %v2567
        %2604 = vmatprep.subr.mxu0 %v2571
        %2605 = vmatpush1.msra.mxu0 %v2570
        %2606 = vmatprep.subr.mxu0 0.0
        %2607 = vmatpush1.msra.mxu0 0.0
        %2608 = vmatprep.subr.mxu0 0.0
        %2609 = vmatpush1.msra.mxu0 0.0
        %2610 = vmatprep.subr.mxu0 0.0
        %2611 = vmatpush1.msra.mxu0 0.0
        %2612 = vmatprep.subr.mxu0 0.0
        %2613 = vmatpush1.msra.mxu0 0.0
        %2614 = vmatprep.subr.mxu0 0.0
        %2615 = vmatpush1.msra.mxu0 0.0
        %2616 = vmatprep.subr.mxu0 0.0
        %2617 = vmatpush1.msra.mxu0 0.0
        %2618 = vmatprep.subr.mxu0 0.0
        %2619 = vmatpush1.msra.mxu0 0.0
        %2620 = vmatprep.subr.mxu0 0.0
        %2621 = vmatpush1.msra.mxu0 0.0
        %2622 = vmatprep.subr.mxu0 0.0
        %2623 = vmatpush1.msra.mxu0 0.0
        %2624 = vmatprep.subr.mxu0 0.0
        %2625 = vmatpush1.msra.mxu0 0.0
        %2626 = vmatprep.subr.mxu0 0.0
        %2627 = vmatpush1.msra.mxu0 0.0
        %2628 = vmatprep.subr.mxu0 0.0
        %2629 = vmatpush1.msra.mxu0 0.0
        %2630 = vmatprep.subr.mxu0 0.0
        %2631 = vmatpush1.msra.mxu0 0.0
        %2632 = vmatprep.subr.mxu0 0.0
        %2633 = vmatpush1.msra.mxu0 0.0
        %2634 = vmatprep.subr.mxu0 0.0
        %2635 = vmatpush1.msra.mxu0 0.0
        %2636 = vmatprep.subr.mxu0 0.0
        %2637 = vmatpush1.msra.mxu0 0.0
        %2638 = vmatprep.subr.mxu0 0.0
        %2639 = vmatpush1.msra.mxu0 0.0
        %2640 = vmatprep.mubr.f32.mxu0 0.0
        %2641 = vmatmul.mubr.f32.gmra.mrb[0].mxu0 %v2574
        %v2642 = vpop.f32.mrb[0].mxu0
        %v2643 = vadd.f32 0.0, %v2642
        %v2644 = vpop.f32.mrb[0].mxu0
        %v2645 = vadd.f32 0.0, %v2644
        %2646 = vdwg.mxu0
        %2647 = vmatprep.subr.mxu0 0.0
        %2648 = vmatpush1.msra.mxu0 %v2530
        %2649 = vmatprep.subr.mxu0 0.0
        %2650 = vmatpush1.msra.mxu0 %v2533
        %2651 = vmatprep.subr.mxu0 0.0
        %2652 = vmatpush1.msra.mxu0 %v2536
        %2653 = vmatprep.subr.mxu0 0.0
        %2654 = vmatpush1.msra.mxu0 %v2539
        %2655 = vmatprep.subr.mxu0 0.0
        %2656 = vmatpush1.msra.mxu0 %v2542
        %2657 = vmatprep.subr.mxu0 0.0
        %2658 = vmatpush1.msra.mxu0 %v2545
        %2659 = vmatprep.subr.mxu0 0.0
        %2660 = vmatpush1.msra.mxu0 %v2548
        %2661 = vmatprep.subr.mxu0 0.0
        %2662 = vmatpush1.msra.mxu0 %v2551
        %2663 = vmatprep.subr.mxu0 0.0
        %2664 = vmatpush1.msra.mxu0 %v2554
        %2665 = vmatprep.subr.mxu0 0.0
        %2666 = vmatpush1.msra.mxu0 %v2557
        %2667 = vmatprep.subr.mxu0 0.0
        %2668 = vmatpush1.msra.mxu0 %v2560
        %2669 = vmatprep.subr.mxu0 0.0
        %2670 = vmatpush1.msra.mxu0 %v2563
        %2671 = vmatprep.subr.mxu0 0.0
        %2672 = vmatpush1.msra.mxu0 %v2566
        %2673 = vmatprep.subr.mxu0 0.0
        %2674 = vmatpush1.msra.mxu0 %v2569
        %2675 = vmatprep.subr.mxu0 0.0
        %2676 = vmatpush1.msra.mxu0 %v2572
        %2677 = vmatprep.subr.mxu0 0.0
        %2678 = vmatpush1.msra.mxu0 0.0
        %2679 = vmatprep.subr.mxu0 0.0
        %2680 = vmatpush1.msra.mxu0 0.0
        %2681 = vmatprep.subr.mxu0 0.0
        %2682 = vmatpush1.msra.mxu0 0.0
        %2683 = vmatprep.subr.mxu0 0.0
        %2684 = vmatpush1.msra.mxu0 0.0
        %2685 = vmatprep.subr.mxu0 0.0
        %2686 = vmatpush1.msra.mxu0 0.0
        %2687 = vmatprep.subr.mxu0 0.0
        %2688 = vmatpush1.msra.mxu0 0.0
        %2689 = vmatprep.subr.mxu0 0.0
        %2690 = vmatpush1.msra.mxu0 0.0
        %2691 = vmatprep.subr.mxu0 0.0
        %2692 = vmatpush1.msra.mxu0 0.0
        %2693 = vmatprep.subr.mxu0 0.0
        %2694 = vmatpush1.msra.mxu0 0.0
        %2695 = vmatprep.subr.mxu0 0.0
        %2696 = vmatpush1.msra.mxu0 0.0
        %2697 = vmatprep.subr.mxu0 0.0
        %2698 = vmatpush1.msra.mxu0 0.0
        %2699 = vmatprep.subr.mxu0 0.0
        %2700 = vmatpush1.msra.mxu0 0.0
        %2701 = vmatprep.subr.mxu0 0.0
        %2702 = vmatpush1.msra.mxu0 0.0
        %2703 = vmatprep.subr.mxu0 0.0
        %2704 = vmatpush1.msra.mxu0 0.0
        %2705 = vmatprep.subr.mxu0 0.0
        %2706 = vmatpush1.msra.mxu0 0.0
        %2707 = vmatprep.subr.mxu0 0.0
        %2708 = vmatpush1.msra.mxu0 0.0
        %2709 = vmatprep.subr.mxu0 0.0
        %2710 = vmatpush1.msra.mxu0 0.0
        %2711 = vmatprep.mubr.f32.mxu0 0.0
        %2712 = vmatmul.mubr.f32.gmra.mrb[0].mxu0 %v2574
        %v2713 = vpop.f32.mrb[0].mxu0
        %v2714 = vadd.f32 0.0, %v2713
        %v2715 = vpop.f32.mrb[0].mxu0
        %2716 = vdwg.mxu0
        %s2717 = scalar_lea.vmem [#allocation7], 1800
        %v2718 = vld [vmem:[%s2717] sm:$0xff]
        %v2719 = vld [vmem:[%s2717 + $0x8] sm:$0xff]
        %v2720 = vld [vmem:[%s2717 + $0x10] sm:$0xff]
        %v2721 = vld [vmem:[%s2717 + $0x18] sm:$0xff]
        %v2722 = vld [vmem:[%s2717 + $0x20] sm:$0xff]
        %v2723 = vld [vmem:[%s2717 + $0x28] sm:$0xff]
        %v2724 = vld [vmem:[%s2717 + $0x30] sm:$0xff]
        %v2725 = vld [vmem:[%s2717 + $0x38] sm:$0xff]
        %v2726 = vld [vmem:[%s2717 + $0x40] sm:$0xff]
        %v2727 = vld [vmem:[%s2717 + $0x48] sm:$0xff]
        %v2728 = vld [vmem:[%s2717 + $0x50] sm:$0xff]
        %v2729 = vld [vmem:[%s2717 + $0x58] sm:$0xff]
        %v2730 = vld [vmem:[%s2717 + $0x60] sm:$0xff]
        %v2731 = vld [vmem:[%s2717 + $0x68] sm:$0xff]
        %v2732 = vld [vmem:[%s2717 + $0x70] sm:$0xff]
        %v2733 = vld [vmem:[%s2717 + $0x78] sm:$0xff]
        %v2734 = vld [vmem:[%s2717 + $0x80] sm:$0xff]
        %v2735 = vld [vmem:[%s2717 + $0x88] sm:$0xff]
        %v2736 = vld [vmem:[%s2717 + $0x90] sm:$0xff]
        %v2737 = vld [vmem:[%s2717 + $0x98] sm:$0xff]
        %v2738 = vld [vmem:[%s2717 + $0xa0] sm:$0xff]
        %v2739 = vld [vmem:[%s2717 + $0xa8] sm:$0xff]
        %v2740 = vld [vmem:[%s2717 + $0xb0] sm:$0xff]
        %v2741 = vld [vmem:[%s2717 + $0xb8] sm:$0xff]
        %v2742 = vld [vmem:[%s2717 + $0xc0] sm:$0xff]
        %v2743 = vld [vmem:[%s2717 + $0xc8] sm:$0xff]
        %v2744 = vld [vmem:[%s2717 + $0xd0] sm:$0xff]
        %v2745 = vld [vmem:[%s2717 + $0xd8] sm:$0xff]
        %v2746 = vld [vmem:[%s2717 + $0xe0] sm:$0xff]
        %v2747 = vld [vmem:[%s2717 + $0xe8] sm:$0xff]
        %v2748 = vld [vmem:[%s2717 + $0xf0] sm:$0xff]
        %v2749 = vld [vmem:[%s2717 + $0xf8] sm:$0xff]
        %v2750 = vld [vmem:[%s2717 + $0x100] sm:$0xff]
        %v2751 = vld [vmem:[%s2717 + $0x108] sm:$0xff]
        %v2752 = vld [vmem:[%s2717 + $0x110] sm:$0xff]
        %v2753 = vld [vmem:[%s2717 + $0x118] sm:$0xff]
        %v2754 = vld [vmem:[%s2717 + $0x120] sm:$0xff]
        %v2755 = vld [vmem:[%s2717 + $0x128] sm:$0xff]
        %v2756 = vld [vmem:[%s2717 + $0x130] sm:$0xff]
        %v2757 = vld [vmem:[%s2717 + $0x138] sm:$0xff]
        %v2758 = vld [vmem:[%s2717 + $0x140] sm:$0xff]
        %v2759 = vld [vmem:[%s2717 + $0x148] sm:$0xff]
        %v2760 = vld [vmem:[%s2717 + $0x150] sm:$0xff]
        %v2761 = vld [vmem:[%s2717 + $0x158] sm:$0xff]
        %v2762 = vld [vmem:[%s2717 + $0x160] sm:$0xff]
        %s2763 = scalar_lea.vmem [#allocation7], 2160
        %v2764 = vld [vmem:[%s2763] sm:$0xff]
        %v2765 = vld [vmem:[%s2763 + $0x8] sm:$0xff]
        %v2766 = vld [vmem:[%s2763 + $0x10] sm:$0xff]
        %v2767 = vld [vmem:[%s2763 + $0x18] sm:$0xff]
        %v2768 = vld [vmem:[%s2763 + $0x20] sm:$0xff]
        %v2769 = vld [vmem:[%s2763 + $0x28] sm:$0xff]
        %v2770 = vld [vmem:[%s2763 + $0x30] sm:$0xff]
        %v2771 = vld [vmem:[%s2763 + $0x38] sm:$0xff]
        %v2772 = vld [vmem:[%s2763 + $0x40] sm:$0xff]
        %v2773 = vld [vmem:[%s2763 + $0x48] sm:$0xff]
        %v2774 = vld [vmem:[%s2763 + $0x50] sm:$0xff]
        %v2775 = vld [vmem:[%s2763 + $0x58] sm:$0xff]
        %v2776 = vld [vmem:[%s2763 + $0x60] sm:$0xff]
        %v2777 = vld [vmem:[%s2763 + $0x68] sm:$0xff]
        %v2778 = vld [vmem:[%s2763 + $0x70] sm:$0xff]
        %v2779 = vld [vmem:[%s2763 + $0x78] sm:$0xff]
        %v2780 = vld [vmem:[%s2763 + $0x80] sm:$0xff]
        %v2781 = vld [vmem:[%s2763 + $0x88] sm:$0xff]
        %v2782 = vld [vmem:[%s2763 + $0x90] sm:$0xff]
        %v2783 = vld [vmem:[%s2763 + $0x98] sm:$0xff]
        %v2784 = vld [vmem:[%s2763 + $0xa0] sm:$0xff]
        %v2785 = vld [vmem:[%s2763 + $0xa8] sm:$0xff]
        %v2786 = vld [vmem:[%s2763 + $0xb0] sm:$0xff]
        %v2787 = vld [vmem:[%s2763 + $0xb8] sm:$0xff]
        %v2788 = vld [vmem:[%s2763 + $0xc0] sm:$0xff]
        %v2789 = vld [vmem:[%s2763 + $0xc8] sm:$0xff]
        %v2790 = vld [vmem:[%s2763 + $0xd0] sm:$0xff]
        %v2791 = vld [vmem:[%s2763 + $0xd8] sm:$0xff]
        %v2792 = vld [vmem:[%s2763 + $0xe0] sm:$0xff]
        %v2793 = vld [vmem:[%s2763 + $0xe8] sm:$0xff]
        %v2794 = vld [vmem:[%s2763 + $0xf0] sm:$0xff]
        %v2795 = vld [vmem:[%s2763 + $0xf8] sm:$0xff]
        %v2796 = vld [vmem:[%s2763 + $0x100] sm:$0xff]
        %v2797 = vld [vmem:[%s2763 + $0x108] sm:$0xff]
        %v2798 = vld [vmem:[%s2763 + $0x110] sm:$0xff]
        %v2799 = vld [vmem:[%s2763 + $0x118] sm:$0xff]
        %v2800 = vld [vmem:[%s2763 + $0x120] sm:$0xff]
        %v2801 = vld [vmem:[%s2763 + $0x128] sm:$0xff]
        %v2802 = vld [vmem:[%s2763 + $0x130] sm:$0xff]
        %v2803 = vld [vmem:[%s2763 + $0x138] sm:$0xff]
        %v2804 = vld [vmem:[%s2763 + $0x140] sm:$0xff]
        %v2805 = vld [vmem:[%s2763 + $0x148] sm:$0xff]
        %v2806 = vld [vmem:[%s2763 + $0x150] sm:$0xff]
        %v2807 = vld [vmem:[%s2763 + $0x158] sm:$0xff]
        %v2808 = vld [vmem:[%s2763 + $0x160] sm:$0xff]
        %v2809 = vrot.slane %v2053, 6
        %v2810 = vsel %vm684, %v2809, 0
        %2812 = vmatprep.subr.mxu0 %v2765
        %2813 = vmatpush1.msra.mxu0 %v2764
        %2814 = vmatprep.subr.mxu0 %v2768
        %2815 = vmatpush1.msra.mxu0 %v2767
        %2816 = vmatprep.subr.mxu0 %v2771
        %2817 = vmatpush1.msra.mxu0 %v2770
        %2818 = vmatprep.subr.mxu0 %v2774
        %2819 = vmatpush1.msra.mxu0 %v2773
        %2820 = vmatprep.subr.mxu0 %v2777
        %2821 = vmatpush1.msra.mxu0 %v2776
        %2822 = vmatprep.subr.mxu0 %v2780
        %2823 = vmatpush1.msra.mxu0 %v2779
        %2824 = vmatprep.subr.mxu0 %v2783
        %2825 = vmatpush1.msra.mxu0 %v2782
        %2826 = vmatprep.subr.mxu0 %v2786
        %2827 = vmatpush1.msra.mxu0 %v2785
        %2828 = vmatprep.subr.mxu0 %v2789
        %2829 = vmatpush1.msra.mxu0 %v2788
        %2830 = vmatprep.subr.mxu0 %v2792
        %2831 = vmatpush1.msra.mxu0 %v2791
        %2832 = vmatprep.subr.mxu0 %v2795
        %2833 = vmatpush1.msra.mxu0 %v2794
        %2834 = vmatprep.subr.mxu0 %v2798
        %2835 = vmatpush1.msra.mxu0 %v2797
        %2836 = vmatprep.subr.mxu0 %v2801
        %2837 = vmatpush1.msra.mxu0 %v2800
        %2838 = vmatprep.subr.mxu0 %v2804
        %2839 = vmatpush1.msra.mxu0 %v2803
        %2840 = vmatprep.subr.mxu0 %v2807
        %2841 = vmatpush1.msra.mxu0 %v2806
        %2842 = vmatprep.subr.mxu0 0.0
        %2843 = vmatpush1.msra.mxu0 0.0
        %2844 = vmatprep.subr.mxu0 0.0
        %2845 = vmatpush1.msra.mxu0 0.0
        %2846 = vmatprep.subr.mxu0 0.0
        %2847 = vmatpush1.msra.mxu0 0.0
        %2848 = vmatprep.subr.mxu0 0.0
        %2849 = vmatpush1.msra.mxu0 0.0
        %2850 = vmatprep.subr.mxu0 0.0
        %2851 = vmatpush1.msra.mxu0 0.0
        %2852 = vmatprep.subr.mxu0 0.0
        %2853 = vmatpush1.msra.mxu0 0.0
        %2854 = vmatprep.subr.mxu0 0.0
        %2855 = vmatpush1.msra.mxu0 0.0
        %2856 = vmatprep.subr.mxu0 0.0
        %2857 = vmatpush1.msra.mxu0 0.0
        %2858 = vmatprep.subr.mxu0 0.0
        %2859 = vmatpush1.msra.mxu0 0.0
        %2860 = vmatprep.subr.mxu0 0.0
        %2861 = vmatpush1.msra.mxu0 0.0
        %2862 = vmatprep.subr.mxu0 0.0
        %2863 = vmatpush1.msra.mxu0 0.0
        %2864 = vmatprep.subr.mxu0 0.0
        %2865 = vmatpush1.msra.mxu0 0.0
        %2866 = vmatprep.subr.mxu0 0.0
        %2867 = vmatpush1.msra.mxu0 0.0
        %2868 = vmatprep.subr.mxu0 0.0
        %2869 = vmatpush1.msra.mxu0 0.0
        %2870 = vmatprep.subr.mxu0 0.0
        %2871 = vmatpush1.msra.mxu0 0.0
        %2872 = vmatprep.subr.mxu0 0.0
        %2873 = vmatpush1.msra.mxu0 0.0
        %2874 = vmatprep.subr.mxu0 0.0
        %2875 = vmatpush1.msra.mxu0 0.0
        %2876 = vmatprep.mubr.f32.mxu0 0.0
        %2877 = vmatmul.mubr.f32.gmra.mrb[0].mxu0 %v2810
        %v2878 = vpop.f32.mrb[0].mxu0
        %v2879 = vadd.f32 0.0, %v2878
        %v2880 = vpop.f32.mrb[0].mxu0
        %v2881 = vadd.f32 0.0, %v2880
        %2882 = vdwg.mxu0
        %2883 = vmatprep.subr.mxu0 0.0
        %2884 = vmatpush1.msra.mxu0 %v2766
        %2885 = vmatprep.subr.mxu0 0.0
        %2886 = vmatpush1.msra.mxu0 %v2769
        %2887 = vmatprep.subr.mxu0 0.0
        %2888 = vmatpush1.msra.mxu0 %v2772
        %2889 = vmatprep.subr.mxu0 0.0
        %2890 = vmatpush1.msra.mxu0 %v2775
        %2891 = vmatprep.subr.mxu0 0.0
        %2892 = vmatpush1.msra.mxu0 %v2778
        %2893 = vmatprep.subr.mxu0 0.0
        %2894 = vmatpush1.msra.mxu0 %v2781
        %2895 = vmatprep.subr.mxu0 0.0
        %2896 = vmatpush1.msra.mxu0 %v2784
        %2897 = vmatprep.subr.mxu0 0.0
        %2898 = vmatpush1.msra.mxu0 %v2787
        %2899 = vmatprep.subr.mxu0 0.0
        %2900 = vmatpush1.msra.mxu0 %v2790
        %2901 = vmatprep.subr.mxu0 0.0
        %2902 = vmatpush1.msra.mxu0 %v2793
        %2903 = vmatprep.subr.mxu0 0.0
        %2904 = vmatpush1.msra.mxu0 %v2796
        %2905 = vmatprep.subr.mxu0 0.0
        %2906 = vmatpush1.msra.mxu0 %v2799
        %2907 = vmatprep.subr.mxu0 0.0
        %2908 = vmatpush1.msra.mxu0 %v2802
        %2909 = vmatprep.subr.mxu0 0.0
        %2910 = vmatpush1.msra.mxu0 %v2805
        %2911 = vmatprep.subr.mxu0 0.0
        %2912 = vmatpush1.msra.mxu0 %v2808
        %2913 = vmatprep.subr.mxu0 0.0
        %2914 = vmatpush1.msra.mxu0 0.0
        %2915 = vmatprep.subr.mxu0 0.0
        %2916 = vmatpush1.msra.mxu0 0.0
        %2917 = vmatprep.subr.mxu0 0.0
        %2918 = vmatpush1.msra.mxu0 0.0
        %2919 = vmatprep.subr.mxu0 0.0
        %2920 = vmatpush1.msra.mxu0 0.0
        %2921 = vmatprep.subr.mxu0 0.0
        %2922 = vmatpush1.msra.mxu0 0.0
        %2923 = vmatprep.subr.mxu0 0.0
        %2924 = vmatpush1.msra.mxu0 0.0
        %2925 = vmatprep.subr.mxu0 0.0
        %2926 = vmatpush1.msra.mxu0 0.0
        %2927 = vmatprep.subr.mxu0 0.0
        %2928 = vmatpush1.msra.mxu0 0.0
        %2929 = vmatprep.subr.mxu0 0.0
        %2930 = vmatpush1.msra.mxu0 0.0
        %2931 = vmatprep.subr.mxu0 0.0
        %2932 = vmatpush1.msra.mxu0 0.0
        %2933 = vmatprep.subr.mxu0 0.0
        %2934 = vmatpush1.msra.mxu0 0.0
        %2935 = vmatprep.subr.mxu0 0.0
        %2936 = vmatpush1.msra.mxu0 0.0
        %2937 = vmatprep.subr.mxu0 0.0
        %2938 = vmatpush1.msra.mxu0 0.0
        %2939 = vmatprep.subr.mxu0 0.0
        %2940 = vmatpush1.msra.mxu0 0.0
        %2941 = vmatprep.subr.mxu0 0.0
        %2942 = vmatpush1.msra.mxu0 0.0
        %2943 = vmatprep.subr.mxu0 0.0
        %2944 = vmatpush1.msra.mxu0 0.0
        %2945 = vmatprep.subr.mxu0 0.0
        %2946 = vmatpush1.msra.mxu0 0.0
        %2947 = vmatprep.mubr.f32.mxu0 0.0
        %2948 = vmatmul.mubr.f32.gmra.mrb[0].mxu0 %v2810
        %v2949 = vpop.f32.mrb[0].mxu0
        %v2950 = vadd.f32 0.0, %v2949
        %v2951 = vpop.f32.mrb[0].mxu0
        %2952 = vdwg.mxu0
        %s2953 = scalar_lea.vmem [#allocation7], 2520
        %v2954 = vld [vmem:[%s2953] sm:$0xff]
        %v2955 = vld [vmem:[%s2953 + $0x8] sm:$0xff]
        %v2956 = vld [vmem:[%s2953 + $0x10] sm:$0xff]
        %v2957 = vld [vmem:[%s2953 + $0x18] sm:$0xff]
        %v2958 = vld [vmem:[%s2953 + $0x20] sm:$0xff]
        %v2959 = vld [vmem:[%s2953 + $0x28] sm:$0xff]
        %v2960 = vld [vmem:[%s2953 + $0x30] sm:$0xff]
        %v2961 = vld [vmem:[%s2953 + $0x38] sm:$0xff]
        %v2962 = vld [vmem:[%s2953 + $0x40] sm:$0xff]
        %v2963 = vld [vmem:[%s2953 + $0x48] sm:$0xff]
        %v2964 = vld [vmem:[%s2953 + $0x50] sm:$0xff]
        %v2965 = vld [vmem:[%s2953 + $0x58] sm:$0xff]
        %v2966 = vld [vmem:[%s2953 + $0x60] sm:$0xff]
        %v2967 = vld [vmem:[%s2953 + $0x68] sm:$0xff]
        %v2968 = vld [vmem:[%s2953 + $0x70] sm:$0xff]
        %v2969 = vld [vmem:[%s2953 + $0x78] sm:$0xff]
        %v2970 = vld [vmem:[%s2953 + $0x80] sm:$0xff]
        %v2971 = vld [vmem:[%s2953 + $0x88] sm:$0xff]
        %v2972 = vld [vmem:[%s2953 + $0x90] sm:$0xff]
        %v2973 = vld [vmem:[%s2953 + $0x98] sm:$0xff]
        %v2974 = vld [vmem:[%s2953 + $0xa0] sm:$0xff]
        %v2975 = vld [vmem:[%s2953 + $0xa8] sm:$0xff]
        %v2976 = vld [vmem:[%s2953 + $0xb0] sm:$0xff]
        %v2977 = vld [vmem:[%s2953 + $0xb8] sm:$0xff]
        %v2978 = vld [vmem:[%s2953 + $0xc0] sm:$0xff]
        %v2979 = vld [vmem:[%s2953 + $0xc8] sm:$0xff]
        %v2980 = vld [vmem:[%s2953 + $0xd0] sm:$0xff]
        %v2981 = vld [vmem:[%s2953 + $0xd8] sm:$0xff]
        %v2982 = vld [vmem:[%s2953 + $0xe0] sm:$0xff]
        %v2983 = vld [vmem:[%s2953 + $0xe8] sm:$0xff]
        %v2984 = vld [vmem:[%s2953 + $0xf0] sm:$0xff]
        %v2985 = vld [vmem:[%s2953 + $0xf8] sm:$0xff]
        %v2986 = vld [vmem:[%s2953 + $0x100] sm:$0xff]
        %v2987 = vld [vmem:[%s2953 + $0x108] sm:$0xff]
        %v2988 = vld [vmem:[%s2953 + $0x110] sm:$0xff]
        %v2989 = vld [vmem:[%s2953 + $0x118] sm:$0xff]
        %v2990 = vld [vmem:[%s2953 + $0x120] sm:$0xff]
        %v2991 = vld [vmem:[%s2953 + $0x128] sm:$0xff]
        %v2992 = vld [vmem:[%s2953 + $0x130] sm:$0xff]
        %v2993 = vld [vmem:[%s2953 + $0x138] sm:$0xff]
        %v2994 = vld [vmem:[%s2953 + $0x140] sm:$0xff]
        %v2995 = vld [vmem:[%s2953 + $0x148] sm:$0xff]
        %v2996 = vld [vmem:[%s2953 + $0x150] sm:$0xff]
        %v2997 = vld [vmem:[%s2953 + $0x158] sm:$0xff]
        %v2998 = vld [vmem:[%s2953 + $0x160] sm:$0xff]
        %s2999 = scalar_lea.vmem [#allocation7], 2880
        %v3000 = vld [vmem:[%s2999] sm:$0xff]
        %v3001 = vld [vmem:[%s2999 + $0x8] sm:$0xff]
        %v3002 = vld [vmem:[%s2999 + $0x10] sm:$0xff]
        %v3003 = vld [vmem:[%s2999 + $0x18] sm:$0xff]
        %v3004 = vld [vmem:[%s2999 + $0x20] sm:$0xff]
        %v3005 = vld [vmem:[%s2999 + $0x28] sm:$0xff]
        %v3006 = vld [vmem:[%s2999 + $0x30] sm:$0xff]
        %v3007 = vld [vmem:[%s2999 + $0x38] sm:$0xff]
        %v3008 = vld [vmem:[%s2999 + $0x40] sm:$0xff]
        %v3009 = vld [vmem:[%s2999 + $0x48] sm:$0xff]
        %v3010 = vld [vmem:[%s2999 + $0x50] sm:$0xff]
        %v3011 = vld [vmem:[%s2999 + $0x58] sm:$0xff]
        %v3012 = vld [vmem:[%s2999 + $0x60] sm:$0xff]
        %v3013 = vld [vmem:[%s2999 + $0x68] sm:$0xff]
        %v3014 = vld [vmem:[%s2999 + $0x70] sm:$0xff]
        %v3015 = vld [vmem:[%s2999 + $0x78] sm:$0xff]
        %v3016 = vld [vmem:[%s2999 + $0x80] sm:$0xff]
        %v3017 = vld [vmem:[%s2999 + $0x88] sm:$0xff]
        %v3018 = vld [vmem:[%s2999 + $0x90] sm:$0xff]
        %v3019 = vld [vmem:[%s2999 + $0x98] sm:$0xff]
        %v3020 = vld [vmem:[%s2999 + $0xa0] sm:$0xff]
        %v3021 = vld [vmem:[%s2999 + $0xa8] sm:$0xff]
        %v3022 = vld [vmem:[%s2999 + $0xb0] sm:$0xff]
        %v3023 = vld [vmem:[%s2999 + $0xb8] sm:$0xff]
        %v3024 = vld [vmem:[%s2999 + $0xc0] sm:$0xff]
        %v3025 = vld [vmem:[%s2999 + $0xc8] sm:$0xff]
        %v3026 = vld [vmem:[%s2999 + $0xd0] sm:$0xff]
        %v3027 = vld [vmem:[%s2999 + $0xd8] sm:$0xff]
        %v3028 = vld [vmem:[%s2999 + $0xe0] sm:$0xff]
        %v3029 = vld [vmem:[%s2999 + $0xe8] sm:$0xff]
        %v3030 = vld [vmem:[%s2999 + $0xf0] sm:$0xff]
        %v3031 = vld [vmem:[%s2999 + $0xf8] sm:$0xff]
        %v3032 = vld [vmem:[%s2999 + $0x100] sm:$0xff]
        %v3033 = vld [vmem:[%s2999 + $0x108] sm:$0xff]
        %v3034 = vld [vmem:[%s2999 + $0x110] sm:$0xff]
        %v3035 = vld [vmem:[%s2999 + $0x118] sm:$0xff]
        %v3036 = vld [vmem:[%s2999 + $0x120] sm:$0xff]
        %v3037 = vld [vmem:[%s2999 + $0x128] sm:$0xff]
        %v3038 = vld [vmem:[%s2999 + $0x130] sm:$0xff]
        %v3039 = vld [vmem:[%s2999 + $0x138] sm:$0xff]
        %v3040 = vld [vmem:[%s2999 + $0x140] sm:$0xff]
        %v3041 = vld [vmem:[%s2999 + $0x148] sm:$0xff]
        %v3042 = vld [vmem:[%s2999 + $0x150] sm:$0xff]
        %v3043 = vld [vmem:[%s2999 + $0x158] sm:$0xff]
        %v3044 = vld [vmem:[%s2999 + $0x160] sm:$0xff]
        %v3046 = vsel %vm684, %v2054, 0
        %3048 = vmatprep.subr.mxu0 %v3001
        %3049 = vmatpush1.msra.mxu0 %v3000
        %3050 = vmatprep.subr.mxu0 %v3004
        %3051 = vmatpush1.msra.mxu0 %v3003
        %3052 = vmatprep.subr.mxu0 %v3007
        %3053 = vmatpush1.msra.mxu0 %v3006
        %3054 = vmatprep.subr.mxu0 %v3010
        %3055 = vmatpush1.msra.mxu0 %v3009
        %3056 = vmatprep.subr.mxu0 %v3013
        %3057 = vmatpush1.msra.mxu0 %v3012
        %3058 = vmatprep.subr.mxu0 %v3016
        %3059 = vmatpush1.msra.mxu0 %v3015
        %3060 = vmatprep.subr.mxu0 %v3019
        %3061 = vmatpush1.msra.mxu0 %v3018
        %3062 = vmatprep.subr.mxu0 %v3022
        %3063 = vmatpush1.msra.mxu0 %v3021
        %3064 = vmatprep.subr.mxu0 %v3025
        %3065 = vmatpush1.msra.mxu0 %v3024
        %3066 = vmatprep.subr.mxu0 %v3028
        %3067 = vmatpush1.msra.mxu0 %v3027
        %3068 = vmatprep.subr.mxu0 %v3031
        %3069 = vmatpush1.msra.mxu0 %v3030
        %3070 = vmatprep.subr.mxu0 %v3034
        %3071 = vmatpush1.msra.mxu0 %v3033
        %3072 = vmatprep.subr.mxu0 %v3037
        %3073 = vmatpush1.msra.mxu0 %v3036
        %3074 = vmatprep.subr.mxu0 %v3040
        %3075 = vmatpush1.msra.mxu0 %v3039
        %3076 = vmatprep.subr.mxu0 %v3043
        %3077 = vmatpush1.msra.mxu0 %v3042
        %3078 = vmatprep.subr.mxu0 0.0
        %3079 = vmatpush1.msra.mxu0 0.0
        %3080 = vmatprep.subr.mxu0 0.0
        %3081 = vmatpush1.msra.mxu0 0.0
        %3082 = vmatprep.subr.mxu0 0.0
        %3083 = vmatpush1.msra.mxu0 0.0
        %3084 = vmatprep.subr.mxu0 0.0
        %3085 = vmatpush1.msra.mxu0 0.0
        %3086 = vmatprep.subr.mxu0 0.0
        %3087 = vmatpush1.msra.mxu0 0.0
        %3088 = vmatprep.subr.mxu0 0.0
        %3089 = vmatpush1.msra.mxu0 0.0
        %3090 = vmatprep.subr.mxu0 0.0
        %3091 = vmatpush1.msra.mxu0 0.0
        %3092 = vmatprep.subr.mxu0 0.0
        %3093 = vmatpush1.msra.mxu0 0.0
        %3094 = vmatprep.subr.mxu0 0.0
        %3095 = vmatpush1.msra.mxu0 0.0
        %3096 = vmatprep.subr.mxu0 0.0
        %3097 = vmatpush1.msra.mxu0 0.0
        %3098 = vmatprep.subr.mxu0 0.0
        %3099 = vmatpush1.msra.mxu0 0.0
        %3100 = vmatprep.subr.mxu0 0.0
        %3101 = vmatpush1.msra.mxu0 0.0
        %3102 = vmatprep.subr.mxu0 0.0
        %3103 = vmatpush1.msra.mxu0 0.0
        %3104 = vmatprep.subr.mxu0 0.0
        %3105 = vmatpush1.msra.mxu0 0.0
        %3106 = vmatprep.subr.mxu0 0.0
        %3107 = vmatpush1.msra.mxu0 0.0
        %3108 = vmatprep.subr.mxu0 0.0
        %3109 = vmatpush1.msra.mxu0 0.0
        %3110 = vmatprep.subr.mxu0 0.0
        %3111 = vmatpush1.msra.mxu0 0.0
        %3112 = vmatprep.mubr.f32.mxu0 0.0
        %3113 = vmatmul.mubr.f32.gmra.mrb[0].mxu0 %v3046
        %v3114 = vpop.f32.mrb[0].mxu0
        %v3115 = vadd.f32 0.0, %v3114
        %v3116 = vpop.f32.mrb[0].mxu0
        %v3117 = vadd.f32 0.0, %v3116
        %3118 = vdwg.mxu0
        %3119 = vmatprep.subr.mxu0 0.0
        %3120 = vmatpush1.msra.mxu0 %v3002
        %3121 = vmatprep.subr.mxu0 0.0
        %3122 = vmatpush1.msra.mxu0 %v3005
        %3123 = vmatprep.subr.mxu0 0.0
        %3124 = vmatpush1.msra.mxu0 %v3008
        %3125 = vmatprep.subr.mxu0 0.0
        %3126 = vmatpush1.msra.mxu0 %v3011
        %3127 = vmatprep.subr.mxu0 0.0
        %3128 = vmatpush1.msra.mxu0 %v3014
        %3129 = vmatprep.subr.mxu0 0.0
        %3130 = vmatpush1.msra.mxu0 %v3017
        %3131 = vmatprep.subr.mxu0 0.0
        %3132 = vmatpush1.msra.mxu0 %v3020
        %3133 = vmatprep.subr.mxu0 0.0
        %3134 = vmatpush1.msra.mxu0 %v3023
        %3135 = vmatprep.subr.mxu0 0.0
        %3136 = vmatpush1.msra.mxu0 %v3026
        %3137 = vmatprep.subr.mxu0 0.0
        %3138 = vmatpush1.msra.mxu0 %v3029
        %3139 = vmatprep.subr.mxu0 0.0
        %3140 = vmatpush1.msra.mxu0 %v3032
        %3141 = vmatprep.subr.mxu0 0.0
        %3142 = vmatpush1.msra.mxu0 %v3035
        %3143 = vmatprep.subr.mxu0 0.0
        %3144 = vmatpush1.msra.mxu0 %v3038
        %3145 = vmatprep.subr.mxu0 0.0
        %3146 = vmatpush1.msra.mxu0 %v3041
        %3147 = vmatprep.subr.mxu0 0.0
        %3148 = vmatpush1.msra.mxu0 %v3044
        %3149 = vmatprep.subr.mxu0 0.0
        %3150 = vmatpush1.msra.mxu0 0.0
        %3151 = vmatprep.subr.mxu0 0.0
        %3152 = vmatpush1.msra.mxu0 0.0
        %3153 = vmatprep.subr.mxu0 0.0
        %3154 = vmatpush1.msra.mxu0 0.0
        %3155 = vmatprep.subr.mxu0 0.0
        %3156 = vmatpush1.msra.mxu0 0.0
        %3157 = vmatprep.subr.mxu0 0.0
        %3158 = vmatpush1.msra.mxu0 0.0
        %3159 = vmatprep.subr.mxu0 0.0
        %3160 = vmatpush1.msra.mxu0 0.0
        %3161 = vmatprep.subr.mxu0 0.0
        %3162 = vmatpush1.msra.mxu0 0.0
        %3163 = vmatprep.subr.mxu0 0.0
        %3164 = vmatpush1.msra.mxu0 0.0
        %3165 = vmatprep.subr.mxu0 0.0
        %3166 = vmatpush1.msra.mxu0 0.0
        %3167 = vmatprep.subr.mxu0 0.0
        %3168 = vmatpush1.msra.mxu0 0.0
        %3169 = vmatprep.subr.mxu0 0.0
        %3170 = vmatpush1.msra.mxu0 0.0
        %3171 = vmatprep.subr.mxu0 0.0
        %3172 = vmatpush1.msra.mxu0 0.0
        %3173 = vmatprep.subr.mxu0 0.0
        %3174 = vmatpush1.msra.mxu0 0.0
        %3175 = vmatprep.subr.mxu0 0.0
        %3176 = vmatpush1.msra.mxu0 0.0
        %3177 = vmatprep.subr.mxu0 0.0
        %3178 = vmatpush1.msra.mxu0 0.0
        %3179 = vmatprep.subr.mxu0 0.0
        %3180 = vmatpush1.msra.mxu0 0.0
        %3181 = vmatprep.subr.mxu0 0.0
        %3182 = vmatpush1.msra.mxu0 0.0
        %3183 = vmatprep.mubr.f32.mxu0 0.0
        %3184 = vmatmul.mubr.f32.gmra.mrb[0].mxu0 %v3046
        %v3185 = vpop.f32.mrb[0].mxu0
        %v3186 = vadd.f32 0.0, %v3185
        %v3187 = vpop.f32.mrb[0].mxu0
        %3188 = vdwg.mxu0
        %s3189 = scalar_lea.vmem [#allocation7], 3240
        %v3190 = vld [vmem:[%s3189] sm:$0xff]
        %v3191 = vld [vmem:[%s3189 + $0x8] sm:$0xff]
        %v3192 = vld [vmem:[%s3189 + $0x10] sm:$0xff]
        %v3193 = vld [vmem:[%s3189 + $0x18] sm:$0xff]
        %v3194 = vld [vmem:[%s3189 + $0x20] sm:$0xff]
        %v3195 = vld [vmem:[%s3189 + $0x28] sm:$0xff]
        %v3196 = vld [vmem:[%s3189 + $0x30] sm:$0xff]
        %v3197 = vld [vmem:[%s3189 + $0x38] sm:$0xff]
        %v3198 = vld [vmem:[%s3189 + $0x40] sm:$0xff]
        %v3199 = vld [vmem:[%s3189 + $0x48] sm:$0xff]
        %v3200 = vld [vmem:[%s3189 + $0x50] sm:$0xff]
        %v3201 = vld [vmem:[%s3189 + $0x58] sm:$0xff]
        %v3202 = vld [vmem:[%s3189 + $0x60] sm:$0xff]
        %v3203 = vld [vmem:[%s3189 + $0x68] sm:$0xff]
        %v3204 = vld [vmem:[%s3189 + $0x70] sm:$0xff]
        %v3205 = vld [vmem:[%s3189 + $0x78] sm:$0xff]
        %v3206 = vld [vmem:[%s3189 + $0x80] sm:$0xff]
        %v3207 = vld [vmem:[%s3189 + $0x88] sm:$0xff]
        %v3208 = vld [vmem:[%s3189 + $0x90] sm:$0xff]
        %v3209 = vld [vmem:[%s3189 + $0x98] sm:$0xff]
        %v3210 = vld [vmem:[%s3189 + $0xa0] sm:$0xff]
        %v3211 = vld [vmem:[%s3189 + $0xa8] sm:$0xff]
        %v3212 = vld [vmem:[%s3189 + $0xb0] sm:$0xff]
        %v3213 = vld [vmem:[%s3189 + $0xb8] sm:$0xff]
        %v3214 = vld [vmem:[%s3189 + $0xc0] sm:$0xff]
        %v3215 = vld [vmem:[%s3189 + $0xc8] sm:$0xff]
        %v3216 = vld [vmem:[%s3189 + $0xd0] sm:$0xff]
        %v3217 = vld [vmem:[%s3189 + $0xd8] sm:$0xff]
        %v3218 = vld [vmem:[%s3189 + $0xe0] sm:$0xff]
        %v3219 = vld [vmem:[%s3189 + $0xe8] sm:$0xff]
        %v3220 = vld [vmem:[%s3189 + $0xf0] sm:$0xff]
        %v3221 = vld [vmem:[%s3189 + $0xf8] sm:$0xff]
        %v3222 = vld [vmem:[%s3189 + $0x100] sm:$0xff]
        %v3223 = vld [vmem:[%s3189 + $0x108] sm:$0xff]
        %v3224 = vld [vmem:[%s3189 + $0x110] sm:$0xff]
        %v3225 = vld [vmem:[%s3189 + $0x118] sm:$0xff]
        %v3226 = vld [vmem:[%s3189 + $0x120] sm:$0xff]
        %v3227 = vld [vmem:[%s3189 + $0x128] sm:$0xff]
        %v3228 = vld [vmem:[%s3189 + $0x130] sm:$0xff]
        %v3229 = vld [vmem:[%s3189 + $0x138] sm:$0xff]
        %v3230 = vld [vmem:[%s3189 + $0x140] sm:$0xff]
        %v3231 = vld [vmem:[%s3189 + $0x148] sm:$0xff]
        %v3232 = vld [vmem:[%s3189 + $0x150] sm:$0xff]
        %v3233 = vld [vmem:[%s3189 + $0x158] sm:$0xff]
        %v3234 = vld [vmem:[%s3189 + $0x160] sm:$0xff]
        %s3235 = scalar_lea.vmem [#allocation7], 3600
        %v3236 = vld [vmem:[%s3235] sm:$0xff]
        %v3237 = vld [vmem:[%s3235 + $0x8] sm:$0xff]
        %v3238 = vld [vmem:[%s3235 + $0x10] sm:$0xff]
        %v3239 = vld [vmem:[%s3235 + $0x18] sm:$0xff]
        %v3240 = vld [vmem:[%s3235 + $0x20] sm:$0xff]
        %v3241 = vld [vmem:[%s3235 + $0x28] sm:$0xff]
        %v3242 = vld [vmem:[%s3235 + $0x30] sm:$0xff]
        %v3243 = vld [vmem:[%s3235 + $0x38] sm:$0xff]
        %v3244 = vld [vmem:[%s3235 + $0x40] sm:$0xff]
        %v3245 = vld [vmem:[%s3235 + $0x48] sm:$0xff]
        %v3246 = vld [vmem:[%s3235 + $0x50] sm:$0xff]
        %v3247 = vld [vmem:[%s3235 + $0x58] sm:$0xff]
        %v3248 = vld [vmem:[%s3235 + $0x60] sm:$0xff]
        %v3249 = vld [vmem:[%s3235 + $0x68] sm:$0xff]
        %v3250 = vld [vmem:[%s3235 + $0x70] sm:$0xff]
        %v3251 = vld [vmem:[%s3235 + $0x78] sm:$0xff]
        %v3252 = vld [vmem:[%s3235 + $0x80] sm:$0xff]
        %v3253 = vld [vmem:[%s3235 + $0x88] sm:$0xff]
        %v3254 = vld [vmem:[%s3235 + $0x90] sm:$0xff]
        %v3255 = vld [vmem:[%s3235 + $0x98] sm:$0xff]
        %v3256 = vld [vmem:[%s3235 + $0xa0] sm:$0xff]
        %v3257 = vld [vmem:[%s3235 + $0xa8] sm:$0xff]
        %v3258 = vld [vmem:[%s3235 + $0xb0] sm:$0xff]
        %v3259 = vld [vmem:[%s3235 + $0xb8] sm:$0xff]
        %v3260 = vld [vmem:[%s3235 + $0xc0] sm:$0xff]
        %v3261 = vld [vmem:[%s3235 + $0xc8] sm:$0xff]
        %v3262 = vld [vmem:[%s3235 + $0xd0] sm:$0xff]
        %v3263 = vld [vmem:[%s3235 + $0xd8] sm:$0xff]
        %v3264 = vld [vmem:[%s3235 + $0xe0] sm:$0xff]
        %v3265 = vld [vmem:[%s3235 + $0xe8] sm:$0xff]
        %v3266 = vld [vmem:[%s3235 + $0xf0] sm:$0xff]
        %v3267 = vld [vmem:[%s3235 + $0xf8] sm:$0xff]
        %v3268 = vld [vmem:[%s3235 + $0x100] sm:$0xff]
        %v3269 = vld [vmem:[%s3235 + $0x108] sm:$0xff]
        %v3270 = vld [vmem:[%s3235 + $0x110] sm:$0xff]
        %v3271 = vld [vmem:[%s3235 + $0x118] sm:$0xff]
        %v3272 = vld [vmem:[%s3235 + $0x120] sm:$0xff]
        %v3273 = vld [vmem:[%s3235 + $0x128] sm:$0xff]
        %v3274 = vld [vmem:[%s3235 + $0x130] sm:$0xff]
        %v3275 = vld [vmem:[%s3235 + $0x138] sm:$0xff]
        %v3276 = vld [vmem:[%s3235 + $0x140] sm:$0xff]
        %v3277 = vld [vmem:[%s3235 + $0x148] sm:$0xff]
        %v3278 = vld [vmem:[%s3235 + $0x150] sm:$0xff]
        %v3279 = vld [vmem:[%s3235 + $0x158] sm:$0xff]
        %v3280 = vld [vmem:[%s3235 + $0x160] sm:$0xff]
        %v3281 = vrot.slane %v2054, 2
        %v3282 = vsel %vm684, %v3281, 0
        %3284 = vmatprep.subr.mxu0 %v3237
        %3285 = vmatpush1.msra.mxu0 %v3236
        %3286 = vmatprep.subr.mxu0 %v3240
        %3287 = vmatpush1.msra.mxu0 %v3239
        %3288 = vmatprep.subr.mxu0 %v3243
        %3289 = vmatpush1.msra.mxu0 %v3242
        %3290 = vmatprep.subr.mxu0 %v3246
        %3291 = vmatpush1.msra.mxu0 %v3245
        %3292 = vmatprep.subr.mxu0 %v3249
        %3293 = vmatpush1.msra.mxu0 %v3248
        %3294 = vmatprep.subr.mxu0 %v3252
        %3295 = vmatpush1.msra.mxu0 %v3251
        %3296 = vmatprep.subr.mxu0 %v3255
        %3297 = vmatpush1.msra.mxu0 %v3254
        %3298 = vmatprep.subr.mxu0 %v3258
        %3299 = vmatpush1.msra.mxu0 %v3257
        %3300 = vmatprep.subr.mxu0 %v3261
        %3301 = vmatpush1.msra.mxu0 %v3260
        %3302 = vmatprep.subr.mxu0 %v3264
        %3303 = vmatpush1.msra.mxu0 %v3263
        %3304 = vmatprep.subr.mxu0 %v3267
        %3305 = vmatpush1.msra.mxu0 %v3266
        %3306 = vmatprep.subr.mxu0 %v3270
        %3307 = vmatpush1.msra.mxu0 %v3269
        %3308 = vmatprep.subr.mxu0 %v3273
        %3309 = vmatpush1.msra.mxu0 %v3272
        %3310 = vmatprep.subr.mxu0 %v3276
        %3311 = vmatpush1.msra.mxu0 %v3275
        %3312 = vmatprep.subr.mxu0 %v3279
        %3313 = vmatpush1.msra.mxu0 %v3278
        %3314 = vmatprep.subr.mxu0 0.0
        %3315 = vmatpush1.msra.mxu0 0.0
        %3316 = vmatprep.subr.mxu0 0.0
        %3317 = vmatpush1.msra.mxu0 0.0
        %3318 = vmatprep.subr.mxu0 0.0
        %3319 = vmatpush1.msra.mxu0 0.0
        %3320 = vmatprep.subr.mxu0 0.0
        %3321 = vmatpush1.msra.mxu0 0.0
        %3322 = vmatprep.subr.mxu0 0.0
        %3323 = vmatpush1.msra.mxu0 0.0
        %3324 = vmatprep.subr.mxu0 0.0
        %3325 = vmatpush1.msra.mxu0 0.0
        %3326 = vmatprep.subr.mxu0 0.0
        %3327 = vmatpush1.msra.mxu0 0.0
        %3328 = vmatprep.subr.mxu0 0.0
        %3329 = vmatpush1.msra.mxu0 0.0
        %3330 = vmatprep.subr.mxu0 0.0
        %3331 = vmatpush1.msra.mxu0 0.0
        %3332 = vmatprep.subr.mxu0 0.0
        %3333 = vmatpush1.msra.mxu0 0.0
        %3334 = vmatprep.subr.mxu0 0.0
        %3335 = vmatpush1.msra.mxu0 0.0
        %3336 = vmatprep.subr.mxu0 0.0
        %3337 = vmatpush1.msra.mxu0 0.0
        %3338 = vmatprep.subr.mxu0 0.0
        %3339 = vmatpush1.msra.mxu0 0.0
        %3340 = vmatprep.subr.mxu0 0.0
        %3341 = vmatpush1.msra.mxu0 0.0
        %3342 = vmatprep.subr.mxu0 0.0
        %3343 = vmatpush1.msra.mxu0 0.0
        %3344 = vmatprep.subr.mxu0 0.0
        %3345 = vmatpush1.msra.mxu0 0.0
        %3346 = vmatprep.subr.mxu0 0.0
        %3347 = vmatpush1.msra.mxu0 0.0
        %3348 = vmatprep.mubr.f32.mxu0 0.0
        %3349 = vmatmul.mubr.f32.gmra.mrb[0].mxu0 %v3282
        %v3350 = vpop.f32.mrb[0].mxu0
        %v3351 = vadd.f32 0.0, %v3350
        %v3352 = vpop.f32.mrb[0].mxu0
        %v3353 = vadd.f32 0.0, %v3352
        %3354 = vdwg.mxu0
        %3355 = vmatprep.subr.mxu0 0.0
        %3356 = vmatpush1.msra.mxu0 %v3238
        %3357 = vmatprep.subr.mxu0 0.0
        %3358 = vmatpush1.msra.mxu0 %v3241
        %3359 = vmatprep.subr.mxu0 0.0
        %3360 = vmatpush1.msra.mxu0 %v3244
        %3361 = vmatprep.subr.mxu0 0.0
        %3362 = vmatpush1.msra.mxu0 %v3247
        %3363 = vmatprep.subr.mxu0 0.0
        %3364 = vmatpush1.msra.mxu0 %v3250
        %3365 = vmatprep.subr.mxu0 0.0
        %3366 = vmatpush1.msra.mxu0 %v3253
        %3367 = vmatprep.subr.mxu0 0.0
        %3368 = vmatpush1.msra.mxu0 %v3256
        %3369 = vmatprep.subr.mxu0 0.0
        %3370 = vmatpush1.msra.mxu0 %v3259
        %3371 = vmatprep.subr.mxu0 0.0
        %3372 = vmatpush1.msra.mxu0 %v3262
        %3373 = vmatprep.subr.mxu0 0.0
        %3374 = vmatpush1.msra.mxu0 %v3265
        %3375 = vmatprep.subr.mxu0 0.0
        %3376 = vmatpush1.msra.mxu0 %v3268
        %3377 = vmatprep.subr.mxu0 0.0
        %3378 = vmatpush1.msra.mxu0 %v3271
        %3379 = vmatprep.subr.mxu0 0.0
        %3380 = vmatpush1.msra.mxu0 %v3274
        %3381 = vmatprep.subr.mxu0 0.0
        %3382 = vmatpush1.msra.mxu0 %v3277
        %3383 = vmatprep.subr.mxu0 0.0
        %3384 = vmatpush1.msra.mxu0 %v3280
        %3385 = vmatprep.subr.mxu0 0.0
        %3386 = vmatpush1.msra.mxu0 0.0
        %3387 = vmatprep.subr.mxu0 0.0
        %3388 = vmatpush1.msra.mxu0 0.0
        %3389 = vmatprep.subr.mxu0 0.0
        %3390 = vmatpush1.msra.mxu0 0.0
        %3391 = vmatprep.subr.mxu0 0.0
        %3392 = vmatpush1.msra.mxu0 0.0
        %3393 = vmatprep.subr.mxu0 0.0
        %3394 = vmatpush1.msra.mxu0 0.0
        %3395 = vmatprep.subr.mxu0 0.0
        %3396 = vmatpush1.msra.mxu0 0.0
        %3397 = vmatprep.subr.mxu0 0.0
        %3398 = vmatpush1.msra.mxu0 0.0
        %3399 = vmatprep.subr.mxu0 0.0
        %3400 = vmatpush1.msra.mxu0 0.0
        %3401 = vmatprep.subr.mxu0 0.0
        %3402 = vmatpush1.msra.mxu0 0.0
        %3403 = vmatprep.subr.mxu0 0.0
        %3404 = vmatpush1.msra.mxu0 0.0
        %3405 = vmatprep.subr.mxu0 0.0
        %3406 = vmatpush1.msra.mxu0 0.0
        %3407 = vmatprep.subr.mxu0 0.0
        %3408 = vmatpush1.msra.mxu0 0.0
        %3409 = vmatprep.subr.mxu0 0.0
        %3410 = vmatpush1.msra.mxu0 0.0
        %3411 = vmatprep.subr.mxu0 0.0
        %3412 = vmatpush1.msra.mxu0 0.0
        %3413 = vmatprep.subr.mxu0 0.0
        %3414 = vmatpush1.msra.mxu0 0.0
        %3415 = vmatprep.subr.mxu0 0.0
        %3416 = vmatpush1.msra.mxu0 0.0
        %3417 = vmatprep.subr.mxu0 0.0
        %3418 = vmatpush1.msra.mxu0 0.0
        %3419 = vmatprep.mubr.f32.mxu0 0.0
        %3420 = vmatmul.mubr.f32.gmra.mrb[0].mxu0 %v3282
        %v3421 = vpop.f32.mrb[0].mxu0
        %v3422 = vadd.f32 0.0, %v3421
        %v3423 = vpop.f32.mrb[0].mxu0
        %3424 = vdwg.mxu0
        %s3425 = scalar_lea.vmem [#allocation7], 3960
        %v3426 = vld [vmem:[%s3425] sm:$0xff]
        %v3427 = vld [vmem:[%s3425 + $0x8] sm:$0xff]
        %v3428 = vld [vmem:[%s3425 + $0x10] sm:$0xff]
        %v3429 = vld [vmem:[%s3425 + $0x18] sm:$0xff]
        %v3430 = vld [vmem:[%s3425 + $0x20] sm:$0xff]
        %v3431 = vld [vmem:[%s3425 + $0x28] sm:$0xff]
        %v3432 = vld [vmem:[%s3425 + $0x30] sm:$0xff]
        %v3433 = vld [vmem:[%s3425 + $0x38] sm:$0xff]
        %v3434 = vld [vmem:[%s3425 + $0x40] sm:$0xff]
        %v3435 = vld [vmem:[%s3425 + $0x48] sm:$0xff]
        %v3436 = vld [vmem:[%s3425 + $0x50] sm:$0xff]
        %v3437 = vld [vmem:[%s3425 + $0x58] sm:$0xff]
        %v3438 = vld [vmem:[%s3425 + $0x60] sm:$0xff]
        %v3439 = vld [vmem:[%s3425 + $0x68] sm:$0xff]
        %v3440 = vld [vmem:[%s3425 + $0x70] sm:$0xff]
        %v3441 = vld [vmem:[%s3425 + $0x78] sm:$0xff]
        %v3442 = vld [vmem:[%s3425 + $0x80] sm:$0xff]
        %v3443 = vld [vmem:[%s3425 + $0x88] sm:$0xff]
        %v3444 = vld [vmem:[%s3425 + $0x90] sm:$0xff]
        %v3445 = vld [vmem:[%s3425 + $0x98] sm:$0xff]
        %v3446 = vld [vmem:[%s3425 + $0xa0] sm:$0xff]
        %v3447 = vld [vmem:[%s3425 + $0xa8] sm:$0xff]
        %v3448 = vld [vmem:[%s3425 + $0xb0] sm:$0xff]
        %v3449 = vld [vmem:[%s3425 + $0xb8] sm:$0xff]
        %v3450 = vld [vmem:[%s3425 + $0xc0] sm:$0xff]
        %v3451 = vld [vmem:[%s3425 + $0xc8] sm:$0xff]
        %v3452 = vld [vmem:[%s3425 + $0xd0] sm:$0xff]
        %v3453 = vld [vmem:[%s3425 + $0xd8] sm:$0xff]
        %v3454 = vld [vmem:[%s3425 + $0xe0] sm:$0xff]
        %v3455 = vld [vmem:[%s3425 + $0xe8] sm:$0xff]
        %v3456 = vld [vmem:[%s3425 + $0xf0] sm:$0xff]
        %v3457 = vld [vmem:[%s3425 + $0xf8] sm:$0xff]
        %v3458 = vld [vmem:[%s3425 + $0x100] sm:$0xff]
        %v3459 = vld [vmem:[%s3425 + $0x108] sm:$0xff]
        %v3460 = vld [vmem:[%s3425 + $0x110] sm:$0xff]
        %v3461 = vld [vmem:[%s3425 + $0x118] sm:$0xff]
        %v3462 = vld [vmem:[%s3425 + $0x120] sm:$0xff]
        %v3463 = vld [vmem:[%s3425 + $0x128] sm:$0xff]
        %v3464 = vld [vmem:[%s3425 + $0x130] sm:$0xff]
        %v3465 = vld [vmem:[%s3425 + $0x138] sm:$0xff]
        %v3466 = vld [vmem:[%s3425 + $0x140] sm:$0xff]
        %v3467 = vld [vmem:[%s3425 + $0x148] sm:$0xff]
        %v3468 = vld [vmem:[%s3425 + $0x150] sm:$0xff]
        %v3469 = vld [vmem:[%s3425 + $0x158] sm:$0xff]
        %v3470 = vld [vmem:[%s3425 + $0x160] sm:$0xff]
        %v3471 = vrot.slane %v2054, 3
        %v3472 = vsel %vm684, %v3471, 0
        %3474 = vmatprep.subr.mxu0 %v3427
        %3475 = vmatpush1.msra.mxu0 %v3426
        %3476 = vmatprep.subr.mxu0 %v3430
        %3477 = vmatpush1.msra.mxu0 %v3429
        %3478 = vmatprep.subr.mxu0 %v3433
        %3479 = vmatpush1.msra.mxu0 %v3432
        %3480 = vmatprep.subr.mxu0 %v3436
        %3481 = vmatpush1.msra.mxu0 %v3435
        %3482 = vmatprep.subr.mxu0 %v3439
        %3483 = vmatpush1.msra.mxu0 %v3438
        %3484 = vmatprep.subr.mxu0 %v3442
        %3485 = vmatpush1.msra.mxu0 %v3441
        %3486 = vmatprep.subr.mxu0 %v3445
        %3487 = vmatpush1.msra.mxu0 %v3444
        %3488 = vmatprep.subr.mxu0 %v3448
        %3489 = vmatpush1.msra.mxu0 %v3447
        %3490 = vmatprep.subr.mxu0 %v3451
        %3491 = vmatpush1.msra.mxu0 %v3450
        %3492 = vmatprep.subr.mxu0 %v3454
        %3493 = vmatpush1.msra.mxu0 %v3453
        %3494 = vmatprep.subr.mxu0 %v3457
        %3495 = vmatpush1.msra.mxu0 %v3456
        %3496 = vmatprep.subr.mxu0 %v3460
        %3497 = vmatpush1.msra.mxu0 %v3459
        %3498 = vmatprep.subr.mxu0 %v3463
        %3499 = vmatpush1.msra.mxu0 %v3462
        %3500 = vmatprep.subr.mxu0 %v3466
        %3501 = vmatpush1.msra.mxu0 %v3465
        %3502 = vmatprep.subr.mxu0 %v3469
        %3503 = vmatpush1.msra.mxu0 %v3468
        %3504 = vmatprep.subr.mxu0 0.0
        %3505 = vmatpush1.msra.mxu0 0.0
        %3506 = vmatprep.subr.mxu0 0.0
        %3507 = vmatpush1.msra.mxu0 0.0
        %3508 = vmatprep.subr.mxu0 0.0
        %3509 = vmatpush1.msra.mxu0 0.0
        %3510 = vmatprep.subr.mxu0 0.0
        %3511 = vmatpush1.msra.mxu0 0.0
        %3512 = vmatprep.subr.mxu0 0.0
        %3513 = vmatpush1.msra.mxu0 0.0
        %3514 = vmatprep.subr.mxu0 0.0
        %3515 = vmatpush1.msra.mxu0 0.0
        %3516 = vmatprep.subr.mxu0 0.0
        %3517 = vmatpush1.msra.mxu0 0.0
        %3518 = vmatprep.subr.mxu0 0.0
        %3519 = vmatpush1.msra.mxu0 0.0
        %3520 = vmatprep.subr.mxu0 0.0
        %3521 = vmatpush1.msra.mxu0 0.0
        %3522 = vmatprep.subr.mxu0 0.0
        %3523 = vmatpush1.msra.mxu0 0.0
        %3524 = vmatprep.subr.mxu0 0.0
        %3525 = vmatpush1.msra.mxu0 0.0
        %3526 = vmatprep.subr.mxu0 0.0
        %3527 = vmatpush1.msra.mxu0 0.0
        %3528 = vmatprep.subr.mxu0 0.0
        %3529 = vmatpush1.msra.mxu0 0.0
        %3530 = vmatprep.subr.mxu0 0.0
        %3531 = vmatpush1.msra.mxu0 0.0
        %3532 = vmatprep.subr.mxu0 0.0
        %3533 = vmatpush1.msra.mxu0 0.0
        %3534 = vmatprep.subr.mxu0 0.0
        %3535 = vmatpush1.msra.mxu0 0.0
        %3536 = vmatprep.subr.mxu0 0.0
        %3537 = vmatpush1.msra.mxu0 0.0
        %3538 = vmatprep.mubr.f32.mxu0 0.0
        %3539 = vmatmul.mubr.f32.gmra.mrb[0].mxu0 %v3472
        %v3540 = vpop.f32.mrb[0].mxu0
        %v3541 = vadd.f32 0.0, %v3540
        %v3542 = vpop.f32.mrb[0].mxu0
        %v3543 = vadd.f32 0.0, %v3542
        %3544 = vdwg.mxu0
        %3545 = vmatprep.subr.mxu0 0.0
        %3546 = vmatpush1.msra.mxu0 %v3428
        %3547 = vmatprep.subr.mxu0 0.0
        %3548 = vmatpush1.msra.mxu0 %v3431
        %3549 = vmatprep.subr.mxu0 0.0
        %3550 = vmatpush1.msra.mxu0 %v3434
        %3551 = vmatprep.subr.mxu0 0.0
        %3552 = vmatpush1.msra.mxu0 %v3437
        %3553 = vmatprep.subr.mxu0 0.0
        %3554 = vmatpush1.msra.mxu0 %v3440
        %3555 = vmatprep.subr.mxu0 0.0
        %3556 = vmatpush1.msra.mxu0 %v3443
        %3557 = vmatprep.subr.mxu0 0.0
        %3558 = vmatpush1.msra.mxu0 %v3446
        %3559 = vmatprep.subr.mxu0 0.0
        %3560 = vmatpush1.msra.mxu0 %v3449
        %3561 = vmatprep.subr.mxu0 0.0
        %3562 = vmatpush1.msra.mxu0 %v3452
        %3563 = vmatprep.subr.mxu0 0.0
        %3564 = vmatpush1.msra.mxu0 %v3455
        %3565 = vmatprep.subr.mxu0 0.0
        %3566 = vmatpush1.msra.mxu0 %v3458
        %3567 = vmatprep.subr.mxu0 0.0
        %3568 = vmatpush1.msra.mxu0 %v3461
        %3569 = vmatprep.subr.mxu0 0.0
        %3570 = vmatpush1.msra.mxu0 %v3464
        %3571 = vmatprep.subr.mxu0 0.0
        %3572 = vmatpush1.msra.mxu0 %v3467
        %3573 = vmatprep.subr.mxu0 0.0
        %3574 = vmatpush1.msra.mxu0 %v3470
        %3575 = vmatprep.subr.mxu0 0.0
        %3576 = vmatpush1.msra.mxu0 0.0
        %3577 = vmatprep.subr.mxu0 0.0
        %3578 = vmatpush1.msra.mxu0 0.0
        %3579 = vmatprep.subr.mxu0 0.0
        %3580 = vmatpush1.msra.mxu0 0.0
        %3581 = vmatprep.subr.mxu0 0.0
        %3582 = vmatpush1.msra.mxu0 0.0
        %3583 = vmatprep.subr.mxu0 0.0
        %3584 = vmatpush1.msra.mxu0 0.0
        %3585 = vmatprep.subr.mxu0 0.0
        %3586 = vmatpush1.msra.mxu0 0.0
        %3587 = vmatprep.subr.mxu0 0.0
        %3588 = vmatpush1.msra.mxu0 0.0
        %3589 = vmatprep.subr.mxu0 0.0
        %3590 = vmatpush1.msra.mxu0 0.0
        %3591 = vmatprep.subr.mxu0 0.0
        %3592 = vmatpush1.msra.mxu0 0.0
        %3593 = vmatprep.subr.mxu0 0.0
        %3594 = vmatpush1.msra.mxu0 0.0
        %3595 = vmatprep.subr.mxu0 0.0
        %3596 = vmatpush1.msra.mxu0 0.0
        %3597 = vmatprep.subr.mxu0 0.0
        %3598 = vmatpush1.msra.mxu0 0.0
        %3599 = vmatprep.subr.mxu0 0.0
        %3600 = vmatpush1.msra.mxu0 0.0
        %3601 = vmatprep.subr.mxu0 0.0
        %3602 = vmatpush1.msra.mxu0 0.0
        %3603 = vmatprep.subr.mxu0 0.0
        %3604 = vmatpush1.msra.mxu0 0.0
        %3605 = vmatprep.subr.mxu0 0.0
        %3606 = vmatpush1.msra.mxu0 0.0
        %3607 = vmatprep.subr.mxu0 0.0
        %3608 = vmatpush1.msra.mxu0 0.0
        %3609 = vmatprep.mubr.f32.mxu0 0.0
        %3610 = vmatmul.mubr.f32.gmra.mrb[0].mxu0 %v3472
        %v3611 = vpop.f32.mrb[0].mxu0
        %v3612 = vadd.f32 0.0, %v3611
        %v3613 = vpop.f32.mrb[0].mxu0
        %3614 = vdwg.mxu0
        %v3618 = vcombine.low %v2171, %v2173
        %v3620 = vunpack.c.l.s4 1966171168
        %v3621 = vunpack.c.0.s8 %v3620
        %v3622 = vlaneseq
        %v3623 = vshrl.u32 %v3622, 7
        %v3624 = vsub.s32 %v3621, %v3623
        %v3625 = vrot.slane %v3618, %v3624
        %v3627 = vunpack.c.l.s4 1966171168
        %v3628 = vunpack.c.0.s8 %v3627
        %v3629 = vlaneseq
        %v3630 = vshrl.u32 %v3629, 7
        %v3631 = vsub.s32 %v3628, %v3630
        %v3632 = vrot.slane %v2242, %v3631
        %v3633 = vcombine.low %v3625, %v3632
        %v3635 = vunpack.c.l.s4 1966171168
        %v3636 = vunpack.c.0.s8 %v3635
        %v3637 = vlaneseq
        %v3638 = vshrl.u32 %v3637, 7
        %v3639 = vsub.s32 %v3636, %v3638
        %v3640 = vrot.slane %v3633, %v3639
        %v3642 = vadd.f32 %v2055, %v3640
        %v3643 = vrot.slane %v2053, 1
        %v3644 = vsel %vm684, %v3643, 0
        %3646 = vmatprep.subr.mxu0 %v2247
        %3647 = vmatpush1.msra.mxu0 %v2246
        %3648 = vmatprep.subr.mxu0 %v2250
        %3649 = vmatpush1.msra.mxu0 %v2249
        %3650 = vmatprep.subr.mxu0 %v2253
        %3651 = vmatpush1.msra.mxu0 %v2252
        %3652 = vmatprep.subr.mxu0 %v2256
        %3653 = vmatpush1.msra.mxu0 %v2255
        %3654 = vmatprep.subr.mxu0 %v2259
        %3655 = vmatpush1.msra.mxu0 %v2258
        %3656 = vmatprep.subr.mxu0 %v2262
        %3657 = vmatpush1.msra.mxu0 %v2261
        %3658 = vmatprep.subr.mxu0 %v2265
        %3659 = vmatpush1.msra.mxu0 %v2264
        %3660 = vmatprep.subr.mxu0 %v2268
        %3661 = vmatpush1.msra.mxu0 %v2267
        %3662 = vmatprep.subr.mxu0 %v2271
        %3663 = vmatpush1.msra.mxu0 %v2270
        %3664 = vmatprep.subr.mxu0 %v2274
        %3665 = vmatpush1.msra.mxu0 %v2273
        %3666 = vmatprep.subr.mxu0 %v2277
        %3667 = vmatpush1.msra.mxu0 %v2276
        %3668 = vmatprep.subr.mxu0 %v2280
        %3669 = vmatpush1.msra.mxu0 %v2279
        %3670 = vmatprep.subr.mxu0 %v2283
        %3671 = vmatpush1.msra.mxu0 %v2282
        %3672 = vmatprep.subr.mxu0 %v2286
        %3673 = vmatpush1.msra.mxu0 %v2285
        %3674 = vmatprep.subr.mxu0 %v2289
        %3675 = vmatpush1.msra.mxu0 %v2288
        %3676 = vmatprep.subr.mxu0 0.0
        %3677 = vmatpush1.msra.mxu0 0.0
        %3678 = vmatprep.subr.mxu0 0.0
        %3679 = vmatpush1.msra.mxu0 0.0
        %3680 = vmatprep.subr.mxu0 0.0
        %3681 = vmatpush1.msra.mxu0 0.0
        %3682 = vmatprep.subr.mxu0 0.0
        %3683 = vmatpush1.msra.mxu0 0.0
        %3684 = vmatprep.subr.mxu0 0.0
        %3685 = vmatpush1.msra.mxu0 0.0
        %3686 = vmatprep.subr.mxu0 0.0
        %3687 = vmatpush1.msra.mxu0 0.0
        %3688 = vmatprep.subr.mxu0 0.0
        %3689 = vmatpush1.msra.mxu0 0.0
        %3690 = vmatprep.subr.mxu0 0.0
        %3691 = vmatpush1.msra.mxu0 0.0
        %3692 = vmatprep.subr.mxu0 0.0
        %3693 = vmatpush1.msra.mxu0 0.0
        %3694 = vmatprep.subr.mxu0 0.0
        %3695 = vmatpush1.msra.mxu0 0.0
        %3696 = vmatprep.subr.mxu0 0.0
        %3697 = vmatpush1.msra.mxu0 0.0
        %3698 = vmatprep.subr.mxu0 0.0
        %3699 = vmatpush1.msra.mxu0 0.0
        %3700 = vmatprep.subr.mxu0 0.0
        %3701 = vmatpush1.msra.mxu0 0.0
        %3702 = vmatprep.subr.mxu0 0.0
        %3703 = vmatpush1.msra.mxu0 0.0
        %3704 = vmatprep.subr.mxu0 0.0
        %3705 = vmatpush1.msra.mxu0 0.0
        %3706 = vmatprep.subr.mxu0 0.0
        %3707 = vmatpush1.msra.mxu0 0.0
        %3708 = vmatprep.subr.mxu0 0.0
        %3709 = vmatpush1.msra.mxu0 0.0
        %3710 = vmatprep.mubr.f32.mxu0 0.0
        %3711 = vmatmul.mubr.f32.gmra.mrb[0].mxu0 %v3644
        %v3712 = vpop.f32.mrb[0].mxu0
        %v3713 = vadd.f32 %v2407, %v3712
        %v3714 = vpop.f32.mrb[0].mxu0
        %v3715 = vadd.f32 %v2409, %v3714
        %3716 = vdwg.mxu0
        %3717 = vmatprep.subr.mxu0 0.0
        %3718 = vmatpush1.msra.mxu0 %v2248
        %3719 = vmatprep.subr.mxu0 0.0
        %3720 = vmatpush1.msra.mxu0 %v2251
        %3721 = vmatprep.subr.mxu0 0.0
        %3722 = vmatpush1.msra.mxu0 %v2254
        %3723 = vmatprep.subr.mxu0 0.0
        %3724 = vmatpush1.msra.mxu0 %v2257
        %3725 = vmatprep.subr.mxu0 0.0
        %3726 = vmatpush1.msra.mxu0 %v2260
        %3727 = vmatprep.subr.mxu0 0.0
        %3728 = vmatpush1.msra.mxu0 %v2263
        %3729 = vmatprep.subr.mxu0 0.0
        %3730 = vmatpush1.msra.mxu0 %v2266
        %3731 = vmatprep.subr.mxu0 0.0
        %3732 = vmatpush1.msra.mxu0 %v2269
        %3733 = vmatprep.subr.mxu0 0.0
        %3734 = vmatpush1.msra.mxu0 %v2272
        %3735 = vmatprep.subr.mxu0 0.0
        %3736 = vmatpush1.msra.mxu0 %v2275
        %3737 = vmatprep.subr.mxu0 0.0
        %3738 = vmatpush1.msra.mxu0 %v2278
        %3739 = vmatprep.subr.mxu0 0.0
        %3740 = vmatpush1.msra.mxu0 %v2281
        %3741 = vmatprep.subr.mxu0 0.0
        %3742 = vmatpush1.msra.mxu0 %v2284
        %3743 = vmatprep.subr.mxu0 0.0
        %3744 = vmatpush1.msra.mxu0 %v2287
        %3745 = vmatprep.subr.mxu0 0.0
        %3746 = vmatpush1.msra.mxu0 %v2290
        %3747 = vmatprep.subr.mxu0 0.0
        %3748 = vmatpush1.msra.mxu0 0.0
        %3749 = vmatprep.subr.mxu0 0.0
        %3750 = vmatpush1.msra.mxu0 0.0
        %3751 = vmatprep.subr.mxu0 0.0
        %3752 = vmatpush1.msra.mxu0 0.0
        %3753 = vmatprep.subr.mxu0 0.0
        %3754 = vmatpush1.msra.mxu0 0.0
        %3755 = vmatprep.subr.mxu0 0.0
        %3756 = vmatpush1.msra.mxu0 0.0
        %3757 = vmatprep.subr.mxu0 0.0
        %3758 = vmatpush1.msra.mxu0 0.0
        %3759 = vmatprep.subr.mxu0 0.0
        %3760 = vmatpush1.msra.mxu0 0.0
        %3761 = vmatprep.subr.mxu0 0.0
        %3762 = vmatpush1.msra.mxu0 0.0
        %3763 = vmatprep.subr.mxu0 0.0
        %3764 = vmatpush1.msra.mxu0 0.0
        %3765 = vmatprep.subr.mxu0 0.0
        %3766 = vmatpush1.msra.mxu0 0.0
        %3767 = vmatprep.subr.mxu0 0.0
        %3768 = vmatpush1.msra.mxu0 0.0
        %3769 = vmatprep.subr.mxu0 0.0
        %3770 = vmatpush1.msra.mxu0 0.0
        %3771 = vmatprep.subr.mxu0 0.0
        %3772 = vmatpush1.msra.mxu0 0.0
        %3773 = vmatprep.subr.mxu0 0.0
        %3774 = vmatpush1.msra.mxu0 0.0
        %3775 = vmatprep.subr.mxu0 0.0
        %3776 = vmatpush1.msra.mxu0 0.0
        %3777 = vmatprep.subr.mxu0 0.0
        %3778 = vmatpush1.msra.mxu0 0.0
        %3779 = vmatprep.subr.mxu0 0.0
        %3780 = vmatpush1.msra.mxu0 0.0
        %3781 = vmatprep.mubr.f32.mxu0 0.0
        %3782 = vmatmul.mubr.f32.gmra.mrb[0].mxu0 %v3644
        %v3783 = vpop.f32.mrb[0].mxu0
        %v3784 = vadd.f32 %v2478, %v3783
        %v3785 = vpop.f32.mrb[0].mxu0
        %3786 = vdwg.mxu0
        %v3787 = vrot.slane %v2053, 3
        %v3788 = vsel %vm684, %v3787, 0
        %3790 = vmatprep.subr.mxu0 %v2483
        %3791 = vmatpush1.msra.mxu0 %v2482
        %3792 = vmatprep.subr.mxu0 %v2486
        %3793 = vmatpush1.msra.mxu0 %v2485
        %3794 = vmatprep.subr.mxu0 %v2489
        %3795 = vmatpush1.msra.mxu0 %v2488
        %3796 = vmatprep.subr.mxu0 %v2492
        %3797 = vmatpush1.msra.mxu0 %v2491
        %3798 = vmatprep.subr.mxu0 %v2495
        %3799 = vmatpush1.msra.mxu0 %v2494
        %3800 = vmatprep.subr.mxu0 %v2498
        %3801 = vmatpush1.msra.mxu0 %v2497
        %3802 = vmatprep.subr.mxu0 %v2501
        %3803 = vmatpush1.msra.mxu0 %v2500
        %3804 = vmatprep.subr.mxu0 %v2504
        %3805 = vmatpush1.msra.mxu0 %v2503
        %3806 = vmatprep.subr.mxu0 %v2507
        %3807 = vmatpush1.msra.mxu0 %v2506
        %3808 = vmatprep.subr.mxu0 %v2510
        %3809 = vmatpush1.msra.mxu0 %v2509
        %3810 = vmatprep.subr.mxu0 %v2513
        %3811 = vmatpush1.msra.mxu0 %v2512
        %3812 = vmatprep.subr.mxu0 %v2516
        %3813 = vmatpush1.msra.mxu0 %v2515
        %3814 = vmatprep.subr.mxu0 %v2519
        %3815 = vmatpush1.msra.mxu0 %v2518
        %3816 = vmatprep.subr.mxu0 %v2522
        %3817 = vmatpush1.msra.mxu0 %v2521
        %3818 = vmatprep.subr.mxu0 %v2525
        %3819 = vmatpush1.msra.mxu0 %v2524
        %3820 = vmatprep.subr.mxu0 0.0
        %3821 = vmatpush1.msra.mxu0 0.0
        %3822 = vmatprep.subr.mxu0 0.0
        %3823 = vmatpush1.msra.mxu0 0.0
        %3824 = vmatprep.subr.mxu0 0.0
        %3825 = vmatpush1.msra.mxu0 0.0
        %3826 = vmatprep.subr.mxu0 0.0
        %3827 = vmatpush1.msra.mxu0 0.0
        %3828 = vmatprep.subr.mxu0 0.0
        %3829 = vmatpush1.msra.mxu0 0.0
        %3830 = vmatprep.subr.mxu0 0.0
        %3831 = vmatpush1.msra.mxu0 0.0
        %3832 = vmatprep.subr.mxu0 0.0
        %3833 = vmatpush1.msra.mxu0 0.0
        %3834 = vmatprep.subr.mxu0 0.0
        %3835 = vmatpush1.msra.mxu0 0.0
        %3836 = vmatprep.subr.mxu0 0.0
        %3837 = vmatpush1.msra.mxu0 0.0
        %3838 = vmatprep.subr.mxu0 0.0
        %3839 = vmatpush1.msra.mxu0 0.0
        %3840 = vmatprep.subr.mxu0 0.0
        %3841 = vmatpush1.msra.mxu0 0.0
        %3842 = vmatprep.subr.mxu0 0.0
        %3843 = vmatpush1.msra.mxu0 0.0
        %3844 = vmatprep.subr.mxu0 0.0
        %3845 = vmatpush1.msra.mxu0 0.0
        %3846 = vmatprep.subr.mxu0 0.0
        %3847 = vmatpush1.msra.mxu0 0.0
        %3848 = vmatprep.subr.mxu0 0.0
        %3849 = vmatpush1.msra.mxu0 0.0
        %3850 = vmatprep.subr.mxu0 0.0
        %3851 = vmatpush1.msra.mxu0 0.0
        %3852 = vmatprep.subr.mxu0 0.0
        %3853 = vmatpush1.msra.mxu0 0.0
        %3854 = vmatprep.mubr.f32.mxu0 0.0
        %3855 = vmatmul.mubr.f32.gmra.mrb[0].mxu0 %v3788
        %v3856 = vpop.f32.mrb[0].mxu0
        %v3857 = vadd.f32 %v2643, %v3856
        %v3858 = vpop.f32.mrb[0].mxu0
        %v3859 = vadd.f32 %v2645, %v3858
        %3860 = vdwg.mxu0
        %3861 = vmatprep.subr.mxu0 0.0
        %3862 = vmatpush1.msra.mxu0 %v2484
        %3863 = vmatprep.subr.mxu0 0.0
        %3864 = vmatpush1.msra.mxu0 %v2487
        %3865 = vmatprep.subr.mxu0 0.0
        %3866 = vmatpush1.msra.mxu0 %v2490
        %3867 = vmatprep.subr.mxu0 0.0
        %3868 = vmatpush1.msra.mxu0 %v2493
        %3869 = vmatprep.subr.mxu0 0.0
        %3870 = vmatpush1.msra.mxu0 %v2496
        %3871 = vmatprep.subr.mxu0 0.0
        %3872 = vmatpush1.msra.mxu0 %v2499
        %3873 = vmatprep.subr.mxu0 0.0
        %3874 = vmatpush1.msra.mxu0 %v2502
        %3875 = vmatprep.subr.mxu0 0.0
        %3876 = vmatpush1.msra.mxu0 %v2505
        %3877 = vmatprep.subr.mxu0 0.0
        %3878 = vmatpush1.msra.mxu0 %v2508
        %3879 = vmatprep.subr.mxu0 0.0
        %3880 = vmatpush1.msra.mxu0 %v2511
        %3881 = vmatprep.subr.mxu0 0.0
        %3882 = vmatpush1.msra.mxu0 %v2514
        %3883 = vmatprep.subr.mxu0 0.0
        %3884 = vmatpush1.msra.mxu0 %v2517
        %3885 = vmatprep.subr.mxu0 0.0
        %3886 = vmatpush1.msra.mxu0 %v2520
        %3887 = vmatprep.subr.mxu0 0.0
        %3888 = vmatpush1.msra.mxu0 %v2523
        %3889 = vmatprep.subr.mxu0 0.0
        %3890 = vmatpush1.msra.mxu0 %v2526
        %3891 = vmatprep.subr.mxu0 0.0
        %3892 = vmatpush1.msra.mxu0 0.0
        %3893 = vmatprep.subr.mxu0 0.0
        %3894 = vmatpush1.msra.mxu0 0.0
        %3895 = vmatprep.subr.mxu0 0.0
        %3896 = vmatpush1.msra.mxu0 0.0
        %3897 = vmatprep.subr.mxu0 0.0
        %3898 = vmatpush1.msra.mxu0 0.0
        %3899 = vmatprep.subr.mxu0 0.0
        %3900 = vmatpush1.msra.mxu0 0.0
        %3901 = vmatprep.subr.mxu0 0.0
        %3902 = vmatpush1.msra.mxu0 0.0
        %3903 = vmatprep.subr.mxu0 0.0
        %3904 = vmatpush1.msra.mxu0 0.0
        %3905 = vmatprep.subr.mxu0 0.0
        %3906 = vmatpush1.msra.mxu0 0.0
        %3907 = vmatprep.subr.mxu0 0.0
        %3908 = vmatpush1.msra.mxu0 0.0
        %3909 = vmatprep.subr.mxu0 0.0
        %3910 = vmatpush1.msra.mxu0 0.0
        %3911 = vmatprep.subr.mxu0 0.0
        %3912 = vmatpush1.msra.mxu0 0.0
        %3913 = vmatprep.subr.mxu0 0.0
        %3914 = vmatpush1.msra.mxu0 0.0
        %3915 = vmatprep.subr.mxu0 0.0
        %3916 = vmatpush1.msra.mxu0 0.0
        %3917 = vmatprep.subr.mxu0 0.0
        %3918 = vmatpush1.msra.mxu0 0.0
        %3919 = vmatprep.subr.mxu0 0.0
        %3920 = vmatpush1.msra.mxu0 0.0
        %3921 = vmatprep.subr.mxu0 0.0
        %3922 = vmatpush1.msra.mxu0 0.0
        %3923 = vmatprep.subr.mxu0 0.0
        %3924 = vmatpush1.msra.mxu0 0.0
        %3925 = vmatprep.mubr.f32.mxu0 0.0
        %3926 = vmatmul.mubr.f32.gmra.mrb[0].mxu0 %v3788
        %v3927 = vpop.f32.mrb[0].mxu0
        %v3928 = vadd.f32 %v2714, %v3927
        %v3929 = vpop.f32.mrb[0].mxu0
        %3930 = vdwg.mxu0
        %v3931 = vrot.slane %v2053, 5
        %v3932 = vsel %vm684, %v3931, 0
        %3934 = vmatprep.subr.mxu0 %v2719
        %3935 = vmatpush1.msra.mxu0 %v2718
        %3936 = vmatprep.subr.mxu0 %v2722
        %3937 = vmatpush1.msra.mxu0 %v2721
        %3938 = vmatprep.subr.mxu0 %v2725
        %3939 = vmatpush1.msra.mxu0 %v2724
        %3940 = vmatprep.subr.mxu0 %v2728
        %3941 = vmatpush1.msra.mxu0 %v2727
        %3942 = vmatprep.subr.mxu0 %v2731
        %3943 = vmatpush1.msra.mxu0 %v2730
        %3944 = vmatprep.subr.mxu0 %v2734
        %3945 = vmatpush1.msra.mxu0 %v2733
        %3946 = vmatprep.subr.mxu0 %v2737
        %3947 = vmatpush1.msra.mxu0 %v2736
        %3948 = vmatprep.subr.mxu0 %v2740
        %3949 = vmatpush1.msra.mxu0 %v2739
        %3950 = vmatprep.subr.mxu0 %v2743
        %3951 = vmatpush1.msra.mxu0 %v2742
        %3952 = vmatprep.subr.mxu0 %v2746
        %3953 = vmatpush1.msra.mxu0 %v2745
        %3954 = vmatprep.subr.mxu0 %v2749
        %3955 = vmatpush1.msra.mxu0 %v2748
        %3956 = vmatprep.subr.mxu0 %v2752
        %3957 = vmatpush1.msra.mxu0 %v2751
        %3958 = vmatprep.subr.mxu0 %v2755
        %3959 = vmatpush1.msra.mxu0 %v2754
        %3960 = vmatprep.subr.mxu0 %v2758
        %3961 = vmatpush1.msra.mxu0 %v2757
        %3962 = vmatprep.subr.mxu0 %v2761
        %3963 = vmatpush1.msra.mxu0 %v2760
        %3964 = vmatprep.subr.mxu0 0.0
        %3965 = vmatpush1.msra.mxu0 0.0
        %3966 = vmatprep.subr.mxu0 0.0
        %3967 = vmatpush1.msra.mxu0 0.0
        %3968 = vmatprep.subr.mxu0 0.0
        %3969 = vmatpush1.msra.mxu0 0.0
        %3970 = vmatprep.subr.mxu0 0.0
        %3971 = vmatpush1.msra.mxu0 0.0
        %3972 = vmatprep.subr.mxu0 0.0
        %3973 = vmatpush1.msra.mxu0 0.0
        %3974 = vmatprep.subr.mxu0 0.0
        %3975 = vmatpush1.msra.mxu0 0.0
        %3976 = vmatprep.subr.mxu0 0.0
        %3977 = vmatpush1.msra.mxu0 0.0
        %3978 = vmatprep.subr.mxu0 0.0
        %3979 = vmatpush1.msra.mxu0 0.0
        %3980 = vmatprep.subr.mxu0 0.0
        %3981 = vmatpush1.msra.mxu0 0.0
        %3982 = vmatprep.subr.mxu0 0.0
        %3983 = vmatpush1.msra.mxu0 0.0
        %3984 = vmatprep.subr.mxu0 0.0
        %3985 = vmatpush1.msra.mxu0 0.0
        %3986 = vmatprep.subr.mxu0 0.0
        %3987 = vmatpush1.msra.mxu0 0.0
        %3988 = vmatprep.subr.mxu0 0.0
        %3989 = vmatpush1.msra.mxu0 0.0
        %3990 = vmatprep.subr.mxu0 0.0
        %3991 = vmatpush1.msra.mxu0 0.0
        %3992 = vmatprep.subr.mxu0 0.0
        %3993 = vmatpush1.msra.mxu0 0.0
        %3994 = vmatprep.subr.mxu0 0.0
        %3995 = vmatpush1.msra.mxu0 0.0
        %3996 = vmatprep.subr.mxu0 0.0
        %3997 = vmatpush1.msra.mxu0 0.0
        %3998 = vmatprep.mubr.f32.mxu0 0.0
        %3999 = vmatmul.mubr.f32.gmra.mrb[0].mxu0 %v3932
        %v4000 = vpop.f32.mrb[0].mxu0
        %v4001 = vadd.f32 %v2879, %v4000
        %v4002 = vpop.f32.mrb[0].mxu0
        %v4003 = vadd.f32 %v2881, %v4002
        %4004 = vdwg.mxu0
        %4005 = vmatprep.subr.mxu0 0.0
        %4006 = vmatpush1.msra.mxu0 %v2720
        %4007 = vmatprep.subr.mxu0 0.0
        %4008 = vmatpush1.msra.mxu0 %v2723
        %4009 = vmatprep.subr.mxu0 0.0
        %4010 = vmatpush1.msra.mxu0 %v2726
        %4011 = vmatprep.subr.mxu0 0.0
        %4012 = vmatpush1.msra.mxu0 %v2729
        %4013 = vmatprep.subr.mxu0 0.0
        %4014 = vmatpush1.msra.mxu0 %v2732
        %4015 = vmatprep.subr.mxu0 0.0
        %4016 = vmatpush1.msra.mxu0 %v2735
        %4017 = vmatprep.subr.mxu0 0.0
        %4018 = vmatpush1.msra.mxu0 %v2738
        %4019 = vmatprep.subr.mxu0 0.0
        %4020 = vmatpush1.msra.mxu0 %v2741
        %4021 = vmatprep.subr.mxu0 0.0
        %4022 = vmatpush1.msra.mxu0 %v2744
        %4023 = vmatprep.subr.mxu0 0.0
        %4024 = vmatpush1.msra.mxu0 %v2747
        %4025 = vmatprep.subr.mxu0 0.0
        %4026 = vmatpush1.msra.mxu0 %v2750
        %4027 = vmatprep.subr.mxu0 0.0
        %4028 = vmatpush1.msra.mxu0 %v2753
        %4029 = vmatprep.subr.mxu0 0.0
        %4030 = vmatpush1.msra.mxu0 %v2756
        %4031 = vmatprep.subr.mxu0 0.0
        %4032 = vmatpush1.msra.mxu0 %v2759
        %4033 = vmatprep.subr.mxu0 0.0
        %4034 = vmatpush1.msra.mxu0 %v2762
        %4035 = vmatprep.subr.mxu0 0.0
        %4036 = vmatpush1.msra.mxu0 0.0
        %4037 = vmatprep.subr.mxu0 0.0
        %4038 = vmatpush1.msra.mxu0 0.0
        %4039 = vmatprep.subr.mxu0 0.0
        %4040 = vmatpush1.msra.mxu0 0.0
        %4041 = vmatprep.subr.mxu0 0.0
        %4042 = vmatpush1.msra.mxu0 0.0
        %4043 = vmatprep.subr.mxu0 0.0
        %4044 = vmatpush1.msra.mxu0 0.0
        %4045 = vmatprep.subr.mxu0 0.0
        %4046 = vmatpush1.msra.mxu0 0.0
        %4047 = vmatprep.subr.mxu0 0.0
        %4048 = vmatpush1.msra.mxu0 0.0
        %4049 = vmatprep.subr.mxu0 0.0
        %4050 = vmatpush1.msra.mxu0 0.0
        %4051 = vmatprep.subr.mxu0 0.0
        %4052 = vmatpush1.msra.mxu0 0.0
        %4053 = vmatprep.subr.mxu0 0.0
        %4054 = vmatpush1.msra.mxu0 0.0
        %4055 = vmatprep.subr.mxu0 0.0
        %4056 = vmatpush1.msra.mxu0 0.0
        %4057 = vmatprep.subr.mxu0 0.0
        %4058 = vmatpush1.msra.mxu0 0.0
        %4059 = vmatprep.subr.mxu0 0.0
        %4060 = vmatpush1.msra.mxu0 0.0
        %4061 = vmatprep.subr.mxu0 0.0
        %4062 = vmatpush1.msra.mxu0 0.0
        %4063 = vmatprep.subr.mxu0 0.0
        %4064 = vmatpush1.msra.mxu0 0.0
        %4065 = vmatprep.subr.mxu0 0.0
        %4066 = vmatpush1.msra.mxu0 0.0
        %4067 = vmatprep.subr.mxu0 0.0
        %4068 = vmatpush1.msra.mxu0 0.0
        %4069 = vmatprep.mubr.f32.mxu0 0.0
        %4070 = vmatmul.mubr.f32.gmra.mrb[0].mxu0 %v3932
        %v4071 = vpop.f32.mrb[0].mxu0
        %v4072 = vadd.f32 %v2950, %v4071
        %v4073 = vpop.f32.mrb[0].mxu0
        %4074 = vdwg.mxu0
        %v4075 = vrot.slane %v2053, 7
        %v4076 = vsel %vm684, %v4075, 0
        %4078 = vmatprep.subr.mxu0 %v2955
        %4079 = vmatpush1.msra.mxu0 %v2954
        %4080 = vmatprep.subr.mxu0 %v2958
        %4081 = vmatpush1.msra.mxu0 %v2957
        %4082 = vmatprep.subr.mxu0 %v2961
        %4083 = vmatpush1.msra.mxu0 %v2960
        %4084 = vmatprep.subr.mxu0 %v2964
        %4085 = vmatpush1.msra.mxu0 %v2963
        %4086 = vmatprep.subr.mxu0 %v2967
        %4087 = vmatpush1.msra.mxu0 %v2966
        %4088 = vmatprep.subr.mxu0 %v2970
        %4089 = vmatpush1.msra.mxu0 %v2969
        %4090 = vmatprep.subr.mxu0 %v2973
        %4091 = vmatpush1.msra.mxu0 %v2972
        %4092 = vmatprep.subr.mxu0 %v2976
        %4093 = vmatpush1.msra.mxu0 %v2975
        %4094 = vmatprep.subr.mxu0 %v2979
        %4095 = vmatpush1.msra.mxu0 %v2978
        %4096 = vmatprep.subr.mxu0 %v2982
        %4097 = vmatpush1.msra.mxu0 %v2981
        %4098 = vmatprep.subr.mxu0 %v2985
        %4099 = vmatpush1.msra.mxu0 %v2984
        %4100 = vmatprep.subr.mxu0 %v2988
        %4101 = vmatpush1.msra.mxu0 %v2987
        %4102 = vmatprep.subr.mxu0 %v2991
        %4103 = vmatpush1.msra.mxu0 %v2990
        %4104 = vmatprep.subr.mxu0 %v2994
        %4105 = vmatpush1.msra.mxu0 %v2993
        %4106 = vmatprep.subr.mxu0 %v2997
        %4107 = vmatpush1.msra.mxu0 %v2996
        %4108 = vmatprep.subr.mxu0 0.0
        %4109 = vmatpush1.msra.mxu0 0.0
        %4110 = vmatprep.subr.mxu0 0.0
        %4111 = vmatpush1.msra.mxu0 0.0
        %4112 = vmatprep.subr.mxu0 0.0
        %4113 = vmatpush1.msra.mxu0 0.0
        %4114 = vmatprep.subr.mxu0 0.0
        %4115 = vmatpush1.msra.mxu0 0.0
        %4116 = vmatprep.subr.mxu0 0.0
        %4117 = vmatpush1.msra.mxu0 0.0
        %4118 = vmatprep.subr.mxu0 0.0
        %4119 = vmatpush1.msra.mxu0 0.0
        %4120 = vmatprep.subr.mxu0 0.0
        %4121 = vmatpush1.msra.mxu0 0.0
        %4122 = vmatprep.subr.mxu0 0.0
        %4123 = vmatpush1.msra.mxu0 0.0
        %4124 = vmatprep.subr.mxu0 0.0
        %4125 = vmatpush1.msra.mxu0 0.0
        %4126 = vmatprep.subr.mxu0 0.0
        %4127 = vmatpush1.msra.mxu0 0.0
        %4128 = vmatprep.subr.mxu0 0.0
        %4129 = vmatpush1.msra.mxu0 0.0
        %4130 = vmatprep.subr.mxu0 0.0
        %4131 = vmatpush1.msra.mxu0 0.0
        %4132 = vmatprep.subr.mxu0 0.0
        %4133 = vmatpush1.msra.mxu0 0.0
        %4134 = vmatprep.subr.mxu0 0.0
        %4135 = vmatpush1.msra.mxu0 0.0
        %4136 = vmatprep.subr.mxu0 0.0
        %4137 = vmatpush1.msra.mxu0 0.0
        %4138 = vmatprep.subr.mxu0 0.0
        %4139 = vmatpush1.msra.mxu0 0.0
        %4140 = vmatprep.subr.mxu0 0.0
        %4141 = vmatpush1.msra.mxu0 0.0
        %4142 = vmatprep.mubr.f32.mxu0 0.0
        %4143 = vmatmul.mubr.f32.gmra.mrb[0].mxu0 %v4076
        %v4144 = vpop.f32.mrb[0].mxu0
        %v4145 = vadd.f32 %v3115, %v4144
        %v4146 = vpop.f32.mrb[0].mxu0
        %v4147 = vadd.f32 %v3117, %v4146
        %4148 = vdwg.mxu0
        %4149 = vmatprep.subr.mxu0 0.0
        %4150 = vmatpush1.msra.mxu0 %v2956
        %4151 = vmatprep.subr.mxu0 0.0
        %4152 = vmatpush1.msra.mxu0 %v2959
        %4153 = vmatprep.subr.mxu0 0.0
        %4154 = vmatpush1.msra.mxu0 %v2962
        %4155 = vmatprep.subr.mxu0 0.0
        %4156 = vmatpush1.msra.mxu0 %v2965
        %4157 = vmatprep.subr.mxu0 0.0
        %4158 = vmatpush1.msra.mxu0 %v2968
        %4159 = vmatprep.subr.mxu0 0.0
        %4160 = vmatpush1.msra.mxu0 %v2971
        %4161 = vmatprep.subr.mxu0 0.0
        %4162 = vmatpush1.msra.mxu0 %v2974
        %4163 = vmatprep.subr.mxu0 0.0
        %4164 = vmatpush1.msra.mxu0 %v2977
        %4165 = vmatprep.subr.mxu0 0.0
        %4166 = vmatpush1.msra.mxu0 %v2980
        %4167 = vmatprep.subr.mxu0 0.0
        %4168 = vmatpush1.msra.mxu0 %v2983
        %4169 = vmatprep.subr.mxu0 0.0
        %4170 = vmatpush1.msra.mxu0 %v2986
        %4171 = vmatprep.subr.mxu0 0.0
        %4172 = vmatpush1.msra.mxu0 %v2989
        %4173 = vmatprep.subr.mxu0 0.0
        %4174 = vmatpush1.msra.mxu0 %v2992
        %4175 = vmatprep.subr.mxu0 0.0
        %4176 = vmatpush1.msra.mxu0 %v2995
        %4177 = vmatprep.subr.mxu0 0.0
        %4178 = vmatpush1.msra.mxu0 %v2998
        %4179 = vmatprep.subr.mxu0 0.0
        %4180 = vmatpush1.msra.mxu0 0.0
        %4181 = vmatprep.subr.mxu0 0.0
        %4182 = vmatpush1.msra.mxu0 0.0
        %4183 = vmatprep.subr.mxu0 0.0
        %4184 = vmatpush1.msra.mxu0 0.0
        %4185 = vmatprep.subr.mxu0 0.0
        %4186 = vmatpush1.msra.mxu0 0.0
        %4187 = vmatprep.subr.mxu0 0.0
        %4188 = vmatpush1.msra.mxu0 0.0
        %4189 = vmatprep.subr.mxu0 0.0
        %4190 = vmatpush1.msra.mxu0 0.0
        %4191 = vmatprep.subr.mxu0 0.0
        %4192 = vmatpush1.msra.mxu0 0.0
        %4193 = vmatprep.subr.mxu0 0.0
        %4194 = vmatpush1.msra.mxu0 0.0
        %4195 = vmatprep.subr.mxu0 0.0
        %4196 = vmatpush1.msra.mxu0 0.0
        %4197 = vmatprep.subr.mxu0 0.0
        %4198 = vmatpush1.msra.mxu0 0.0
        %4199 = vmatprep.subr.mxu0 0.0
        %4200 = vmatpush1.msra.mxu0 0.0
        %4201 = vmatprep.subr.mxu0 0.0
        %4202 = vmatpush1.msra.mxu0 0.0
        %4203 = vmatprep.subr.mxu0 0.0
        %4204 = vmatpush1.msra.mxu0 0.0
        %4205 = vmatprep.subr.mxu0 0.0
        %4206 = vmatpush1.msra.mxu0 0.0
        %4207 = vmatprep.subr.mxu0 0.0
        %4208 = vmatpush1.msra.mxu0 0.0
        %4209 = vmatprep.subr.mxu0 0.0
        %4210 = vmatpush1.msra.mxu0 0.0
        %4211 = vmatprep.subr.mxu0 0.0
        %4212 = vmatpush1.msra.mxu0 0.0
        %4213 = vmatprep.mubr.f32.mxu0 0.0
        %4214 = vmatmul.mubr.f32.gmra.mrb[0].mxu0 %v4076
        %v4215 = vpop.f32.mrb[0].mxu0
        %v4216 = vadd.f32 %v3186, %v4215
        %v4217 = vpop.f32.mrb[0].mxu0
        %4218 = vdwg.mxu0
        %v4219 = vrot.slane %v2054, 1
        %v4220 = vsel %vm684, %v4219, 0
        %4222 = vmatprep.subr.mxu0 %v3191
        %4223 = vmatpush1.msra.mxu0 %v3190
        %4224 = vmatprep.subr.mxu0 %v3194
        %4225 = vmatpush1.msra.mxu0 %v3193
        %4226 = vmatprep.subr.mxu0 %v3197
        %4227 = vmatpush1.msra.mxu0 %v3196
        %4228 = vmatprep.subr.mxu0 %v3200
        %4229 = vmatpush1.msra.mxu0 %v3199
        %4230 = vmatprep.subr.mxu0 %v3203
        %4231 = vmatpush1.msra.mxu0 %v3202
        %4232 = vmatprep.subr.mxu0 %v3206
        %4233 = vmatpush1.msra.mxu0 %v3205
        %4234 = vmatprep.subr.mxu0 %v3209
        %4235 = vmatpush1.msra.mxu0 %v3208
        %4236 = vmatprep.subr.mxu0 %v3212
        %4237 = vmatpush1.msra.mxu0 %v3211
        %4238 = vmatprep.subr.mxu0 %v3215
        %4239 = vmatpush1.msra.mxu0 %v3214
        %4240 = vmatprep.subr.mxu0 %v3218
        %4241 = vmatpush1.msra.mxu0 %v3217
        %4242 = vmatprep.subr.mxu0 %v3221
        %4243 = vmatpush1.msra.mxu0 %v3220
        %4244 = vmatprep.subr.mxu0 %v3224
        %4245 = vmatpush1.msra.mxu0 %v3223
        %4246 = vmatprep.subr.mxu0 %v3227
        %4247 = vmatpush1.msra.mxu0 %v3226
        %4248 = vmatprep.subr.mxu0 %v3230
        %4249 = vmatpush1.msra.mxu0 %v3229
        %4250 = vmatprep.subr.mxu0 %v3233
        %4251 = vmatpush1.msra.mxu0 %v3232
        %4252 = vmatprep.subr.mxu0 0.0
        %4253 = vmatpush1.msra.mxu0 0.0
        %4254 = vmatprep.subr.mxu0 0.0
        %4255 = vmatpush1.msra.mxu0 0.0
        %4256 = vmatprep.subr.mxu0 0.0
        %4257 = vmatpush1.msra.mxu0 0.0
        %4258 = vmatprep.subr.mxu0 0.0
        %4259 = vmatpush1.msra.mxu0 0.0
        %4260 = vmatprep.subr.mxu0 0.0
        %4261 = vmatpush1.msra.mxu0 0.0
        %4262 = vmatprep.subr.mxu0 0.0
        %4263 = vmatpush1.msra.mxu0 0.0
        %4264 = vmatprep.subr.mxu0 0.0
        %4265 = vmatpush1.msra.mxu0 0.0
        %4266 = vmatprep.subr.mxu0 0.0
        %4267 = vmatpush1.msra.mxu0 0.0
        %4268 = vmatprep.subr.mxu0 0.0
        %4269 = vmatpush1.msra.mxu0 0.0
        %4270 = vmatprep.subr.mxu0 0.0
        %4271 = vmatpush1.msra.mxu0 0.0
        %4272 = vmatprep.subr.mxu0 0.0
        %4273 = vmatpush1.msra.mxu0 0.0
        %4274 = vmatprep.subr.mxu0 0.0
        %4275 = vmatpush1.msra.mxu0 0.0
        %4276 = vmatprep.subr.mxu0 0.0
        %4277 = vmatpush1.msra.mxu0 0.0
        %4278 = vmatprep.subr.mxu0 0.0
        %4279 = vmatpush1.msra.mxu0 0.0
        %4280 = vmatprep.subr.mxu0 0.0
        %4281 = vmatpush1.msra.mxu0 0.0
        %4282 = vmatprep.subr.mxu0 0.0
        %4283 = vmatpush1.msra.mxu0 0.0
        %4284 = vmatprep.subr.mxu0 0.0
        %4285 = vmatpush1.msra.mxu0 0.0
        %4286 = vmatprep.mubr.f32.mxu0 0.0
        %4287 = vmatmul.mubr.f32.gmra.mrb[0].mxu0 %v4220
        %v4288 = vpop.f32.mrb[0].mxu0
        %v4289 = vadd.f32 %v3351, %v4288
        %v4290 = vpop.f32.mrb[0].mxu0
        %v4291 = vadd.f32 %v3353, %v4290
        %4292 = vdwg.mxu0
        %4293 = vmatprep.subr.mxu0 0.0
        %4294 = vmatpush1.msra.mxu0 %v3192
        %4295 = vmatprep.subr.mxu0 0.0
        %4296 = vmatpush1.msra.mxu0 %v3195
        %4297 = vmatprep.subr.mxu0 0.0
        %4298 = vmatpush1.msra.mxu0 %v3198
        %4299 = vmatprep.subr.mxu0 0.0
        %4300 = vmatpush1.msra.mxu0 %v3201
        %4301 = vmatprep.subr.mxu0 0.0
        %4302 = vmatpush1.msra.mxu0 %v3204
        %4303 = vmatprep.subr.mxu0 0.0
        %4304 = vmatpush1.msra.mxu0 %v3207
        %4305 = vmatprep.subr.mxu0 0.0
        %4306 = vmatpush1.msra.mxu0 %v3210
        %4307 = vmatprep.subr.mxu0 0.0
        %4308 = vmatpush1.msra.mxu0 %v3213
        %4309 = vmatprep.subr.mxu0 0.0
        %4310 = vmatpush1.msra.mxu0 %v3216
        %4311 = vmatprep.subr.mxu0 0.0
        %4312 = vmatpush1.msra.mxu0 %v3219
        %4313 = vmatprep.subr.mxu0 0.0
        %4314 = vmatpush1.msra.mxu0 %v3222
        %4315 = vmatprep.subr.mxu0 0.0
        %4316 = vmatpush1.msra.mxu0 %v3225
        %4317 = vmatprep.subr.mxu0 0.0
        %4318 = vmatpush1.msra.mxu0 %v3228
        %4319 = vmatprep.subr.mxu0 0.0
        %4320 = vmatpush1.msra.mxu0 %v3231
        %4321 = vmatprep.subr.mxu0 0.0
        %4322 = vmatpush1.msra.mxu0 %v3234
        %4323 = vmatprep.subr.mxu0 0.0
        %4324 = vmatpush1.msra.mxu0 0.0
        %4325 = vmatprep.subr.mxu0 0.0
        %4326 = vmatpush1.msra.mxu0 0.0
        %4327 = vmatprep.subr.mxu0 0.0
        %4328 = vmatpush1.msra.mxu0 0.0
        %4329 = vmatprep.subr.mxu0 0.0
        %4330 = vmatpush1.msra.mxu0 0.0
        %4331 = vmatprep.subr.mxu0 0.0
        %4332 = vmatpush1.msra.mxu0 0.0
        %4333 = vmatprep.subr.mxu0 0.0
        %4334 = vmatpush1.msra.mxu0 0.0
        %4335 = vmatprep.subr.mxu0 0.0
        %4336 = vmatpush1.msra.mxu0 0.0
        %4337 = vmatprep.subr.mxu0 0.0
        %4338 = vmatpush1.msra.mxu0 0.0
        %4339 = vmatprep.subr.mxu0 0.0
        %4340 = vmatpush1.msra.mxu0 0.0
        %4341 = vmatprep.subr.mxu0 0.0
        %4342 = vmatpush1.msra.mxu0 0.0
        %4343 = vmatprep.subr.mxu0 0.0
        %4344 = vmatpush1.msra.mxu0 0.0
        %4345 = vmatprep.subr.mxu0 0.0
        %4346 = vmatpush1.msra.mxu0 0.0
        %4347 = vmatprep.subr.mxu0 0.0
        %4348 = vmatpush1.msra.mxu0 0.0
        %4349 = vmatprep.subr.mxu0 0.0
        %4350 = vmatpush1.msra.mxu0 0.0
        %4351 = vmatprep.subr.mxu0 0.0
        %4352 = vmatpush1.msra.mxu0 0.0
        %4353 = vmatprep.subr.mxu0 0.0
        %4354 = vmatpush1.msra.mxu0 0.0
        %4355 = vmatprep.subr.mxu0 0.0
        %4356 = vmatpush1.msra.mxu0 0.0
        %4357 = vmatprep.mubr.f32.mxu0 0.0
        %4358 = vmatmul.mubr.f32.gmra.mrb[0].mxu0 %v4220
        %v4359 = vpop.f32.mrb[0].mxu0
        %v4360 = vadd.f32 %v3422, %v4359
        %v4361 = vpop.f32.mrb[0].mxu0
        %4362 = vdwg.mxu0
        %v4366 = vcombine.low %v3713, %v3715
        %v4368 = vunpack.c.l.s4 1966171168
        %v4369 = vunpack.c.0.s8 %v4368
        %v4370 = vlaneseq
        %v4371 = vshrl.u32 %v4370, 7
        %v4372 = vsub.s32 %v4369, %v4371
        %v4373 = vrot.slane %v4366, %v4372
        %v4375 = vunpack.c.l.s4 1966171168
        %v4376 = vunpack.c.0.s8 %v4375
        %v4377 = vlaneseq
        %v4378 = vshrl.u32 %v4377, 7
        %v4379 = vsub.s32 %v4376, %v4378
        %v4380 = vrot.slane %v3784, %v4379
        %v4381 = vcombine.low %v4373, %v4380
        %v4383 = vunpack.c.l.s4 1966171168
        %v4384 = vunpack.c.0.s8 %v4383
        %v4385 = vlaneseq
        %v4386 = vshrl.u32 %v4385, 7
        %v4387 = vsub.s32 %v4384, %v4386
        %v4388 = vrot.slane %v4381, %v4387
        %v4390 = vadd.f32 %v3642, %v4388
        %v4391 = vadd.f32 %v3857, %v4001
        %v4392 = vadd.f32 %v3859, %v4003
        %v4393 = vadd.f32 %v3928, %v4072
        %v4394 = vadd.f32 %v4145, %v4289
        %v4395 = vadd.f32 %v4147, %v4291
        %v4396 = vadd.f32 %v4216, %v4360
        %v4400 = vcombine.low %v4391, %v4392
        %v4402 = vunpack.c.l.s4 1966171168
        %v4403 = vunpack.c.0.s8 %v4402
        %v4404 = vlaneseq
        %v4405 = vshrl.u32 %v4404, 7
        %v4406 = vsub.s32 %v4403, %v4405
        %v4407 = vrot.slane %v4400, %v4406
        %v4409 = vunpack.c.l.s4 1966171168
        %v4410 = vunpack.c.0.s8 %v4409
        %v4411 = vlaneseq
        %v4412 = vshrl.u32 %v4411, 7
        %v4413 = vsub.s32 %v4410, %v4412
        %v4414 = vrot.slane %v4393, %v4413
        %v4415 = vcombine.low %v4407, %v4414
        %v4417 = vunpack.c.l.s4 1966171168
        %v4418 = vunpack.c.0.s8 %v4417
        %v4419 = vlaneseq
        %v4420 = vshrl.u32 %v4419, 7
        %v4421 = vsub.s32 %v4418, %v4420
        %v4422 = vrot.slane %v4415, %v4421
        %v4424 = vadd.f32 %v4390, %v4422
        %v4425 = vadd.f32 %v4394, %v3541
        %v4426 = vadd.f32 %v4395, %v3543
        %v4427 = vadd.f32 %v4396, %v3612
        %v4431 = vcombine.low %v4425, %v4426
        %v4433 = vunpack.c.l.s4 1966171168
        %v4434 = vunpack.c.0.s8 %v4433
        %v4435 = vlaneseq
        %v4436 = vshrl.u32 %v4435, 7
        %v4437 = vsub.s32 %v4434, %v4436
        %v4438 = vrot.slane %v4431, %v4437
        %v4440 = vunpack.c.l.s4 1966171168
        %v4441 = vunpack.c.0.s8 %v4440
        %v4442 = vlaneseq
        %v4443 = vshrl.u32 %v4442, 7
        %v4444 = vsub.s32 %v4441, %v4443
        %v4445 = vrot.slane %v4427, %v4444
        %v4446 = vcombine.low %v4438, %v4445
        %v4448 = vunpack.c.l.s4 1966171168
        %v4449 = vunpack.c.0.s8 %v4448
        %v4450 = vlaneseq
        %v4451 = vshrl.u32 %v4450, 7
        %v4452 = vsub.s32 %v4449, %v4451
        %v4453 = vrot.slane %v4446, %v4452
        %v4455 = vadd.f32 %v4424, %v4453
        %v4456 = vmax.f32 %v4455, 0.0
        %v4457 = vld [vmem:[#allocation10] sm:$0xff]
        %v4458 = vld [vmem:[#allocation10 + $0x8] sm:$0xff]
        %v4459 = vld [vmem:[#allocation10 + $0x10] sm:$0xff]
        %v4460 = vld [vmem:[#allocation10 + $0x18] sm:$0xff]
        %v4461 = vld [vmem:[#allocation10 + $0x20] sm:$0xff]
        %v4462 = vld [vmem:[#allocation10 + $0x28] sm:$0xff]
        %v4463 = vld [vmem:[#allocation10 + $0x30] sm:$0xff]
        %v4464 = vld [vmem:[#allocation10 + $0x38] sm:$0xff]
        %v4465 = vld [vmem:[#allocation10 + $0x40] sm:$0xff]
        %v4466 = vld [vmem:[#allocation10 + $0x48] sm:$0xff]
        %v4467 = vld [vmem:[#allocation10 + $0x50] sm:$0xff]
        %v4468 = vld [vmem:[#allocation10 + $0x58] sm:$0xff]
        %v4469 = vld [vmem:[#allocation10 + $0x60] sm:$0xff]
        %v4470 = vld [vmem:[#allocation10 + $0x68] sm:$0xff]
        %v4471 = vld [vmem:[#allocation10 + $0x70] sm:$0xff]
        %v4472 = vld [vmem:[#allocation10 + $0x78] sm:$0xff]
        %v4473 = vld [vmem:[#allocation10 + $0x80] sm:$0xff]
        %v4474 = vld [vmem:[#allocation10 + $0x88] sm:$0xff]
        %v4475 = vld [vmem:[#allocation10 + $0x90] sm:$0xff]
        %v4476 = vld [vmem:[#allocation10 + $0x98] sm:$0xff]
        %v4477 = vld [vmem:[#allocation10 + $0xa0] sm:$0xff]
        %v4478 = vld [vmem:[#allocation10 + $0xa8] sm:$0xff]
        %v4479 = vld [vmem:[#allocation10 + $0xb0] sm:$0xff]
        %v4480 = vld [vmem:[#allocation10 + $0xb8] sm:$0xff]
        %v4481 = vld [vmem:[#allocation10 + $0xc0] sm:$0xff]
        %v4482 = vld [vmem:[#allocation10 + $0xc8] sm:$0xff]
        %v4483 = vld [vmem:[#allocation10 + $0xd0] sm:$0xff]
        %v4484 = vld [vmem:[#allocation10 + $0xd8] sm:$0xff]
        %v4485 = vld [vmem:[#allocation10 + $0xe0] sm:$0xff]
        %v4486 = vld [vmem:[#allocation10 + $0xe8] sm:$0xff]
        %v4487 = vld [vmem:[#allocation10 + $0xf0] sm:$0xff]
        %v4488 = vld [vmem:[#allocation10 + $0xf8] sm:$0xff]
        %v4489 = vld [vmem:[#allocation10 + $0x100] sm:$0xff]
        %v4490 = vld [vmem:[#allocation10 + $0x108] sm:$0xff]
        %v4491 = vld [vmem:[#allocation10 + $0x110] sm:$0xff]
        %v4492 = vld [vmem:[#allocation10 + $0x118] sm:$0xff]
        %v4493 = vld [vmem:[#allocation10 + $0x120] sm:$0xff]
        %v4494 = vld [vmem:[#allocation10 + $0x128] sm:$0xff]
        %v4495 = vld [vmem:[#allocation10 + $0x130] sm:$0xff]
        %v4496 = vld [vmem:[#allocation10 + $0x138] sm:$0xff]
        %v4497 = vld [vmem:[#allocation10 + $0x140] sm:$0xff]
        %v4498 = vld [vmem:[#allocation10 + $0x148] sm:$0xff]
        %v4499 = vld [vmem:[#allocation10 + $0x150] sm:$0xff]
        %v4500 = vld [vmem:[#allocation10 + $0x158] sm:$0xff]
        %v4501 = vld [vmem:[#allocation10 + $0x160] sm:$0xff]
        %v4502 = vld [vmem:[#allocation10 + $0x168] sm:$0xff]
        %v4503 = vld [vmem:[#allocation10 + $0x170] sm:$0xff]
        %v4504 = vld [vmem:[#allocation10 + $0x178] sm:$0xff]
        %v4505 = vld [vmem:[#allocation12] sm:$0x1]
        %v4507 = vlaneseq
        %v4508 = vshrl.u32 %v4507, 7
        %v4509 = vsub.s32 0, %v4508
        %v4510 = vrot.slane %v4456, %v4509
        %v4511 = vlaneseq
        %v4512 = vshrl.u32 %v4511, 7
        %v4513 = vsub.s32 1, %v4512
        %v4514 = vrot.slane %v4456, %v4513
        %v4515 = vlaneseq
        %v4516 = vshrl.u32 %v4515, 7
        %v4517 = vsub.s32 2, %v4516
        %v4518 = vrot.slane %v4456, %v4517
        %4522 = vmatprep.subr.mxu0 0.0
        %4523 = vmatpush1.msra.mxu0 %v4457
        %4524 = vmatprep.subr.mxu0 0.0
        %4525 = vmatpush1.msra.mxu0 %v4458
        %4526 = vmatprep.subr.mxu0 0.0
        %4527 = vmatpush1.msra.mxu0 %v4459
        %4528 = vmatprep.subr.mxu0 0.0
        %4529 = vmatpush1.msra.mxu0 %v4460
        %4530 = vmatprep.subr.mxu0 0.0
        %4531 = vmatpush1.msra.mxu0 %v4461
        %4532 = vmatprep.subr.mxu0 0.0
        %4533 = vmatpush1.msra.mxu0 %v4462
        %4534 = vmatprep.subr.mxu0 0.0
        %4535 = vmatpush1.msra.mxu0 %v4463
        %4536 = vmatprep.subr.mxu0 0.0
        %4537 = vmatpush1.msra.mxu0 %v4464
        %4538 = vmatprep.subr.mxu0 0.0
        %4539 = vmatpush1.msra.mxu0 %v4465
        %4540 = vmatprep.subr.mxu0 0.0
        %4541 = vmatpush1.msra.mxu0 %v4466
        %4542 = vmatprep.subr.mxu0 0.0
        %4543 = vmatpush1.msra.mxu0 %v4467
        %4544 = vmatprep.subr.mxu0 0.0
        %4545 = vmatpush1.msra.mxu0 %v4468
        %4546 = vmatprep.subr.mxu0 0.0
        %4547 = vmatpush1.msra.mxu0 %v4469
        %4548 = vmatprep.subr.mxu0 0.0
        %4549 = vmatpush1.msra.mxu0 %v4470
        %4550 = vmatprep.subr.mxu0 0.0
        %4551 = vmatpush1.msra.mxu0 %v4471
        %4552 = vmatprep.subr.mxu0 0.0
        %4553 = vmatpush1.msra.mxu0 %v4472
        %4554 = vmatprep.subr.mxu0 0.0
        %4555 = vmatpush1.msra.mxu0 %v4473
        %4556 = vmatprep.subr.mxu0 0.0
        %4557 = vmatpush1.msra.mxu0 %v4474
        %4558 = vmatprep.subr.mxu0 0.0
        %4559 = vmatpush1.msra.mxu0 %v4475
        %4560 = vmatprep.subr.mxu0 0.0
        %4561 = vmatpush1.msra.mxu0 %v4476
        %4562 = vmatprep.subr.mxu0 0.0
        %4563 = vmatpush1.msra.mxu0 %v4477
        %4564 = vmatprep.subr.mxu0 0.0
        %4565 = vmatpush1.msra.mxu0 %v4478
        %4566 = vmatprep.subr.mxu0 0.0
        %4567 = vmatpush1.msra.mxu0 %v4479
        %4568 = vmatprep.subr.mxu0 0.0
        %4569 = vmatpush1.msra.mxu0 %v4480
        %4570 = vmatprep.subr.mxu0 0.0
        %4571 = vmatpush1.msra.mxu0 %v4481
        %4572 = vmatprep.subr.mxu0 0.0
        %4573 = vmatpush1.msra.mxu0 %v4482
        %4574 = vmatprep.subr.mxu0 0.0
        %4575 = vmatpush1.msra.mxu0 %v4483
        %4576 = vmatprep.subr.mxu0 0.0
        %4577 = vmatpush1.msra.mxu0 %v4484
        %4578 = vmatprep.subr.mxu0 0.0
        %4579 = vmatpush1.msra.mxu0 %v4485
        %4580 = vmatprep.subr.mxu0 0.0
        %4581 = vmatpush1.msra.mxu0 %v4486
        %4582 = vmatprep.subr.mxu0 0.0
        %4583 = vmatpush1.msra.mxu0 %v4487
        %4584 = vmatprep.subr.mxu0 0.0
        %4585 = vmatpush1.msra.mxu0 %v4488
        %4586 = vmatprep.mubr.f32.mxu0 %v4514
        %4587 = vmatmul.mubr.f32.gmra.mrb[0].mxu0 %v4510
        %v4588 = vpop.f32.mrb[0].mxu0
        %v4589 = vadd.f32 %v4505, %v4588
        %v4590 = vpop.f32.mrb[0].mxu0
        %4591 = vdwg.mxu0
        %4592 = vmatprep.subr.mxu0 0.0
        %4593 = vmatpush1.msra.mxu0 %v4489
        %4594 = vmatprep.subr.mxu0 0.0
        %4595 = vmatpush1.msra.mxu0 %v4490
        %4596 = vmatprep.subr.mxu0 0.0
        %4597 = vmatpush1.msra.mxu0 %v4491
        %4598 = vmatprep.subr.mxu0 0.0
        %4599 = vmatpush1.msra.mxu0 %v4492
        %4600 = vmatprep.subr.mxu0 0.0
        %4601 = vmatpush1.msra.mxu0 %v4493
        %4602 = vmatprep.subr.mxu0 0.0
        %4603 = vmatpush1.msra.mxu0 %v4494
        %4604 = vmatprep.subr.mxu0 0.0
        %4605 = vmatpush1.msra.mxu0 %v4495
        %4606 = vmatprep.subr.mxu0 0.0
        %4607 = vmatpush1.msra.mxu0 %v4496
        %4608 = vmatprep.subr.mxu0 0.0
        %4609 = vmatpush1.msra.mxu0 %v4497
        %4610 = vmatprep.subr.mxu0 0.0
        %4611 = vmatpush1.msra.mxu0 %v4498
        %4612 = vmatprep.subr.mxu0 0.0
        %4613 = vmatpush1.msra.mxu0 %v4499
        %4614 = vmatprep.subr.mxu0 0.0
        %4615 = vmatpush1.msra.mxu0 %v4500
        %4616 = vmatprep.subr.mxu0 0.0
        %4617 = vmatpush1.msra.mxu0 %v4501
        %4618 = vmatprep.subr.mxu0 0.0
        %4619 = vmatpush1.msra.mxu0 %v4502
        %4620 = vmatprep.subr.mxu0 0.0
        %4621 = vmatpush1.msra.mxu0 %v4503
        %4622 = vmatprep.subr.mxu0 0.0
        %4623 = vmatpush1.msra.mxu0 %v4504
        %4624 = vmatprep.subr.mxu0 0.0
        %4625 = vmatpush1.msra.mxu0 0.0
        %4626 = vmatprep.subr.mxu0 0.0
        %4627 = vmatpush1.msra.mxu0 0.0
        %4628 = vmatprep.subr.mxu0 0.0
        %4629 = vmatpush1.msra.mxu0 0.0
        %4630 = vmatprep.subr.mxu0 0.0
        %4631 = vmatpush1.msra.mxu0 0.0
        %4632 = vmatprep.subr.mxu0 0.0
        %4633 = vmatpush1.msra.mxu0 0.0
        %4634 = vmatprep.subr.mxu0 0.0
        %4635 = vmatpush1.msra.mxu0 0.0
        %4636 = vmatprep.subr.mxu0 0.0
        %4637 = vmatpush1.msra.mxu0 0.0
        %4638 = vmatprep.subr.mxu0 0.0
        %4639 = vmatpush1.msra.mxu0 0.0
        %4640 = vmatprep.subr.mxu0 0.0
        %4641 = vmatpush1.msra.mxu0 0.0
        %4642 = vmatprep.subr.mxu0 0.0
        %4643 = vmatpush1.msra.mxu0 0.0
        %4644 = vmatprep.subr.mxu0 0.0
        %4645 = vmatpush1.msra.mxu0 0.0
        %4646 = vmatprep.subr.mxu0 0.0
        %4647 = vmatpush1.msra.mxu0 0.0
        %4648 = vmatprep.subr.mxu0 0.0
        %4649 = vmatpush1.msra.mxu0 0.0
        %4650 = vmatprep.subr.mxu0 0.0
        %4651 = vmatpush1.msra.mxu0 0.0
        %4652 = vmatprep.subr.mxu0 0.0
        %4653 = vmatpush1.msra.mxu0 0.0
        %4654 = vmatprep.subr.mxu0 0.0
        %4655 = vmatpush1.msra.mxu0 0.0
        %4656 = vmatprep.mubr.f32.mxu0 0.0
        %4657 = vmatmul.mubr.f32.gmra.mrb[0].mxu0 %v4518
        %v4658 = vpop.f32.mrb[0].mxu0
        %v4659 = vadd.f32 %v4589, %v4658
        %v4660 = vpop.f32.mrb[0].mxu0
        %4661 = vdwg.mxu0
        %4662 = vst [vmem:[%s447] sm:$0x1] %v4659
        %p4663 = scmp.lt.s32.totalorder %s25, 1
        %s4664 = scalar_select %p4663, %s25, 1
        %s4665 = scalar_lea.vmem %s10, %s4664
        // Predicated region
        $region89: #{abcnn_forward.1} parent=59 // pred_check
          %p4666 = pneg %p258
        $region90: #{abcnn_forward.1} parent=59 // pred_check_branch
          %4668 = sbr.rel (%p4666) target = $region92
        $region91: #{abcnn_forward.1} parent=59 // pred_region
          _
        $region92: #{abcnn_forward.1} parent=59 // pred_fallthru
          _
      $region60: #{abcnn_forward.1} parent=5 // pred_fallthru
        _
      %p4669 = scmp.le.s32.totalorder 2, %s20
      // Predicated region
      $region93: #{abcnn_forward.1} parent=5 // pred_check
        %p4670 = pneg %p4669
      $region94: #{abcnn_forward.1} parent=5 // pred_check_branch
        %4672 = sbr.rel (%p4670) target = $region96
      $region95: #{abcnn_forward.1} parent=5 // pred_region
        %s4673 = ssub.s32 %s20, 2
        // Predicated region
        $region97: #{abcnn_forward.1} parent=95 // pred_check
          %p4674 = pneg %p264
        $region98: #{abcnn_forward.1} parent=95 // pred_check_branch
          %4676 = sbr.rel (%p4674) target = $region100
        $region99: #{abcnn_forward.1} parent=95 // pred_region
          %p4677 = scmp.lt.s32.totalorder %s26, 1
          %s4678 = scalar_select %p4677, %s26, 1
          %s4679 = scalar_lea.vmem %s10, %s4678
        $region100: #{abcnn_forward.1} parent=95 // pred_fallthru
          _
      $region96: #{abcnn_forward.1} parent=5 // pred_fallthru
        _
    $region6: #{abcnn_forward.1} parent=1 // loop_footer
      %s24 = sadd.s32 1, %s20
    $region7: #{abcnn_forward.1} parent=1 // loop_footer_branch
      %19 = sbr.rel target = $region3
    $region8: #{abcnn_forward.1} parent=1 // loop_exit
      _
    %4680 = vsyncpa [#allocation3], 1
    %s4681 = scalar_lea.sflag [#allocation3], 1
    %4682 = vsyncpa %s4681, 1
    %4683 = vsyncpa [#allocation5], 1
    %4684 = vsyncpa [#allocation8], 1
    %4685 = vsyncpa [#allocation11], 1

</llo_original>
